<compile_context>
chip_gen: v6e
topology: v6e:2x2x1
jax: 0.10.0
libtpu: 0.0.40
codegen_flags: <defaults>
</compile_context>

<pallas_src>
import functools
import math

import jax
import jax.numpy as jnp
from jax.experimental import pallas as pl
from jax.experimental.pallas import tpu as pltpu

BN_EPS = 1e-5
K_TAPS = 9   # conv kernel width
PAD = 4      # conv padding along W


def _basic_block_kernel(x_ref, scale_ref, shift_ref, w_ref, b_ref, out_ref,
                        slab_ref, *, row_w):
    """Fused BN(affine) -> ReLU -> Conv2d(1x9, pad 4) -> concat([x, out]) for one tile.

    Layout: channels on sublanes, pixels (lane-dense) on lanes.
      x_ref     : (C, TP)       activation tile; TP is a multiple of row_w
      scale_ref : (C, 1)        gamma / sqrt(var + eps)
      shift_ref : (C, 1)        beta - mean * scale
      w_ref     : (O, 9*C)      conv weight, tap-major / channel-minor columns (MXU dtype)
      b_ref     : (O, 1)        conv bias
      out_ref   : (C + O, TP)   [x | conv(relu(bn(x)))]
      slab_ref  : (9*C, TP)     VMEM scratch: im2col slab (9 W-shifted copies stacked)
    """
    C, TP = x_ref.shape

    x = x_ref[...]
    # Passthrough channels first: this store overlaps the slab build / matmul below.
    out_ref[:C, :] = x

    # BN affine + ReLU applied once (batch statistics precomputed in the wrapper).
    y = jnp.maximum(x * scale_ref[...] + shift_ref[...], 0.0)

    # Build the im2col slab: tap k holds y shifted by d = k - PAD along W.  Shifts
    # run on the XLU (pltpu.roll); conv zero padding and cross-(n,h)-row isolation
    # come from the per-row mask (source w + d must stay inside [0, row_w)).  Tiles
    # are aligned to whole W-rows, so the mask depends only on the local pixel index.
    # Every slab element is written each step -> no scratch zero-init needed.
    w_pos = jax.lax.broadcasted_iota(jnp.int32, (1, TP), 1) % row_w
    for k in range(K_TAPS):
        d = k - PAD
        tap = y if d == 0 else pltpu.roll(y, shift=(-d) % TP, axis=1)
        mask = (w_pos + d >= 0) & (w_pos + d < row_w)
        slab_ref[k * C:(k + 1) * C, :] = jnp.where(mask, tap, 0.0)

    # Single fused matmul with K = 9*C, pixels on the MXU N axis; operands in the
    # (possibly bf16) weight dtype, f32 accumulate.
    conv = jnp.dot(w_ref[...], slab_ref[...].astype(w_ref.dtype),
                   preferred_element_type=jnp.float32)
    out_ref[C:, :] = conv + b_ref[...]


def _vmem_capacity_bytes():
    try:
        return int(pltpu.get_tpu_info().vmem_capacity_bytes)
    except Exception:
        return 64 << 20          # v7x-safe fallback


def _pick_tile_p(P, row_w, C, O, vmem_cap):
    """Pixel-tile size: multiple of lcm(row_w, 128), VMEM-budgeted, >=2 grid steps if possible."""
    unit = row_w * 128 // math.gcd(row_w, 128)
    # Per-pixel VMEM bytes: double-buffered f32 in/out tiles + single f32 slab scratch.
    bytes_per_px = 4 * (2 * C + 2 * (C + O) + K_TAPS * C)
    budget = min(max(vmem_cap // 6, 4 << 20), 24 << 20)
    tp = max(unit, budget // bytes_per_px // unit * unit)
    # ~2k-4k pixel tiles amortize the ~600-cycle per-step overhead without bloating padding.
    tp = min(tp, max(unit, 4096 // unit * unit))
    # Keep >= 2 grid steps when P allows so both v7x TensorCores get work.
    half = P // 2 // unit * unit
    if half >= unit:
        tp = min(tp, half)
    # Never exceed the (unit-padded) problem size.
    tp = min(tp, pl.cdiv(P, unit) * unit)
    return tp


def basic_block(x_cp, gamma, beta, w_kco, bias, row_w, matmul_dtype=jnp.bfloat16):
    """One BasicBlock on (C, P) activations (P = N*H*W, W minor); returns (C+O, P)."""
    C, P = x_cp.shape
    O = w_kco.shape[-1]

    x32 = x_cp.astype(jnp.float32)
    g32 = gamma.astype(jnp.float32)

    # Training-mode batch statistics, single pass (mean and E[x^2] from one read of x),
    # hoisted out of the kernel so the kernel can be tiled over pixels.
    # TODO(synk): emit per-tile partial sums from the previous layer's kernel instead,
    # removing this extra HBM read entirely.
    mean = jnp.mean(x32, axis=1)
    mean_sq = jnp.mean(x32 * x32, axis=1)
    var = jnp.maximum(mean_sq - mean * mean, 0.0)
    rstd = jax.lax.rsqrt(var + BN_EPS)
    scale = (g32 * rstd).reshape(C, 1)
    shift = (beta.astype(jnp.float32) - mean * g32 * rstd).reshape(C, 1)

    # (K, C, O) -> (O, 9C): tap-major / channel-minor columns, in the MXU operand dtype.
    w2 = jnp.transpose(w_kco.reshape(K_TAPS * C, O)).astype(matmul_dtype)
    b2 = bias.astype(jnp.float32).reshape(O, 1)

    vmem_cap = _vmem_capacity_bytes()
    tp = _pick_tile_p(P, row_w, C, O, vmem_cap)
    # Mask correctness inside the kernel requires whole-W-row-aligned tiles.
    assert tp % row_w == 0 and (tp % 128 == 0), (tp, row_w)
    p_pad = pl.cdiv(P, tp) * tp
    if p_pad != P:
        # Pad with whole W-rows of zeros: padded pixels never leak into valid outputs
        # because every cross-row tap is masked inside the kernel.
        x32 = jnp.pad(x32, ((0, 0), (0, p_pad - P)))

    kernel = functools.partial(_basic_block_kernel, row_w=row_w)
    out = pl.pallas_call(
        kernel,
        out_shape=jax.ShapeDtypeStruct((C + O, p_pad), jnp.float32),
        grid=(p_pad // tp,),
        in_specs=[
            pl.BlockSpec((C, tp), lambda i: (0, i)),
            pl.BlockSpec((C, 1), lambda i: (0, 0)),
            pl.BlockSpec((C, 1), lambda i: (0, 0)),
            pl.BlockSpec((O, K_TAPS * C), lambda i: (0, 0)),
            pl.BlockSpec((O, 1), lambda i: (0, 0)),
        ],
        out_specs=pl.BlockSpec((C + O, tp), lambda i: (0, i)),
        scratch_shapes=[pltpu.VMEM((K_TAPS * C, tp), jnp.float32)],
        compiler_params=pltpu.CompilerParams(
            dimension_semantics=("parallel",),
            vmem_limit_bytes=int(min(vmem_cap * 3 // 4, 100 << 20)),
        ),
    )(x32, scale, shift, w2, b2)
    return out[:, :P] if p_pad != P else out


def dense_block(x_nchw, params, matmul_dtype=jnp.bfloat16):
    """DenseBlock forward. x_nchw: (N, C, H, W) -> (N, C + L*grow, H, W)."""
    N, C, H, W = x_nchw.shape
    # Channel-first / pixel-last layout (W minor); NCHW <-> (C, P) transposes happen once.
    x = jnp.transpose(x_nchw, (1, 0, 2, 3)).reshape(C, N * H * W)
    # TODO(synk): with channel counts padded to multiples of 128, alias a single
    # (C_total, P) buffer across layers (input_output_aliases) so each layer writes
    # only its new channels and the O(L^2) passthrough traffic disappears.
    for p in params:
        x = basic_block(x, p["gamma"], p["beta"], p["w"], p["b"], W,
                        matmul_dtype=matmul_dtype)
    c_total = x.shape[0]
    return jnp.transpose(x.reshape(c_total, N, H, W), (1, 0, 2, 3))


# ----------------------------- pure-JAX reference -----------------------------
def dense_block_ref(x_nchw, params):
    x = x_nchw
    for p in params:
        mean = jnp.mean(x, axis=(0, 2, 3), keepdims=True)
        var = jnp.mean((x - mean) ** 2, axis=(0, 2, 3), keepdims=True)
        y = (x - mean) * jax.lax.rsqrt(var + BN_EPS)
        y = y * p["gamma"][None, :, None, None] + p["beta"][None, :, None, None]
        y = jnp.maximum(y, 0.0)
        w_oihw = jnp.transpose(p["w"], (2, 1, 0))[:, :, None, :]  # (O, C, 1, 9)
        out = jax.lax.conv_general_dilated(
            y, w_oihw, window_strides=(1, 1), padding=((0, 0), (PAD, PAD)),
            dimension_numbers=("NCHW", "OIHW", "NCHW"))
        out = out + p["b"][None, :, None, None]
        x = jnp.concatenate([x, out], axis=1)
    return x


# ----------------------------- deterministic params ---------------------------
def init_params(key, nb_layers, in_planes, grow_rate):
    params = []
    for i in range(nb_layers):
        cin = in_planes + i * grow_rate
        key, k1, k2, k3, k4 = jax.random.split(key, 5)
        bound = 1.0 / ((cin * K_TAPS) ** 0.5)
        params.append({
            "gamma": jax.random.uniform(k1, (cin,), jnp.float32, 0.5, 1.5),
            "beta": jax.random.uniform(k2, (cin,), jnp.float32, -0.5, 0.5),
            "w": jax.random.uniform(k3, (K_TAPS, cin, grow_rate), jnp.float32,
                                    -bound, bound),
            "b": jax.random.uniform(k4, (grow_rate,), jnp.float32, -bound, bound),
        })
    return params


if __name__ == "__main__":
    key = jax.random.PRNGKey(0)
    kx, kp, kx2, kp2 = jax.random.split(key, 4)

    # Primary check: small shape implied by the module; exercises a 2-step grid.
    N, C, H, W = 2, 4, 16, 16
    nb_layers, grow_rate = 3, 4
    x = jax.random.normal(kx, (N, C, H, W), jnp.float32)
    params = init_params(kp, nb_layers, C, grow_rate)
    ref = jax.block_until_ready(dense_block_ref(x, params))

    # Strict numerics: f32 MXU operands match the float32 PyTorch module to 2e-4.
    out_f32 = jax.block_until_ready(
        jax.jit(functools.partial(dense_block, matmul_dtype=jnp.float32))(x, params))
    assert out_f32.shape == (N, C + nb_layers * grow_rate, H, W), out_f32.shape
    err_f32 = float(jnp.max(jnp.abs(out_f32 - ref)))
    assert jnp.allclose(out_f32, ref, atol=2e-4, rtol=2e-4), f"f32 max_err={err_f32}"

    # Default fast path: bf16 MXU operands, f32 accumulate (norm-relative check).
    out_bf16 = jax.block_until_ready(jax.jit(dense_block)(x, params))
    rel = float(jnp.linalg.norm(out_bf16 - ref) / jnp.linalg.norm(ref))
    assert rel < 2e-2, f"bf16 relative_l2_err={rel}"

    # Secondary check: odd channel counts (C=3, grow=5), larger pixel axis, multi-tile grid.
    N2, C2, H2, W2 = 2, 3, 64, 16
    L2, g2 = 2, 5
    x2 = jax.random.normal(kx2, (N2, C2, H2, W2), jnp.float32)
    params2 = init_params(kp2, L2, C2, g2)
    ref2 = jax.block_until_ready(dense_block_ref(x2, params2))
    out2 = jax.block_until_ready(
        jax.jit(functools.partial(dense_block, matmul_dtype=jnp.float32))(x2, params2))
    assert out2.shape == (N2, C2 + L2 * g2, H2, W2), out2.shape
    err2 = float(jnp.max(jnp.abs(out2 - ref2)))
    assert jnp.allclose(out2, ref2, atol=2e-4, rtol=2e-4), f"f32 max_err2={err2}"

    print("KERNEL_OK")
</pallas_src>

<mosaic_0001>
module attributes {stable_mosaic.version = 11 : i64} {
  func.func @_basic_block_kernel(%arg0: i32, %arg1: memref<8x256xf32, #tpu.memory_space<vmem>>, %arg2: memref<8x1xf32, #tpu.memory_space<vmem>>, %arg3: memref<8x1xf32, #tpu.memory_space<vmem>>, %arg4: memref<4x72xf32, #tpu.memory_space<vmem>>, %arg5: memref<4x1xf32, #tpu.memory_space<vmem>>, %arg6: memref<12x256xf32, #tpu.memory_space<vmem>>, %arg7: memref<72x256xf32, #tpu.memory_space<vmem>>) attributes {dimension_semantics = [#tpu.dimension_semantics<parallel>], iteration_bounds = array<i64: 2>, scalar_prefetch = 0 : i64, scratch_operands = 1 : i64, tpu.core_type = #tpu.core_type<tc>, window_params = [{transform_indices = @transform_0, window_bounds = array<i64: 8, 256>}, {pipeline_mode = #tpu.pipeline_mode<synchronous>, transform_indices = @transform_1, window_bounds = array<i64: 8, 1>}, {pipeline_mode = #tpu.pipeline_mode<synchronous>, transform_indices = @transform_2, window_bounds = array<i64: 8, 1>}, {pipeline_mode = #tpu.pipeline_mode<synchronous>, transform_indices = @transform_3, window_bounds = array<i64: 4, 72>}, {pipeline_mode = #tpu.pipeline_mode<synchronous>, transform_indices = @transform_4, window_bounds = array<i64: 4, 1>}, {transform_indices = @transform_5, window_bounds = array<i64: 12, 256>}]} {
    %c0 = arith.constant 0 : index
    %c0_0 = arith.constant 0 : index
    %0 = vector.load %arg1[%c0, %c0_0] : memref<8x256xf32, #tpu.memory_space<vmem>>, vector<8x256xf32>
    %c0_1 = arith.constant 0 : index
    %c0_2 = arith.constant 0 : index
    %1 = vector.load %arg6[%c0_1, %c0_2] : memref<12x256xf32, #tpu.memory_space<vmem>>, vector<8x256xf32>
    tpu.vector_store %arg6[%c0_1, %c0_2], %0 {strides = array<i32>} : memref<12x256xf32, #tpu.memory_space<vmem>>, vector<8x256xf32>,
    %c0_3 = arith.constant 0 : index
    %c0_4 = arith.constant 0 : index
    %2 = vector.load %arg2[%c0_3, %c0_4] : memref<8x1xf32, #tpu.memory_space<vmem>>, vector<8x1xf32>
    %3 = vector.broadcast %2 : vector<8x1xf32> to vector<8x256xf32>
    %4 = arith.mulf %0, %3 : vector<8x256xf32>
    %c0_5 = arith.constant 0 : index
    %c0_6 = arith.constant 0 : index
    %5 = vector.load %arg3[%c0_5, %c0_6] : memref<8x1xf32, #tpu.memory_space<vmem>>, vector<8x1xf32>
    %6 = vector.broadcast %5 : vector<8x1xf32> to vector<8x256xf32>
    %7 = arith.addf %4, %6 : vector<8x256xf32>
    %cst = arith.constant 0.000000e+00 : f32
    %8 = vector.broadcast %cst : f32 to vector<8x256xf32>
    %9 = arith.maximumf %7, %8 : vector<8x256xf32>
    %10 = tpu.iota {dimensions = array<i32: 1>} : vector<1x256xi32>
    %c16_i32 = arith.constant 16 : i32
    %c0_i32 = arith.constant 0 : i32
    %11 = arith.cmpi eq, %c16_i32, %c0_i32 : i32
    %c1_i32 = arith.constant 1 : i32
    %12 = arith.select %11, %c1_i32, %c16_i32 : i32
    %13 = vector.broadcast %12 : i32 to vector<1x256xi32>
    %14 = arith.remsi %10, %13 : vector<1x256xi32>
    %c0_i32_7 = arith.constant 0 : i32
    %15 = vector.broadcast %c0_i32_7 : i32 to vector<1x256xi32>
    %16 = arith.cmpi ne, %14, %15 : vector<1x256xi32>
    %c0_i32_8 = arith.constant 0 : i32
    %17 = vector.broadcast %c0_i32_8 : i32 to vector<1x256xi32>
    %18 = arith.cmpi slt, %14, %17 : vector<1x256xi32>
    %c0_i32_9 = arith.constant 0 : i32
    %19 = arith.cmpi slt, %12, %c0_i32_9 : i32
    %20 = vector.broadcast %19 : i1 to vector<1x256xi1>
    %21 = vector.broadcast %20 : vector<1x256xi1> to vector<1x256xi1>
    %22 = arith.xori %18, %21 : vector<1x256xi1>
    %23 = arith.andi %22, %16 : vector<1x256xi1>
    %24 = vector.broadcast %12 : i32 to vector<1x256xi32>
    %25 = arith.addi %14, %24 : vector<1x256xi32>
    %26 = arith.select %23, %25, %14 : vector<1x256xi1>, vector<1x256xi32>
    %c4_i32 = arith.constant 4 : i32
    %27 = tpu.dynamic_rotate %9 by %c4_i32 dim 1 : vector<8x256xf32>, i32 -> vector<8x256xf32>
    %c-4_i32 = arith.constant -4 : i32
    %28 = vector.broadcast %c-4_i32 : i32 to vector<1x256xi32>
    %29 = arith.addi %26, %28 : vector<1x256xi32>
    %c0_i32_10 = arith.constant 0 : i32
    %30 = vector.broadcast %c0_i32_10 : i32 to vector<1x256xi32>
    %31 = arith.cmpi sge, %29, %30 : vector<1x256xi32>
    %c-4_i32_11 = arith.constant -4 : i32
    %32 = vector.broadcast %c-4_i32_11 : i32 to vector<1x256xi32>
    %33 = arith.addi %26, %32 : vector<1x256xi32>
    %c16_i32_12 = arith.constant 16 : i32
    %34 = vector.broadcast %c16_i32_12 : i32 to vector<1x256xi32>
    %35 = arith.cmpi slt, %33, %34 : vector<1x256xi32>
    %36 = arith.andi %31, %35 : vector<1x256xi1>
    %cst_13 = arith.constant 0.000000e+00 : f32
    %37 = vector.shape_cast %36 : vector<1x256xi1> to vector<1x256xi1>
    %38 = vector.broadcast %37 : vector<1x256xi1> to vector<8x256xi1>
    %39 = vector.broadcast %cst_13 : f32 to vector<8x256xf32>
    %40 = arith.select %38, %27, %39 : vector<8x256xi1>, vector<8x256xf32>
    %c0_14 = arith.constant 0 : index
    %c0_15 = arith.constant 0 : index
    %41 = vector.load %arg7[%c0_14, %c0_15] : memref<72x256xf32, #tpu.memory_space<vmem>>, vector<8x256xf32>
    tpu.vector_store %arg7[%c0_14, %c0_15], %40 {strides = array<i32>} : memref<72x256xf32, #tpu.memory_space<vmem>>, vector<8x256xf32>,
    %c3_i32 = arith.constant 3 : i32
    %42 = tpu.dynamic_rotate %9 by %c3_i32 dim 1 : vector<8x256xf32>, i32 -> vector<8x256xf32>
    %c-3_i32 = arith.constant -3 : i32
    %43 = vector.broadcast %c-3_i32 : i32 to vector<1x256xi32>
    %44 = arith.addi %26, %43 : vector<1x256xi32>
    %c0_i32_16 = arith.constant 0 : i32
    %45 = vector.broadcast %c0_i32_16 : i32 to vector<1x256xi32>
    %46 = arith.cmpi sge, %44, %45 : vector<1x256xi32>
    %c-3_i32_17 = arith.constant -3 : i32
    %47 = vector.broadcast %c-3_i32_17 : i32 to vector<1x256xi32>
    %48 = arith.addi %26, %47 : vector<1x256xi32>
    %c16_i32_18 = arith.constant 16 : i32
    %49 = vector.broadcast %c16_i32_18 : i32 to vector<1x256xi32>
    %50 = arith.cmpi slt, %48, %49 : vector<1x256xi32>
    %51 = arith.andi %46, %50 : vector<1x256xi1>
    %cst_19 = arith.constant 0.000000e+00 : f32
    %52 = vector.shape_cast %51 : vector<1x256xi1> to vector<1x256xi1>
    %53 = vector.broadcast %52 : vector<1x256xi1> to vector<8x256xi1>
    %54 = vector.broadcast %cst_19 : f32 to vector<8x256xf32>
    %55 = arith.select %53, %42, %54 : vector<8x256xi1>, vector<8x256xf32>
    %c8 = arith.constant 8 : index
    %c0_20 = arith.constant 0 : index
    %56 = vector.load %arg7[%c8, %c0_20] : memref<72x256xf32, #tpu.memory_space<vmem>>, vector<8x256xf32>
    tpu.vector_store %arg7[%c8, %c0_20], %55 {strides = array<i32>} : memref<72x256xf32, #tpu.memory_space<vmem>>, vector<8x256xf32>,
    %c2_i32 = arith.constant 2 : i32
    %57 = tpu.dynamic_rotate %9 by %c2_i32 dim 1 : vector<8x256xf32>, i32 -> vector<8x256xf32>
    %c-2_i32 = arith.constant -2 : i32
    %58 = vector.broadcast %c-2_i32 : i32 to vector<1x256xi32>
    %59 = arith.addi %26, %58 : vector<1x256xi32>
    %c0_i32_21 = arith.constant 0 : i32
    %60 = vector.broadcast %c0_i32_21 : i32 to vector<1x256xi32>
    %61 = arith.cmpi sge, %59, %60 : vector<1x256xi32>
    %c-2_i32_22 = arith.constant -2 : i32
    %62 = vector.broadcast %c-2_i32_22 : i32 to vector<1x256xi32>
    %63 = arith.addi %26, %62 : vector<1x256xi32>
    %c16_i32_23 = arith.constant 16 : i32
    %64 = vector.broadcast %c16_i32_23 : i32 to vector<1x256xi32>
    %65 = arith.cmpi slt, %63, %64 : vector<1x256xi32>
    %66 = arith.andi %61, %65 : vector<1x256xi1>
    %cst_24 = arith.constant 0.000000e+00 : f32
    %67 = vector.shape_cast %66 : vector<1x256xi1> to vector<1x256xi1>
    %68 = vector.broadcast %67 : vector<1x256xi1> to vector<8x256xi1>
    %69 = vector.broadcast %cst_24 : f32 to vector<8x256xf32>
    %70 = arith.select %68, %57, %69 : vector<8x256xi1>, vector<8x256xf32>
    %c16 = arith.constant 16 : index
    %c0_25 = arith.constant 0 : index
    %71 = vector.load %arg7[%c16, %c0_25] : memref<72x256xf32, #tpu.memory_space<vmem>>, vector<8x256xf32>
    tpu.vector_store %arg7[%c16, %c0_25], %70 {strides = array<i32>} : memref<72x256xf32, #tpu.memory_space<vmem>>, vector<8x256xf32>,
    %c1_i32_26 = arith.constant 1 : i32
    %72 = tpu.dynamic_rotate %9 by %c1_i32_26 dim 1 : vector<8x256xf32>, i32 -> vector<8x256xf32>
    %c-1_i32 = arith.constant -1 : i32
    %73 = vector.broadcast %c-1_i32 : i32 to vector<1x256xi32>
    %74 = arith.addi %26, %73 : vector<1x256xi32>
    %c0_i32_27 = arith.constant 0 : i32
    %75 = vector.broadcast %c0_i32_27 : i32 to vector<1x256xi32>
    %76 = arith.cmpi sge, %74, %75 : vector<1x256xi32>
    %c-1_i32_28 = arith.constant -1 : i32
    %77 = vector.broadcast %c-1_i32_28 : i32 to vector<1x256xi32>
    %78 = arith.addi %26, %77 : vector<1x256xi32>
    %c16_i32_29 = arith.constant 16 : i32
    %79 = vector.broadcast %c16_i32_29 : i32 to vector<1x256xi32>
    %80 = arith.cmpi slt, %78, %79 : vector<1x256xi32>
    %81 = arith.andi %76, %80 : vector<1x256xi1>
    %cst_30 = arith.constant 0.000000e+00 : f32
    %82 = vector.shape_cast %81 : vector<1x256xi1> to vector<1x256xi1>
    %83 = vector.broadcast %82 : vector<1x256xi1> to vector<8x256xi1>
    %84 = vector.broadcast %cst_30 : f32 to vector<8x256xf32>
    %85 = arith.select %83, %72, %84 : vector<8x256xi1>, vector<8x256xf32>
    %c24 = arith.constant 24 : index
    %c0_31 = arith.constant 0 : index
    %86 = vector.load %arg7[%c24, %c0_31] : memref<72x256xf32, #tpu.memory_space<vmem>>, vector<8x256xf32>
    tpu.vector_store %arg7[%c24, %c0_31], %85 {strides = array<i32>} : memref<72x256xf32, #tpu.memory_space<vmem>>, vector<8x256xf32>,
    %c0_i32_32 = arith.constant 0 : i32
    %87 = vector.broadcast %c0_i32_32 : i32 to vector<1x256xi32>
    %88 = arith.addi %26, %87 : vector<1x256xi32>
    %c0_i32_33 = arith.constant 0 : i32
    %89 = vector.broadcast %c0_i32_33 : i32 to vector<1x256xi32>
    %90 = arith.cmpi sge, %88, %89 : vector<1x256xi32>
    %c0_i32_34 = arith.constant 0 : i32
    %91 = vector.broadcast %c0_i32_34 : i32 to vector<1x256xi32>
    %92 = arith.addi %26, %91 : vector<1x256xi32>
    %c16_i32_35 = arith.constant 16 : i32
    %93 = vector.broadcast %c16_i32_35 : i32 to vector<1x256xi32>
    %94 = arith.cmpi slt, %92, %93 : vector<1x256xi32>
    %95 = arith.andi %90, %94 : vector<1x256xi1>
    %cst_36 = arith.constant 0.000000e+00 : f32
    %96 = vector.shape_cast %95 : vector<1x256xi1> to vector<1x256xi1>
    %97 = vector.broadcast %96 : vector<1x256xi1> to vector<8x256xi1>
    %98 = vector.broadcast %cst_36 : f32 to vector<8x256xf32>
    %99 = arith.select %97, %9, %98 : vector<8x256xi1>, vector<8x256xf32>
    %c32 = arith.constant 32 : index
    %c0_37 = arith.constant 0 : index
    %100 = vector.load %arg7[%c32, %c0_37] : memref<72x256xf32, #tpu.memory_space<vmem>>, vector<8x256xf32>
    tpu.vector_store %arg7[%c32, %c0_37], %99 {strides = array<i32>} : memref<72x256xf32, #tpu.memory_space<vmem>>, vector<8x256xf32>,
    %c255_i32 = arith.constant 255 : i32
    %101 = tpu.dynamic_rotate %9 by %c255_i32 dim 1 : vector<8x256xf32>, i32 -> vector<8x256xf32>
    %c1_i32_38 = arith.constant 1 : i32
    %102 = vector.broadcast %c1_i32_38 : i32 to vector<1x256xi32>
    %103 = arith.addi %26, %102 : vector<1x256xi32>
    %c0_i32_39 = arith.constant 0 : i32
    %104 = vector.broadcast %c0_i32_39 : i32 to vector<1x256xi32>
    %105 = arith.cmpi sge, %103, %104 : vector<1x256xi32>
    %c1_i32_40 = arith.constant 1 : i32
    %106 = vector.broadcast %c1_i32_40 : i32 to vector<1x256xi32>
    %107 = arith.addi %26, %106 : vector<1x256xi32>
    %c16_i32_41 = arith.constant 16 : i32
    %108 = vector.broadcast %c16_i32_41 : i32 to vector<1x256xi32>
    %109 = arith.cmpi slt, %107, %108 : vector<1x256xi32>
    %110 = arith.andi %105, %109 : vector<1x256xi1>
    %cst_42 = arith.constant 0.000000e+00 : f32
    %111 = vector.shape_cast %110 : vector<1x256xi1> to vector<1x256xi1>
    %112 = vector.broadcast %111 : vector<1x256xi1> to vector<8x256xi1>
    %113 = vector.broadcast %cst_42 : f32 to vector<8x256xf32>
    %114 = arith.select %112, %101, %113 : vector<8x256xi1>, vector<8x256xf32>
    %c40 = arith.constant 40 : index
    %c0_43 = arith.constant 0 : index
    %115 = vector.load %arg7[%c40, %c0_43] : memref<72x256xf32, #tpu.memory_space<vmem>>, vector<8x256xf32>
    tpu.vector_store %arg7[%c40, %c0_43], %114 {strides = array<i32>} : memref<72x256xf32, #tpu.memory_space<vmem>>, vector<8x256xf32>,
    %c254_i32 = arith.constant 254 : i32
    %116 = tpu.dynamic_rotate %9 by %c254_i32 dim 1 : vector<8x256xf32>, i32 -> vector<8x256xf32>
    %c2_i32_44 = arith.constant 2 : i32
    %117 = vector.broadcast %c2_i32_44 : i32 to vector<1x256xi32>
    %118 = arith.addi %26, %117 : vector<1x256xi32>
    %c0_i32_45 = arith.constant 0 : i32
    %119 = vector.broadcast %c0_i32_45 : i32 to vector<1x256xi32>
    %120 = arith.cmpi sge, %118, %119 : vector<1x256xi32>
    %c2_i32_46 = arith.constant 2 : i32
    %121 = vector.broadcast %c2_i32_46 : i32 to vector<1x256xi32>
    %122 = arith.addi %26, %121 : vector<1x256xi32>
    %c16_i32_47 = arith.constant 16 : i32
    %123 = vector.broadcast %c16_i32_47 : i32 to vector<1x256xi32>
    %124 = arith.cmpi slt, %122, %123 : vector<1x256xi32>
    %125 = arith.andi %120, %124 : vector<1x256xi1>
    %cst_48 = arith.constant 0.000000e+00 : f32
    %126 = vector.shape_cast %125 : vector<1x256xi1> to vector<1x256xi1>
    %127 = vector.broadcast %126 : vector<1x256xi1> to vector<8x256xi1>
    %128 = vector.broadcast %cst_48 : f32 to vector<8x256xf32>
    %129 = arith.select %127, %116, %128 : vector<8x256xi1>, vector<8x256xf32>
    %c48 = arith.constant 48 : index
    %c0_49 = arith.constant 0 : index
    %130 = vector.load %arg7[%c48, %c0_49] : memref<72x256xf32, #tpu.memory_space<vmem>>, vector<8x256xf32>
    tpu.vector_store %arg7[%c48, %c0_49], %129 {strides = array<i32>} : memref<72x256xf32, #tpu.memory_space<vmem>>, vector<8x256xf32>,
    %c253_i32 = arith.constant 253 : i32
    %131 = tpu.dynamic_rotate %9 by %c253_i32 dim 1 : vector<8x256xf32>, i32 -> vector<8x256xf32>
    %c3_i32_50 = arith.constant 3 : i32
    %132 = vector.broadcast %c3_i32_50 : i32 to vector<1x256xi32>
    %133 = arith.addi %26, %132 : vector<1x256xi32>
    %c0_i32_51 = arith.constant 0 : i32
    %134 = vector.broadcast %c0_i32_51 : i32 to vector<1x256xi32>
    %135 = arith.cmpi sge, %133, %134 : vector<1x256xi32>
    %c3_i32_52 = arith.constant 3 : i32
    %136 = vector.broadcast %c3_i32_52 : i32 to vector<1x256xi32>
    %137 = arith.addi %26, %136 : vector<1x256xi32>
    %c16_i32_53 = arith.constant 16 : i32
    %138 = vector.broadcast %c16_i32_53 : i32 to vector<1x256xi32>
    %139 = arith.cmpi slt, %137, %138 : vector<1x256xi32>
    %140 = arith.andi %135, %139 : vector<1x256xi1>
    %cst_54 = arith.constant 0.000000e+00 : f32
    %141 = vector.shape_cast %140 : vector<1x256xi1> to vector<1x256xi1>
    %142 = vector.broadcast %141 : vector<1x256xi1> to vector<8x256xi1>
    %143 = vector.broadcast %cst_54 : f32 to vector<8x256xf32>
    %144 = arith.select %142, %131, %143 : vector<8x256xi1>, vector<8x256xf32>
    %c56 = arith.constant 56 : index
    %c0_55 = arith.constant 0 : index
    %145 = vector.load %arg7[%c56, %c0_55] : memref<72x256xf32, #tpu.memory_space<vmem>>, vector<8x256xf32>
    tpu.vector_store %arg7[%c56, %c0_55], %144 {strides = array<i32>} : memref<72x256xf32, #tpu.memory_space<vmem>>, vector<8x256xf32>,
    %c252_i32 = arith.constant 252 : i32
    %146 = tpu.dynamic_rotate %9 by %c252_i32 dim 1 : vector<8x256xf32>, i32 -> vector<8x256xf32>
    %c4_i32_56 = arith.constant 4 : i32
    %147 = vector.broadcast %c4_i32_56 : i32 to vector<1x256xi32>
    %148 = arith.addi %26, %147 : vector<1x256xi32>
    %c0_i32_57 = arith.constant 0 : i32
    %149 = vector.broadcast %c0_i32_57 : i32 to vector<1x256xi32>
    %150 = arith.cmpi sge, %148, %149 : vector<1x256xi32>
    %c4_i32_58 = arith.constant 4 : i32
    %151 = vector.broadcast %c4_i32_58 : i32 to vector<1x256xi32>
    %152 = arith.addi %26, %151 : vector<1x256xi32>
    %c16_i32_59 = arith.constant 16 : i32
    %153 = vector.broadcast %c16_i32_59 : i32 to vector<1x256xi32>
    %154 = arith.cmpi slt, %152, %153 : vector<1x256xi32>
    %155 = arith.andi %150, %154 : vector<1x256xi1>
    %cst_60 = arith.constant 0.000000e+00 : f32
    %156 = vector.shape_cast %155 : vector<1x256xi1> to vector<1x256xi1>
    %157 = vector.broadcast %156 : vector<1x256xi1> to vector<8x256xi1>
    %158 = vector.broadcast %cst_60 : f32 to vector<8x256xf32>
    %159 = arith.select %157, %146, %158 : vector<8x256xi1>, vector<8x256xf32>
    %c64 = arith.constant 64 : index
    %c0_61 = arith.constant 0 : index
    %160 = vector.load %arg7[%c64, %c0_61] : memref<72x256xf32, #tpu.memory_space<vmem>>, vector<8x256xf32>
    tpu.vector_store %arg7[%c64, %c0_61], %159 {strides = array<i32>} : memref<72x256xf32, #tpu.memory_space<vmem>>, vector<8x256xf32>,
    %c0_62 = arith.constant 0 : index
    %c0_63 = arith.constant 0 : index
    %161 = vector.load %arg4[%c0_62, %c0_63] : memref<4x72xf32, #tpu.memory_space<vmem>>, vector<4x72xf32>
    %c0_64 = arith.constant 0 : index
    %c0_65 = arith.constant 0 : index
    %162 = vector.load %arg7[%c0_64, %c0_65] : memref<72x256xf32, #tpu.memory_space<vmem>>, vector<72x256xf32>
    %cst_66 = arith.constant dense<0.000000e+00> : vector<4x256xf32>
    %163 = tpu.matmul %161, %162, %cst_66 {dimension_numbers = #tpu.dot_dimension_numbers<[1], [0], [0], [1], [0, 0, 1, 1], [], []>} : vector<4x72xf32>, vector<72x256xf32>, vector<4x256xf32> -> vector<4x256xf32>
    %c0_67 = arith.constant 0 : index
    %c0_68 = arith.constant 0 : index
    %164 = vector.load %arg5[%c0_67, %c0_68] : memref<4x1xf32, #tpu.memory_space<vmem>>, vector<4x1xf32>
    %165 = vector.broadcast %164 : vector<4x1xf32> to vector<4x256xf32>
    %166 = arith.addf %163, %165 : vector<4x256xf32>
    %c8_69 = arith.constant 8 : index
    %c0_70 = arith.constant 0 : index
    %167 = vector.load %arg6[%c8_69, %c0_70] : memref<12x256xf32, #tpu.memory_space<vmem>>, vector<4x256xf32>
    tpu.vector_store %arg6[%c8_69, %c0_70], %166 {strides = array<i32>} : memref<12x256xf32, #tpu.memory_space<vmem>>, vector<4x256xf32>,
    return
  }
  func.func @transform_0(%arg0: i32) -> (i32, i32) {
    %c0_i32 = arith.constant 0 : i32
    %c0_i32_0 = arith.constant 0 : i32
    return %c0_i32, %arg0 : i32, i32
  }
  func.func @transform_1(%arg0: i32) -> (i32, i32) {
    %c0_i32 = arith.constant 0 : i32
    %c0_i32_0 = arith.constant 0 : i32
    %c0_i32_1 = arith.constant 0 : i32
    return %c0_i32, %c0_i32_0 : i32, i32
  }
  func.func @transform_2(%arg0: i32) -> (i32, i32) {
    %c0_i32 = arith.constant 0 : i32
    %c0_i32_0 = arith.constant 0 : i32
    %c0_i32_1 = arith.constant 0 : i32
    return %c0_i32, %c0_i32_0 : i32, i32
  }
  func.func @transform_3(%arg0: i32) -> (i32, i32) {
    %c0_i32 = arith.constant 0 : i32
    %c0_i32_0 = arith.constant 0 : i32
    %c0_i32_1 = arith.constant 0 : i32
    return %c0_i32, %c0_i32_0 : i32, i32
  }
  func.func @transform_4(%arg0: i32) -> (i32, i32) {
    %c0_i32 = arith.constant 0 : i32
    %c0_i32_0 = arith.constant 0 : i32
    %c0_i32_1 = arith.constant 0 : i32
    return %c0_i32, %c0_i32_0 : i32, i32
  }
  func.func @transform_5(%arg0: i32) -> (i32, i32) {
    %c0_i32 = arith.constant 0 : i32
    %c0_i32_0 = arith.constant 0 : i32
    return %c0_i32, %arg0 : i32, i32
  }
}

module attributes {stable_mosaic.version = 11 : i64} {
  func.func @_basic_block_kernel(%arg0: i32, %arg1: memref<4x256xf32, #tpu.memory_space<vmem>>, %arg2: memref<4x1xf32, #tpu.memory_space<vmem>>, %arg3: memref<4x1xf32, #tpu.memory_space<vmem>>, %arg4: memref<4x36xf32, #tpu.memory_space<vmem>>, %arg5: memref<4x1xf32, #tpu.memory_space<vmem>>, %arg6: memref<8x256xf32, #tpu.memory_space<vmem>>, %arg7: memref<36x256xf32, #tpu.memory_space<vmem>>) attributes {dimension_semantics = [#tpu.dimension_semantics<parallel>], iteration_bounds = array<i64: 2>, scalar_prefetch = 0 : i64, scratch_operands = 1 : i64, tpu.core_type = #tpu.core_type<tc>, window_params = [{transform_indices = @transform_0, window_bounds = array<i64: 4, 256>}, {pipeline_mode = #tpu.pipeline_mode<synchronous>, transform_indices = @transform_1, window_bounds = array<i64: 4, 1>}, {pipeline_mode = #tpu.pipeline_mode<synchronous>, transform_indices = @transform_2, window_bounds = array<i64: 4, 1>}, {pipeline_mode = #tpu.pipeline_mode<synchronous>, transform_indices = @transform_3, window_bounds = array<i64: 4, 36>}, {pipeline_mode = #tpu.pipeline_mode<synchronous>, transform_indices = @transform_4, window_bounds = array<i64: 4, 1>}, {transform_indices = @transform_5, window_bounds = array<i64: 8, 256>}]} {
    %c0 = arith.constant 0 : index
    %c0_0 = arith.constant 0 : index
    %0 = vector.load %arg1[%c0, %c0_0] : memref<4x256xf32, #tpu.memory_space<vmem>>, vector<4x256xf32>
    %c0_1 = arith.constant 0 : index
    %c0_2 = arith.constant 0 : index
    %1 = vector.load %arg6[%c0_1, %c0_2] : memref<8x256xf32, #tpu.memory_space<vmem>>, vector<4x256xf32>
    tpu.vector_store %arg6[%c0_1, %c0_2], %0 {strides = array<i32>} : memref<8x256xf32, #tpu.memory_space<vmem>>, vector<4x256xf32>,
    %c0_3 = arith.constant 0 : index
    %c0_4 = arith.constant 0 : index
    %2 = vector.load %arg2[%c0_3, %c0_4] : memref<4x1xf32, #tpu.memory_space<vmem>>, vector<4x1xf32>
    %3 = vector.broadcast %2 : vector<4x1xf32> to vector<4x256xf32>
    %4 = arith.mulf %0, %3 : vector<4x256xf32>
    %c0_5 = arith.constant 0 : index
    %c0_6 = arith.constant 0 : index
    %5 = vector.load %arg3[%c0_5, %c0_6] : memref<4x1xf32, #tpu.memory_space<vmem>>, vector<4x1xf32>
    %6 = vector.broadcast %5 : vector<4x1xf32> to vector<4x256xf32>
    %7 = arith.addf %4, %6 : vector<4x256xf32>
    %cst = arith.constant 0.000000e+00 : f32
    %8 = vector.broadcast %cst : f32 to vector<4x256xf32>
    %9 = arith.maximumf %7, %8 : vector<4x256xf32>
    %10 = tpu.iota {dimensions = array<i32: 1>} : vector<1x256xi32>
    %c16_i32 = arith.constant 16 : i32
    %c0_i32 = arith.constant 0 : i32
    %11 = arith.cmpi eq, %c16_i32, %c0_i32 : i32
    %c1_i32 = arith.constant 1 : i32
    %12 = arith.select %11, %c1_i32, %c16_i32 : i32
    %13 = vector.broadcast %12 : i32 to vector<1x256xi32>
    %14 = arith.remsi %10, %13 : vector<1x256xi32>
    %c0_i32_7 = arith.constant 0 : i32
    %15 = vector.broadcast %c0_i32_7 : i32 to vector<1x256xi32>
    %16 = arith.cmpi ne, %14, %15 : vector<1x256xi32>
    %c0_i32_8 = arith.constant 0 : i32
    %17 = vector.broadcast %c0_i32_8 : i32 to vector<1x256xi32>
    %18 = arith.cmpi slt, %14, %17 : vector<1x256xi32>
    %c0_i32_9 = arith.constant 0 : i32
    %19 = arith.cmpi slt, %12, %c0_i32_9 : i32
    %20 = vector.broadcast %19 : i1 to vector<1x256xi1>
    %21 = vector.broadcast %20 : vector<1x256xi1> to vector<1x256xi1>
    %22 = arith.xori %18, %21 : vector<1x256xi1>
    %23 = arith.andi %22, %16 : vector<1x256xi1>
    %24 = vector.broadcast %12 : i32 to vector<1x256xi32>
    %25 = arith.addi %14, %24 : vector<1x256xi32>
    %26 = arith.select %23, %25, %14 : vector<1x256xi1>, vector<1x256xi32>
    %c4_i32 = arith.constant 4 : i32
    %27 = tpu.dynamic_rotate %9 by %c4_i32 dim 1 : vector<4x256xf32>, i32 -> vector<4x256xf32>
    %c-4_i32 = arith.constant -4 : i32
    %28 = vector.broadcast %c-4_i32 : i32 to vector<1x256xi32>
    %29 = arith.addi %26, %28 : vector<1x256xi32>
    %c0_i32_10 = arith.constant 0 : i32
    %30 = vector.broadcast %c0_i32_10 : i32 to vector<1x256xi32>
    %31 = arith.cmpi sge, %29, %30 : vector<1x256xi32>
    %c-4_i32_11 = arith.constant -4 : i32
    %32 = vector.broadcast %c-4_i32_11 : i32 to vector<1x256xi32>
    %33 = arith.addi %26, %32 : vector<1x256xi32>
    %c16_i32_12 = arith.constant 16 : i32
    %34 = vector.broadcast %c16_i32_12 : i32 to vector<1x256xi32>
    %35 = arith.cmpi slt, %33, %34 : vector<1x256xi32>
    %36 = arith.andi %31, %35 : vector<1x256xi1>
    %cst_13 = arith.constant 0.000000e+00 : f32
    %37 = vector.shape_cast %36 : vector<1x256xi1> to vector<1x256xi1>
    %38 = vector.broadcast %37 : vector<1x256xi1> to vector<4x256xi1>
    %39 = vector.broadcast %cst_13 : f32 to vector<4x256xf32>
    %40 = arith.select %38, %27, %39 : vector<4x256xi1>, vector<4x256xf32>
    %c0_14 = arith.constant 0 : index
    %c0_15 = arith.constant 0 : index
    %41 = vector.load %arg7[%c0_14, %c0_15] : memref<36x256xf32, #tpu.memory_space<vmem>>, vector<4x256xf32>
    tpu.vector_store %arg7[%c0_14, %c0_15], %40 {strides = array<i32>} : memref<36x256xf32, #tpu.memory_space<vmem>>, vector<4x256xf32>,
    %c3_i32 = arith.constant 3 : i32
    %42 = tpu.dynamic_rotate %9 by %c3_i32 dim 1 : vector<4x256xf32>, i32 -> vector<4x256xf32>
    %c-3_i32 = arith.constant -3 : i32
    %43 = vector.broadcast %c-3_i32 : i32 to vector<1x256xi32>
    %44 = arith.addi %26, %43 : vector<1x256xi32>
    %c0_i32_16 = arith.constant 0 : i32
    %45 = vector.broadcast %c0_i32_16 : i32 to vector<1x256xi32>
    %46 = arith.cmpi sge, %44, %45 : vector<1x256xi32>
    %c-3_i32_17 = arith.constant -3 : i32
    %47 = vector.broadcast %c-3_i32_17 : i32 to vector<1x256xi32>
    %48 = arith.addi %26, %47 : vector<1x256xi32>
    %c16_i32_18 = arith.constant 16 : i32
    %49 = vector.broadcast %c16_i32_18 : i32 to vector<1x256xi32>
    %50 = arith.cmpi slt, %48, %49 : vector<1x256xi32>
    %51 = arith.andi %46, %50 : vector<1x256xi1>
    %cst_19 = arith.constant 0.000000e+00 : f32
    %52 = vector.shape_cast %51 : vector<1x256xi1> to vector<1x256xi1>
    %53 = vector.broadcast %52 : vector<1x256xi1> to vector<4x256xi1>
    %54 = vector.broadcast %cst_19 : f32 to vector<4x256xf32>
    %55 = arith.select %53, %42, %54 : vector<4x256xi1>, vector<4x256xf32>
    %c4 = arith.constant 4 : index
    %c0_20 = arith.constant 0 : index
    %56 = vector.load %arg7[%c4, %c0_20] : memref<36x256xf32, #tpu.memory_space<vmem>>, vector<4x256xf32>
    tpu.vector_store %arg7[%c4, %c0_20], %55 {strides = array<i32>} : memref<36x256xf32, #tpu.memory_space<vmem>>, vector<4x256xf32>,
    %c2_i32 = arith.constant 2 : i32
    %57 = tpu.dynamic_rotate %9 by %c2_i32 dim 1 : vector<4x256xf32>, i32 -> vector<4x256xf32>
    %c-2_i32 = arith.constant -2 : i32
    %58 = vector.broadcast %c-2_i32 : i32 to vector<1x256xi32>
    %59 = arith.addi %26, %58 : vector<1x256xi32>
    %c0_i32_21 = arith.constant 0 : i32
    %60 = vector.broadcast %c0_i32_21 : i32 to vector<1x256xi32>
    %61 = arith.cmpi sge, %59, %60 : vector<1x256xi32>
    %c-2_i32_22 = arith.constant -2 : i32
    %62 = vector.broadcast %c-2_i32_22 : i32 to vector<1x256xi32>
    %63 = arith.addi %26, %62 : vector<1x256xi32>
    %c16_i32_23 = arith.constant 16 : i32
    %64 = vector.broadcast %c16_i32_23 : i32 to vector<1x256xi32>
    %65 = arith.cmpi slt, %63, %64 : vector<1x256xi32>
    %66 = arith.andi %61, %65 : vector<1x256xi1>
    %cst_24 = arith.constant 0.000000e+00 : f32
    %67 = vector.shape_cast %66 : vector<1x256xi1> to vector<1x256xi1>
    %68 = vector.broadcast %67 : vector<1x256xi1> to vector<4x256xi1>
    %69 = vector.broadcast %cst_24 : f32 to vector<4x256xf32>
    %70 = arith.select %68, %57, %69 : vector<4x256xi1>, vector<4x256xf32>
    %c8 = arith.constant 8 : index
    %c0_25 = arith.constant 0 : index
    %71 = vector.load %arg7[%c8, %c0_25] : memref<36x256xf32, #tpu.memory_space<vmem>>, vector<4x256xf32>
    tpu.vector_store %arg7[%c8, %c0_25], %70 {strides = array<i32>} : memref<36x256xf32, #tpu.memory_space<vmem>>, vector<4x256xf32>,
    %c1_i32_26 = arith.constant 1 : i32
    %72 = tpu.dynamic_rotate %9 by %c1_i32_26 dim 1 : vector<4x256xf32>, i32 -> vector<4x256xf32>
    %c-1_i32 = arith.constant -1 : i32
    %73 = vector.broadcast %c-1_i32 : i32 to vector<1x256xi32>
    %74 = arith.addi %26, %73 : vector<1x256xi32>
    %c0_i32_27 = arith.constant 0 : i32
    %75 = vector.broadcast %c0_i32_27 : i32 to vector<1x256xi32>
    %76 = arith.cmpi sge, %74, %75 : vector<1x256xi32>
    %c-1_i32_28 = arith.constant -1 : i32
    %77 = vector.broadcast %c-1_i32_28 : i32 to vector<1x256xi32>
    %78 = arith.addi %26, %77 : vector<1x256xi32>
    %c16_i32_29 = arith.constant 16 : i32
    %79 = vector.broadcast %c16_i32_29 : i32 to vector<1x256xi32>
    %80 = arith.cmpi slt, %78, %79 : vector<1x256xi32>
    %81 = arith.andi %76, %80 : vector<1x256xi1>
    %cst_30 = arith.constant 0.000000e+00 : f32
    %82 = vector.shape_cast %81 : vector<1x256xi1> to vector<1x256xi1>
    %83 = vector.broadcast %82 : vector<1x256xi1> to vector<4x256xi1>
    %84 = vector.broadcast %cst_30 : f32 to vector<4x256xf32>
    %85 = arith.select %83, %72, %84 : vector<4x256xi1>, vector<4x256xf32>
    %c12 = arith.constant 12 : index
    %c0_31 = arith.constant 0 : index
    %86 = vector.load %arg7[%c12, %c0_31] : memref<36x256xf32, #tpu.memory_space<vmem>>, vector<4x256xf32>
    tpu.vector_store %arg7[%c12, %c0_31], %85 {strides = array<i32>} : memref<36x256xf32, #tpu.memory_space<vmem>>, vector<4x256xf32>,
    %c0_i32_32 = arith.constant 0 : i32
    %87 = vector.broadcast %c0_i32_32 : i32 to vector<1x256xi32>
    %88 = arith.addi %26, %87 : vector<1x256xi32>
    %c0_i32_33 = arith.constant 0 : i32
    %89 = vector.broadcast %c0_i32_33 : i32 to vector<1x256xi32>
    %90 = arith.cmpi sge, %88, %89 : vector<1x256xi32>
    %c0_i32_34 = arith.constant 0 : i32
    %91 = vector.broadcast %c0_i32_34 : i32 to vector<1x256xi32>
    %92 = arith.addi %26, %91 : vector<1x256xi32>
    %c16_i32_35 = arith.constant 16 : i32
    %93 = vector.broadcast %c16_i32_35 : i32 to vector<1x256xi32>
    %94 = arith.cmpi slt, %92, %93 : vector<1x256xi32>
    %95 = arith.andi %90, %94 : vector<1x256xi1>
    %cst_36 = arith.constant 0.000000e+00 : f32
    %96 = vector.shape_cast %95 : vector<1x256xi1> to vector<1x256xi1>
    %97 = vector.broadcast %96 : vector<1x256xi1> to vector<4x256xi1>
    %98 = vector.broadcast %cst_36 : f32 to vector<4x256xf32>
    %99 = arith.select %97, %9, %98 : vector<4x256xi1>, vector<4x256xf32>
    %c16 = arith.constant 16 : index
    %c0_37 = arith.constant 0 : index
    %100 = vector.load %arg7[%c16, %c0_37] : memref<36x256xf32, #tpu.memory_space<vmem>>, vector<4x256xf32>
    tpu.vector_store %arg7[%c16, %c0_37], %99 {strides = array<i32>} : memref<36x256xf32, #tpu.memory_space<vmem>>, vector<4x256xf32>,
    %c255_i32 = arith.constant 255 : i32
    %101 = tpu.dynamic_rotate %9 by %c255_i32 dim 1 : vector<4x256xf32>, i32 -> vector<4x256xf32>
    %c1_i32_38 = arith.constant 1 : i32
    %102 = vector.broadcast %c1_i32_38 : i32 to vector<1x256xi32>
    %103 = arith.addi %26, %102 : vector<1x256xi32>
    %c0_i32_39 = arith.constant 0 : i32
    %104 = vector.broadcast %c0_i32_39 : i32 to vector<1x256xi32>
    %105 = arith.cmpi sge, %103, %104 : vector<1x256xi32>
    %c1_i32_40 = arith.constant 1 : i32
    %106 = vector.broadcast %c1_i32_40 : i32 to vector<1x256xi32>
    %107 = arith.addi %26, %106 : vector<1x256xi32>
    %c16_i32_41 = arith.constant 16 : i32
    %108 = vector.broadcast %c16_i32_41 : i32 to vector<1x256xi32>
    %109 = arith.cmpi slt, %107, %108 : vector<1x256xi32>
    %110 = arith.andi %105, %109 : vector<1x256xi1>
    %cst_42 = arith.constant 0.000000e+00 : f32
    %111 = vector.shape_cast %110 : vector<1x256xi1> to vector<1x256xi1>
    %112 = vector.broadcast %111 : vector<1x256xi1> to vector<4x256xi1>
    %113 = vector.broadcast %cst_42 : f32 to vector<4x256xf32>
    %114 = arith.select %112, %101, %113 : vector<4x256xi1>, vector<4x256xf32>
    %c20 = arith.constant 20 : index
    %c0_43 = arith.constant 0 : index
    %115 = vector.load %arg7[%c20, %c0_43] : memref<36x256xf32, #tpu.memory_space<vmem>>, vector<4x256xf32>
    tpu.vector_store %arg7[%c20, %c0_43], %114 {strides = array<i32>} : memref<36x256xf32, #tpu.memory_space<vmem>>, vector<4x256xf32>,
    %c254_i32 = arith.constant 254 : i32
    %116 = tpu.dynamic_rotate %9 by %c254_i32 dim 1 : vector<4x256xf32>, i32 -> vector<4x256xf32>
    %c2_i32_44 = arith.constant 2 : i32
    %117 = vector.broadcast %c2_i32_44 : i32 to vector<1x256xi32>
    %118 = arith.addi %26, %117 : vector<1x256xi32>
    %c0_i32_45 = arith.constant 0 : i32
    %119 = vector.broadcast %c0_i32_45 : i32 to vector<1x256xi32>
    %120 = arith.cmpi sge, %118, %119 : vector<1x256xi32>
    %c2_i32_46 = arith.constant 2 : i32
    %121 = vector.broadcast %c2_i32_46 : i32 to vector<1x256xi32>
    %122 = arith.addi %26, %121 : vector<1x256xi32>
    %c16_i32_47 = arith.constant 16 : i32
    %123 = vector.broadcast %c16_i32_47 : i32 to vector<1x256xi32>
    %124 = arith.cmpi slt, %122, %123 : vector<1x256xi32>
    %125 = arith.andi %120, %124 : vector<1x256xi1>
    %cst_48 = arith.constant 0.000000e+00 : f32
    %126 = vector.shape_cast %125 : vector<1x256xi1> to vector<1x256xi1>
    %127 = vector.broadcast %126 : vector<1x256xi1> to vector<4x256xi1>
    %128 = vector.broadcast %cst_48 : f32 to vector<4x256xf32>
    %129 = arith.select %127, %116, %128 : vector<4x256xi1>, vector<4x256xf32>
    %c24 = arith.constant 24 : index
    %c0_49 = arith.constant 0 : index
    %130 = vector.load %arg7[%c24, %c0_49] : memref<36x256xf32, #tpu.memory_space<vmem>>, vector<4x256xf32>
    tpu.vector_store %arg7[%c24, %c0_49], %129 {strides = array<i32>} : memref<36x256xf32, #tpu.memory_space<vmem>>, vector<4x256xf32>,
    %c253_i32 = arith.constant 253 : i32
    %131 = tpu.dynamic_rotate %9 by %c253_i32 dim 1 : vector<4x256xf32>, i32 -> vector<4x256xf32>
    %c3_i32_50 = arith.constant 3 : i32
    %132 = vector.broadcast %c3_i32_50 : i32 to vector<1x256xi32>
    %133 = arith.addi %26, %132 : vector<1x256xi32>
    %c0_i32_51 = arith.constant 0 : i32
    %134 = vector.broadcast %c0_i32_51 : i32 to vector<1x256xi32>
    %135 = arith.cmpi sge, %133, %134 : vector<1x256xi32>
    %c3_i32_52 = arith.constant 3 : i32
    %136 = vector.broadcast %c3_i32_52 : i32 to vector<1x256xi32>
    %137 = arith.addi %26, %136 : vector<1x256xi32>
    %c16_i32_53 = arith.constant 16 : i32
    %138 = vector.broadcast %c16_i32_53 : i32 to vector<1x256xi32>
    %139 = arith.cmpi slt, %137, %138 : vector<1x256xi32>
    %140 = arith.andi %135, %139 : vector<1x256xi1>
    %cst_54 = arith.constant 0.000000e+00 : f32
    %141 = vector.shape_cast %140 : vector<1x256xi1> to vector<1x256xi1>
    %142 = vector.broadcast %141 : vector<1x256xi1> to vector<4x256xi1>
    %143 = vector.broadcast %cst_54 : f32 to vector<4x256xf32>
    %144 = arith.select %142, %131, %143 : vector<4x256xi1>, vector<4x256xf32>
    %c28 = arith.constant 28 : index
    %c0_55 = arith.constant 0 : index
    %145 = vector.load %arg7[%c28, %c0_55] : memref<36x256xf32, #tpu.memory_space<vmem>>, vector<4x256xf32>
    tpu.vector_store %arg7[%c28, %c0_55], %144 {strides = array<i32>} : memref<36x256xf32, #tpu.memory_space<vmem>>, vector<4x256xf32>,
    %c252_i32 = arith.constant 252 : i32
    %146 = tpu.dynamic_rotate %9 by %c252_i32 dim 1 : vector<4x256xf32>, i32 -> vector<4x256xf32>
    %c4_i32_56 = arith.constant 4 : i32
    %147 = vector.broadcast %c4_i32_56 : i32 to vector<1x256xi32>
    %148 = arith.addi %26, %147 : vector<1x256xi32>
    %c0_i32_57 = arith.constant 0 : i32
    %149 = vector.broadcast %c0_i32_57 : i32 to vector<1x256xi32>
    %150 = arith.cmpi sge, %148, %149 : vector<1x256xi32>
    %c4_i32_58 = arith.constant 4 : i32
    %151 = vector.broadcast %c4_i32_58 : i32 to vector<1x256xi32>
    %152 = arith.addi %26, %151 : vector<1x256xi32>
    %c16_i32_59 = arith.constant 16 : i32
    %153 = vector.broadcast %c16_i32_59 : i32 to vector<1x256xi32>
    %154 = arith.cmpi slt, %152, %153 : vector<1x256xi32>
    %155 = arith.andi %150, %154 : vector<1x256xi1>
    %cst_60 = arith.constant 0.000000e+00 : f32
    %156 = vector.shape_cast %155 : vector<1x256xi1> to vector<1x256xi1>
    %157 = vector.broadcast %156 : vector<1x256xi1> to vector<4x256xi1>
    %158 = vector.broadcast %cst_60 : f32 to vector<4x256xf32>
    %159 = arith.select %157, %146, %158 : vector<4x256xi1>, vector<4x256xf32>
    %c32 = arith.constant 32 : index
    %c0_61 = arith.constant 0 : index
    %160 = vector.load %arg7[%c32, %c0_61] : memref<36x256xf32, #tpu.memory_space<vmem>>, vector<4x256xf32>
    tpu.vector_store %arg7[%c32, %c0_61], %159 {strides = array<i32>} : memref<36x256xf32, #tpu.memory_space<vmem>>, vector<4x256xf32>,
    %c0_62 = arith.constant 0 : index
    %c0_63 = arith.constant 0 : index
    %161 = vector.load %arg4[%c0_62, %c0_63] : memref<4x36xf32, #tpu.memory_space<vmem>>, vector<4x36xf32>
    %c0_64 = arith.constant 0 : index
    %c0_65 = arith.constant 0 : index
    %162 = vector.load %arg7[%c0_64, %c0_65] : memref<36x256xf32, #tpu.memory_space<vmem>>, vector<36x256xf32>
    %cst_66 = arith.constant dense<0.000000e+00> : vector<4x256xf32>
    %163 = tpu.matmul %161, %162, %cst_66 {dimension_numbers = #tpu.dot_dimension_numbers<[1], [0], [0], [1], [0, 0, 1, 1], [], []>} : vector<4x36xf32>, vector<36x256xf32>, vector<4x256xf32> -> vector<4x256xf32>
    %c0_67 = arith.constant 0 : index
    %c0_68 = arith.constant 0 : index
    %164 = vector.load %arg5[%c0_67, %c0_68] : memref<4x1xf32, #tpu.memory_space<vmem>>, vector<4x1xf32>
    %165 = vector.broadcast %164 : vector<4x1xf32> to vector<4x256xf32>
    %166 = arith.addf %163, %165 : vector<4x256xf32>
    %c4_69 = arith.constant 4 : index
    %c0_70 = arith.constant 0 : index
    %167 = vector.load %arg6[%c4_69, %c0_70] : memref<8x256xf32, #tpu.memory_space<vmem>>, vector<4x256xf32>
    tpu.vector_store %arg6[%c4_69, %c0_70], %166 {strides = array<i32>} : memref<8x256xf32, #tpu.memory_space<vmem>>, vector<4x256xf32>,
    return
  }
  func.func @transform_0(%arg0: i32) -> (i32, i32) {
    %c0_i32 = arith.constant 0 : i32
    %c0_i32_0 = arith.constant 0 : i32
    return %c0_i32, %arg0 : i32, i32
  }
  func.func @transform_1(%arg0: i32) -> (i32, i32) {
    %c0_i32 = arith.constant 0 : i32
    %c0_i32_0 = arith.constant 0 : i32
    %c0_i32_1 = arith.constant 0 : i32
    return %c0_i32, %c0_i32_0 : i32, i32
  }
  func.func @transform_2(%arg0: i32) -> (i32, i32) {
    %c0_i32 = arith.constant 0 : i32
    %c0_i32_0 = arith.constant 0 : i32
    %c0_i32_1 = arith.constant 0 : i32
    return %c0_i32, %c0_i32_0 : i32, i32
  }
  func.func @transform_3(%arg0: i32) -> (i32, i32) {
    %c0_i32 = arith.constant 0 : i32
    %c0_i32_0 = arith.constant 0 : i32
    %c0_i32_1 = arith.constant 0 : i32
    return %c0_i32, %c0_i32_0 : i32, i32
  }
  func.func @transform_4(%arg0: i32) -> (i32, i32) {
    %c0_i32 = arith.constant 0 : i32
    %c0_i32_0 = arith.constant 0 : i32
    %c0_i32_1 = arith.constant 0 : i32
    return %c0_i32, %c0_i32_0 : i32, i32
  }
  func.func @transform_5(%arg0: i32) -> (i32, i32) {
    %c0_i32 = arith.constant 0 : i32
    %c0_i32_0 = arith.constant 0 : i32
    return %c0_i32, %arg0 : i32, i32
  }
}

module attributes {stable_mosaic.version = 11 : i64} {
  func.func @_basic_block_kernel(%arg0: i32, %arg1: memref<12x256xf32, #tpu.memory_space<vmem>>, %arg2: memref<12x1xf32, #tpu.memory_space<vmem>>, %arg3: memref<12x1xf32, #tpu.memory_space<vmem>>, %arg4: memref<4x108xf32, #tpu.memory_space<vmem>>, %arg5: memref<4x1xf32, #tpu.memory_space<vmem>>, %arg6: memref<16x256xf32, #tpu.memory_space<vmem>>, %arg7: memref<108x256xf32, #tpu.memory_space<vmem>>) attributes {dimension_semantics = [#tpu.dimension_semantics<parallel>], iteration_bounds = array<i64: 2>, scalar_prefetch = 0 : i64, scratch_operands = 1 : i64, tpu.core_type = #tpu.core_type<tc>, window_params = [{transform_indices = @transform_0, window_bounds = array<i64: 12, 256>}, {pipeline_mode = #tpu.pipeline_mode<synchronous>, transform_indices = @transform_1, window_bounds = array<i64: 12, 1>}, {pipeline_mode = #tpu.pipeline_mode<synchronous>, transform_indices = @transform_2, window_bounds = array<i64: 12, 1>}, {pipeline_mode = #tpu.pipeline_mode<synchronous>, transform_indices = @transform_3, window_bounds = array<i64: 4, 108>}, {pipeline_mode = #tpu.pipeline_mode<synchronous>, transform_indices = @transform_4, window_bounds = array<i64: 4, 1>}, {transform_indices = @transform_5, window_bounds = array<i64: 16, 256>}]} {
    %c0 = arith.constant 0 : index
    %c0_0 = arith.constant 0 : index
    %0 = vector.load %arg1[%c0, %c0_0] : memref<12x256xf32, #tpu.memory_space<vmem>>, vector<12x256xf32>
    %c0_1 = arith.constant 0 : index
    %c0_2 = arith.constant 0 : index
    %1 = vector.load %arg6[%c0_1, %c0_2] : memref<16x256xf32, #tpu.memory_space<vmem>>, vector<12x256xf32>
    tpu.vector_store %arg6[%c0_1, %c0_2], %0 {strides = array<i32>} : memref<16x256xf32, #tpu.memory_space<vmem>>, vector<12x256xf32>,
    %c0_3 = arith.constant 0 : index
    %c0_4 = arith.constant 0 : index
    %2 = vector.load %arg2[%c0_3, %c0_4] : memref<12x1xf32, #tpu.memory_space<vmem>>, vector<12x1xf32>
    %3 = vector.broadcast %2 : vector<12x1xf32> to vector<12x256xf32>
    %4 = arith.mulf %0, %3 : vector<12x256xf32>
    %c0_5 = arith.constant 0 : index
    %c0_6 = arith.constant 0 : index
    %5 = vector.load %arg3[%c0_5, %c0_6] : memref<12x1xf32, #tpu.memory_space<vmem>>, vector<12x1xf32>
    %6 = vector.broadcast %5 : vector<12x1xf32> to vector<12x256xf32>
    %7 = arith.addf %4, %6 : vector<12x256xf32>
    %cst = arith.constant 0.000000e+00 : f32
    %8 = vector.broadcast %cst : f32 to vector<12x256xf32>
    %9 = arith.maximumf %7, %8 : vector<12x256xf32>
    %10 = tpu.iota {dimensions = array<i32: 1>} : vector<1x256xi32>
    %c16_i32 = arith.constant 16 : i32
    %c0_i32 = arith.constant 0 : i32
    %11 = arith.cmpi eq, %c16_i32, %c0_i32 : i32
    %c1_i32 = arith.constant 1 : i32
    %12 = arith.select %11, %c1_i32, %c16_i32 : i32
    %13 = vector.broadcast %12 : i32 to vector<1x256xi32>
    %14 = arith.remsi %10, %13 : vector<1x256xi32>
    %c0_i32_7 = arith.constant 0 : i32
    %15 = vector.broadcast %c0_i32_7 : i32 to vector<1x256xi32>
    %16 = arith.cmpi ne, %14, %15 : vector<1x256xi32>
    %c0_i32_8 = arith.constant 0 : i32
    %17 = vector.broadcast %c0_i32_8 : i32 to vector<1x256xi32>
    %18 = arith.cmpi slt, %14, %17 : vector<1x256xi32>
    %c0_i32_9 = arith.constant 0 : i32
    %19 = arith.cmpi slt, %12, %c0_i32_9 : i32
    %20 = vector.broadcast %19 : i1 to vector<1x256xi1>
    %21 = vector.broadcast %20 : vector<1x256xi1> to vector<1x256xi1>
    %22 = arith.xori %18, %21 : vector<1x256xi1>
    %23 = arith.andi %22, %16 : vector<1x256xi1>
    %24 = vector.broadcast %12 : i32 to vector<1x256xi32>
    %25 = arith.addi %14, %24 : vector<1x256xi32>
    %26 = arith.select %23, %25, %14 : vector<1x256xi1>, vector<1x256xi32>
    %c4_i32 = arith.constant 4 : i32
    %27 = tpu.dynamic_rotate %9 by %c4_i32 dim 1 : vector<12x256xf32>, i32 -> vector<12x256xf32>
    %c-4_i32 = arith.constant -4 : i32
    %28 = vector.broadcast %c-4_i32 : i32 to vector<1x256xi32>
    %29 = arith.addi %26, %28 : vector<1x256xi32>
    %c0_i32_10 = arith.constant 0 : i32
    %30 = vector.broadcast %c0_i32_10 : i32 to vector<1x256xi32>
    %31 = arith.cmpi sge, %29, %30 : vector<1x256xi32>
    %c-4_i32_11 = arith.constant -4 : i32
    %32 = vector.broadcast %c-4_i32_11 : i32 to vector<1x256xi32>
    %33 = arith.addi %26, %32 : vector<1x256xi32>
    %c16_i32_12 = arith.constant 16 : i32
    %34 = vector.broadcast %c16_i32_12 : i32 to vector<1x256xi32>
    %35 = arith.cmpi slt, %33, %34 : vector<1x256xi32>
    %36 = arith.andi %31, %35 : vector<1x256xi1>
    %cst_13 = arith.constant 0.000000e+00 : f32
    %37 = vector.shape_cast %36 : vector<1x256xi1> to vector<1x256xi1>
    %38 = vector.broadcast %37 : vector<1x256xi1> to vector<12x256xi1>
    %39 = vector.broadcast %cst_13 : f32 to vector<12x256xf32>
    %40 = arith.select %38, %27, %39 : vector<12x256xi1>, vector<12x256xf32>
    %c0_14 = arith.constant 0 : index
    %c0_15 = arith.constant 0 : index
    %41 = vector.load %arg7[%c0_14, %c0_15] : memref<108x256xf32, #tpu.memory_space<vmem>>, vector<12x256xf32>
    tpu.vector_store %arg7[%c0_14, %c0_15], %40 {strides = array<i32>} : memref<108x256xf32, #tpu.memory_space<vmem>>, vector<12x256xf32>,
    %c3_i32 = arith.constant 3 : i32
    %42 = tpu.dynamic_rotate %9 by %c3_i32 dim 1 : vector<12x256xf32>, i32 -> vector<12x256xf32>
    %c-3_i32 = arith.constant -3 : i32
    %43 = vector.broadcast %c-3_i32 : i32 to vector<1x256xi32>
    %44 = arith.addi %26, %43 : vector<1x256xi32>
    %c0_i32_16 = arith.constant 0 : i32
    %45 = vector.broadcast %c0_i32_16 : i32 to vector<1x256xi32>
    %46 = arith.cmpi sge, %44, %45 : vector<1x256xi32>
    %c-3_i32_17 = arith.constant -3 : i32
    %47 = vector.broadcast %c-3_i32_17 : i32 to vector<1x256xi32>
    %48 = arith.addi %26, %47 : vector<1x256xi32>
    %c16_i32_18 = arith.constant 16 : i32
    %49 = vector.broadcast %c16_i32_18 : i32 to vector<1x256xi32>
    %50 = arith.cmpi slt, %48, %49 : vector<1x256xi32>
    %51 = arith.andi %46, %50 : vector<1x256xi1>
    %cst_19 = arith.constant 0.000000e+00 : f32
    %52 = vector.shape_cast %51 : vector<1x256xi1> to vector<1x256xi1>
    %53 = vector.broadcast %52 : vector<1x256xi1> to vector<12x256xi1>
    %54 = vector.broadcast %cst_19 : f32 to vector<12x256xf32>
    %55 = arith.select %53, %42, %54 : vector<12x256xi1>, vector<12x256xf32>
    %c12 = arith.constant 12 : index
    %c0_20 = arith.constant 0 : index
    %56 = vector.load %arg7[%c12, %c0_20] : memref<108x256xf32, #tpu.memory_space<vmem>>, vector<12x256xf32>
    tpu.vector_store %arg7[%c12, %c0_20], %55 {strides = array<i32>} : memref<108x256xf32, #tpu.memory_space<vmem>>, vector<12x256xf32>,
    %c2_i32 = arith.constant 2 : i32
    %57 = tpu.dynamic_rotate %9 by %c2_i32 dim 1 : vector<12x256xf32>, i32 -> vector<12x256xf32>
    %c-2_i32 = arith.constant -2 : i32
    %58 = vector.broadcast %c-2_i32 : i32 to vector<1x256xi32>
    %59 = arith.addi %26, %58 : vector<1x256xi32>
    %c0_i32_21 = arith.constant 0 : i32
    %60 = vector.broadcast %c0_i32_21 : i32 to vector<1x256xi32>
    %61 = arith.cmpi sge, %59, %60 : vector<1x256xi32>
    %c-2_i32_22 = arith.constant -2 : i32
    %62 = vector.broadcast %c-2_i32_22 : i32 to vector<1x256xi32>
    %63 = arith.addi %26, %62 : vector<1x256xi32>
    %c16_i32_23 = arith.constant 16 : i32
    %64 = vector.broadcast %c16_i32_23 : i32 to vector<1x256xi32>
    %65 = arith.cmpi slt, %63, %64 : vector<1x256xi32>
    %66 = arith.andi %61, %65 : vector<1x256xi1>
    %cst_24 = arith.constant 0.000000e+00 : f32
    %67 = vector.shape_cast %66 : vector<1x256xi1> to vector<1x256xi1>
    %68 = vector.broadcast %67 : vector<1x256xi1> to vector<12x256xi1>
    %69 = vector.broadcast %cst_24 : f32 to vector<12x256xf32>
    %70 = arith.select %68, %57, %69 : vector<12x256xi1>, vector<12x256xf32>
    %c24 = arith.constant 24 : index
    %c0_25 = arith.constant 0 : index
    %71 = vector.load %arg7[%c24, %c0_25] : memref<108x256xf32, #tpu.memory_space<vmem>>, vector<12x256xf32>
    tpu.vector_store %arg7[%c24, %c0_25], %70 {strides = array<i32>} : memref<108x256xf32, #tpu.memory_space<vmem>>, vector<12x256xf32>,
    %c1_i32_26 = arith.constant 1 : i32
    %72 = tpu.dynamic_rotate %9 by %c1_i32_26 dim 1 : vector<12x256xf32>, i32 -> vector<12x256xf32>
    %c-1_i32 = arith.constant -1 : i32
    %73 = vector.broadcast %c-1_i32 : i32 to vector<1x256xi32>
    %74 = arith.addi %26, %73 : vector<1x256xi32>
    %c0_i32_27 = arith.constant 0 : i32
    %75 = vector.broadcast %c0_i32_27 : i32 to vector<1x256xi32>
    %76 = arith.cmpi sge, %74, %75 : vector<1x256xi32>
    %c-1_i32_28 = arith.constant -1 : i32
    %77 = vector.broadcast %c-1_i32_28 : i32 to vector<1x256xi32>
    %78 = arith.addi %26, %77 : vector<1x256xi32>
    %c16_i32_29 = arith.constant 16 : i32
    %79 = vector.broadcast %c16_i32_29 : i32 to vector<1x256xi32>
    %80 = arith.cmpi slt, %78, %79 : vector<1x256xi32>
    %81 = arith.andi %76, %80 : vector<1x256xi1>
    %cst_30 = arith.constant 0.000000e+00 : f32
    %82 = vector.shape_cast %81 : vector<1x256xi1> to vector<1x256xi1>
    %83 = vector.broadcast %82 : vector<1x256xi1> to vector<12x256xi1>
    %84 = vector.broadcast %cst_30 : f32 to vector<12x256xf32>
    %85 = arith.select %83, %72, %84 : vector<12x256xi1>, vector<12x256xf32>
    %c36 = arith.constant 36 : index
    %c0_31 = arith.constant 0 : index
    %86 = vector.load %arg7[%c36, %c0_31] : memref<108x256xf32, #tpu.memory_space<vmem>>, vector<12x256xf32>
    tpu.vector_store %arg7[%c36, %c0_31], %85 {strides = array<i32>} : memref<108x256xf32, #tpu.memory_space<vmem>>, vector<12x256xf32>,
    %c0_i32_32 = arith.constant 0 : i32
    %87 = vector.broadcast %c0_i32_32 : i32 to vector<1x256xi32>
    %88 = arith.addi %26, %87 : vector<1x256xi32>
    %c0_i32_33 = arith.constant 0 : i32
    %89 = vector.broadcast %c0_i32_33 : i32 to vector<1x256xi32>
    %90 = arith.cmpi sge, %88, %89 : vector<1x256xi32>
    %c0_i32_34 = arith.constant 0 : i32
    %91 = vector.broadcast %c0_i32_34 : i32 to vector<1x256xi32>
    %92 = arith.addi %26, %91 : vector<1x256xi32>
    %c16_i32_35 = arith.constant 16 : i32
    %93 = vector.broadcast %c16_i32_35 : i32 to vector<1x256xi32>
    %94 = arith.cmpi slt, %92, %93 : vector<1x256xi32>
    %95 = arith.andi %90, %94 : vector<1x256xi1>
    %cst_36 = arith.constant 0.000000e+00 : f32
    %96 = vector.shape_cast %95 : vector<1x256xi1> to vector<1x256xi1>
    %97 = vector.broadcast %96 : vector<1x256xi1> to vector<12x256xi1>
    %98 = vector.broadcast %cst_36 : f32 to vector<12x256xf32>
    %99 = arith.select %97, %9, %98 : vector<12x256xi1>, vector<12x256xf32>
    %c48 = arith.constant 48 : index
    %c0_37 = arith.constant 0 : index
    %100 = vector.load %arg7[%c48, %c0_37] : memref<108x256xf32, #tpu.memory_space<vmem>>, vector<12x256xf32>
    tpu.vector_store %arg7[%c48, %c0_37], %99 {strides = array<i32>} : memref<108x256xf32, #tpu.memory_space<vmem>>, vector<12x256xf32>,
    %c255_i32 = arith.constant 255 : i32
    %101 = tpu.dynamic_rotate %9 by %c255_i32 dim 1 : vector<12x256xf32>, i32 -> vector<12x256xf32>
    %c1_i32_38 = arith.constant 1 : i32
    %102 = vector.broadcast %c1_i32_38 : i32 to vector<1x256xi32>
    %103 = arith.addi %26, %102 : vector<1x256xi32>
    %c0_i32_39 = arith.constant 0 : i32
    %104 = vector.broadcast %c0_i32_39 : i32 to vector<1x256xi32>
    %105 = arith.cmpi sge, %103, %104 : vector<1x256xi32>
    %c1_i32_40 = arith.constant 1 : i32
    %106 = vector.broadcast %c1_i32_40 : i32 to vector<1x256xi32>
    %107 = arith.addi %26, %106 : vector<1x256xi32>
    %c16_i32_41 = arith.constant 16 : i32
    %108 = vector.broadcast %c16_i32_41 : i32 to vector<1x256xi32>
    %109 = arith.cmpi slt, %107, %108 : vector<1x256xi32>
    %110 = arith.andi %105, %109 : vector<1x256xi1>
    %cst_42 = arith.constant 0.000000e+00 : f32
    %111 = vector.shape_cast %110 : vector<1x256xi1> to vector<1x256xi1>
    %112 = vector.broadcast %111 : vector<1x256xi1> to vector<12x256xi1>
    %113 = vector.broadcast %cst_42 : f32 to vector<12x256xf32>
    %114 = arith.select %112, %101, %113 : vector<12x256xi1>, vector<12x256xf32>
    %c60 = arith.constant 60 : index
    %c0_43 = arith.constant 0 : index
    %115 = vector.load %arg7[%c60, %c0_43] : memref<108x256xf32, #tpu.memory_space<vmem>>, vector<12x256xf32>
    tpu.vector_store %arg7[%c60, %c0_43], %114 {strides = array<i32>} : memref<108x256xf32, #tpu.memory_space<vmem>>, vector<12x256xf32>,
    %c254_i32 = arith.constant 254 : i32
    %116 = tpu.dynamic_rotate %9 by %c254_i32 dim 1 : vector<12x256xf32>, i32 -> vector<12x256xf32>
    %c2_i32_44 = arith.constant 2 : i32
    %117 = vector.broadcast %c2_i32_44 : i32 to vector<1x256xi32>
    %118 = arith.addi %26, %117 : vector<1x256xi32>
    %c0_i32_45 = arith.constant 0 : i32
    %119 = vector.broadcast %c0_i32_45 : i32 to vector<1x256xi32>
    %120 = arith.cmpi sge, %118, %119 : vector<1x256xi32>
    %c2_i32_46 = arith.constant 2 : i32
    %121 = vector.broadcast %c2_i32_46 : i32 to vector<1x256xi32>
    %122 = arith.addi %26, %121 : vector<1x256xi32>
    %c16_i32_47 = arith.constant 16 : i32
    %123 = vector.broadcast %c16_i32_47 : i32 to vector<1x256xi32>
    %124 = arith.cmpi slt, %122, %123 : vector<1x256xi32>
    %125 = arith.andi %120, %124 : vector<1x256xi1>
    %cst_48 = arith.constant 0.000000e+00 : f32
    %126 = vector.shape_cast %125 : vector<1x256xi1> to vector<1x256xi1>
    %127 = vector.broadcast %126 : vector<1x256xi1> to vector<12x256xi1>
    %128 = vector.broadcast %cst_48 : f32 to vector<12x256xf32>
    %129 = arith.select %127, %116, %128 : vector<12x256xi1>, vector<12x256xf32>
    %c72 = arith.constant 72 : index
    %c0_49 = arith.constant 0 : index
    %130 = vector.load %arg7[%c72, %c0_49] : memref<108x256xf32, #tpu.memory_space<vmem>>, vector<12x256xf32>
    tpu.vector_store %arg7[%c72, %c0_49], %129 {strides = array<i32>} : memref<108x256xf32, #tpu.memory_space<vmem>>, vector<12x256xf32>,
    %c253_i32 = arith.constant 253 : i32
    %131 = tpu.dynamic_rotate %9 by %c253_i32 dim 1 : vector<12x256xf32>, i32 -> vector<12x256xf32>
    %c3_i32_50 = arith.constant 3 : i32
    %132 = vector.broadcast %c3_i32_50 : i32 to vector<1x256xi32>
    %133 = arith.addi %26, %132 : vector<1x256xi32>
    %c0_i32_51 = arith.constant 0 : i32
    %134 = vector.broadcast %c0_i32_51 : i32 to vector<1x256xi32>
    %135 = arith.cmpi sge, %133, %134 : vector<1x256xi32>
    %c3_i32_52 = arith.constant 3 : i32
    %136 = vector.broadcast %c3_i32_52 : i32 to vector<1x256xi32>
    %137 = arith.addi %26, %136 : vector<1x256xi32>
    %c16_i32_53 = arith.constant 16 : i32
    %138 = vector.broadcast %c16_i32_53 : i32 to vector<1x256xi32>
    %139 = arith.cmpi slt, %137, %138 : vector<1x256xi32>
    %140 = arith.andi %135, %139 : vector<1x256xi1>
    %cst_54 = arith.constant 0.000000e+00 : f32
    %141 = vector.shape_cast %140 : vector<1x256xi1> to vector<1x256xi1>
    %142 = vector.broadcast %141 : vector<1x256xi1> to vector<12x256xi1>
    %143 = vector.broadcast %cst_54 : f32 to vector<12x256xf32>
    %144 = arith.select %142, %131, %143 : vector<12x256xi1>, vector<12x256xf32>
    %c84 = arith.constant 84 : index
    %c0_55 = arith.constant 0 : index
    %145 = vector.load %arg7[%c84, %c0_55] : memref<108x256xf32, #tpu.memory_space<vmem>>, vector<12x256xf32>
    tpu.vector_store %arg7[%c84, %c0_55], %144 {strides = array<i32>} : memref<108x256xf32, #tpu.memory_space<vmem>>, vector<12x256xf32>,
    %c252_i32 = arith.constant 252 : i32
    %146 = tpu.dynamic_rotate %9 by %c252_i32 dim 1 : vector<12x256xf32>, i32 -> vector<12x256xf32>
    %c4_i32_56 = arith.constant 4 : i32
    %147 = vector.broadcast %c4_i32_56 : i32 to vector<1x256xi32>
    %148 = arith.addi %26, %147 : vector<1x256xi32>
    %c0_i32_57 = arith.constant 0 : i32
    %149 = vector.broadcast %c0_i32_57 : i32 to vector<1x256xi32>
    %150 = arith.cmpi sge, %148, %149 : vector<1x256xi32>
    %c4_i32_58 = arith.constant 4 : i32
    %151 = vector.broadcast %c4_i32_58 : i32 to vector<1x256xi32>
    %152 = arith.addi %26, %151 : vector<1x256xi32>
    %c16_i32_59 = arith.constant 16 : i32
    %153 = vector.broadcast %c16_i32_59 : i32 to vector<1x256xi32>
    %154 = arith.cmpi slt, %152, %153 : vector<1x256xi32>
    %155 = arith.andi %150, %154 : vector<1x256xi1>
    %cst_60 = arith.constant 0.000000e+00 : f32
    %156 = vector.shape_cast %155 : vector<1x256xi1> to vector<1x256xi1>
    %157 = vector.broadcast %156 : vector<1x256xi1> to vector<12x256xi1>
    %158 = vector.broadcast %cst_60 : f32 to vector<12x256xf32>
    %159 = arith.select %157, %146, %158 : vector<12x256xi1>, vector<12x256xf32>
    %c96 = arith.constant 96 : index
    %c0_61 = arith.constant 0 : index
    %160 = vector.load %arg7[%c96, %c0_61] : memref<108x256xf32, #tpu.memory_space<vmem>>, vector<12x256xf32>
    tpu.vector_store %arg7[%c96, %c0_61], %159 {strides = array<i32>} : memref<108x256xf32, #tpu.memory_space<vmem>>, vector<12x256xf32>,
    %c0_62 = arith.constant 0 : index
    %c0_63 = arith.constant 0 : index
    %161 = vector.load %arg4[%c0_62, %c0_63] : memref<4x108xf32, #tpu.memory_space<vmem>>, vector<4x108xf32>
    %c0_64 = arith.constant 0 : index
    %c0_65 = arith.constant 0 : index
    %162 = vector.load %arg7[%c0_64, %c0_65] : memref<108x256xf32, #tpu.memory_space<vmem>>, vector<108x256xf32>
    %cst_66 = arith.constant dense<0.000000e+00> : vector<4x256xf32>
    %163 = tpu.matmul %161, %162, %cst_66 {dimension_numbers = #tpu.dot_dimension_numbers<[1], [0], [0], [1], [0, 0, 1, 1], [], []>} : vector<4x108xf32>, vector<108x256xf32>, vector<4x256xf32> -> vector<4x256xf32>
    %c0_67 = arith.constant 0 : index
    %c0_68 = arith.constant 0 : index
    %164 = vector.load %arg5[%c0_67, %c0_68] : memref<4x1xf32, #tpu.memory_space<vmem>>, vector<4x1xf32>
    %165 = vector.broadcast %164 : vector<4x1xf32> to vector<4x256xf32>
    %166 = arith.addf %163, %165 : vector<4x256xf32>
    %c12_69 = arith.constant 12 : index
    %c0_70 = arith.constant 0 : index
    %167 = vector.load %arg6[%c12_69, %c0_70] : memref<16x256xf32, #tpu.memory_space<vmem>>, vector<4x256xf32>
    tpu.vector_store %arg6[%c12_69, %c0_70], %166 {strides = array<i32>} : memref<16x256xf32, #tpu.memory_space<vmem>>, vector<4x256xf32>,
    return
  }
  func.func @transform_0(%arg0: i32) -> (i32, i32) {
    %c0_i32 = arith.constant 0 : i32
    %c0_i32_0 = arith.constant 0 : i32
    return %c0_i32, %arg0 : i32, i32
  }
  func.func @transform_1(%arg0: i32) -> (i32, i32) {
    %c0_i32 = arith.constant 0 : i32
    %c0_i32_0 = arith.constant 0 : i32
    %c0_i32_1 = arith.constant 0 : i32
    return %c0_i32, %c0_i32_0 : i32, i32
  }
  func.func @transform_2(%arg0: i32) -> (i32, i32) {
    %c0_i32 = arith.constant 0 : i32
    %c0_i32_0 = arith.constant 0 : i32
    %c0_i32_1 = arith.constant 0 : i32
    return %c0_i32, %c0_i32_0 : i32, i32
  }
  func.func @transform_3(%arg0: i32) -> (i32, i32) {
    %c0_i32 = arith.constant 0 : i32
    %c0_i32_0 = arith.constant 0 : i32
    %c0_i32_1 = arith.constant 0 : i32
    return %c0_i32, %c0_i32_0 : i32, i32
  }
  func.func @transform_4(%arg0: i32) -> (i32, i32) {
    %c0_i32 = arith.constant 0 : i32
    %c0_i32_0 = arith.constant 0 : i32
    %c0_i32_1 = arith.constant 0 : i32
    return %c0_i32, %c0_i32_0 : i32, i32
  }
  func.func @transform_5(%arg0: i32) -> (i32, i32) {
    %c0_i32 = arith.constant 0 : i32
    %c0_i32_0 = arith.constant 0 : i32
    return %c0_i32, %arg0 : i32, i32
  }
}

</mosaic_0001>

<llo_original>
// kernel: dense_block.4
$region0: #{dense_block.4}
  #allocation0 [shape = 'u32[]', space=smem, size = 0x4, offset = 0x4, fixed_abs, tag = 'smem constant byte address 0x4 - core index']
  #allocation1 [shape = 'u32[144,128]{1,0:T(1,128)}', space=vmem, size = 0x12000, scoped, tag = 'internal scratch']
  #allocation2 [shape = 'f32[72,256]{1,0:T(8,128)}', space=vmem, size = 0x12000, scoped, tag = 'scratch operand']
  %s0 = inlined_call_operand.vmem [shape: f32[8,512], index: 0, kind: input, shape index: {}]
  %s1 = inlined_call_operand.vmem [shape: f32[8,1], index: 1, kind: input, shape index: {}]
  %s2 = inlined_call_operand.vmem [shape: f32[8,1], index: 2, kind: input, shape index: {}]
  %s3 = inlined_call_operand.vmem [shape: f32[4,72], index: 3, kind: input, shape index: {}]
  %s4 = inlined_call_operand.vmem [shape: f32[4,1], index: 4, kind: input, shape index: {}]
  %s5 = inlined_call_operand.vmem [shape: f32[12,512], index: 5, kind: output, shape index: {}]
  %s6 = sld [smem:[#allocation0]]
  $region72: #{dense_block.4} parent=0
    _
  %s8 = ssub.s32 1, %s6
  %s9 = scalar_select 0, %s8, %s6
  $region1: #{dense_block.4} parent=0
    #allocation3 [shape = 'u8[32768]{0}', space=vmem, size = 0x8000, scoped, tag = 'output window, operand 0']
    loop: start=0, step=1, limit=4
    $region2: #{dense_block.4} parent=1 // loop_pre_header
      _
    $region3: #{dense_block.4} parent=1 // loop_header
      %s11 = sphi 0, %s15
      %p12 = scmp.ge.s32.totalorder %s11, 4
      %s21 = sphi 0, %s23
      %s24 = sphi 0, %s21
      %s25 = sphi 0, %s24
      %s41 = sphi 0, %s25
      %s45 = sphi 0, %s45
      %s47 = sphi 0, %s45
      %s48 = sphi 0, %s47
      %s62 = sphi 0, %s48
      %s66 = sphi 0, %s66
      %s68 = sphi 0, %s66
      %s69 = sphi 0, %s68
      %s83 = sphi 0, %s69
      %s87 = sphi 0, %s87
      %s89 = sphi 0, %s87
      %s90 = sphi 0, %s89
      %s104 = sphi 0, %s90
      %s108 = sphi 0, %s108
      %s110 = sphi 0, %s108
      %s111 = sphi 0, %s110
      %s125 = sphi 0, %s111
      %s131 = sphi 0, %s133
      %s134 = sphi 0, %s131
      %s135 = sphi 0, %s134
      %s151 = sphi 0, %s135
    $region4: #{dense_block.4} parent=1 // loop_header_branch
      %14 = sbr.rel (%p12) target = $region8
    $region5: #{dense_block.4} parent=1 // loop_body
      %s16 = ssub.s32 %s11, 1
      %s17 = ssub.s32 %s11, 2
      %s18 = sadd.s32 %s11, 1
      %s19 = ssub.s32 %s11, %s18
      %p20 = scmp.eq.s32.totalorder %s19, 0
      %s22 = sadd.s32 %s21, 1
      %s23 = scalar_select %p20, %s21, %s22
      %p26 = pneg %p20
      %p27 = scmp.eq.s32.totalorder %s11, 1
      %p28 = por %p26, %p27
      %p29 = scmp.ne.s32.totalorder %s21, %s24
      %p30 = scmp.eq.s32.totalorder %s11, 0
      %p31 = por %p29, %p30
      %p32 = scmp.ne.s32.totalorder %s21, %s24
      %p33 = scmp.eq.s32.totalorder %s16, 1
      %p34 = por %p32, %p33
      %p35 = scmp.ne.s32.totalorder %s24, %s25
      %p36 = scmp.eq.s32.totalorder %s16, 0
      %p37 = por %p35, %p36
      %p38 = scmp.ne.s32.totalorder %s24, %s25
      %p39 = scmp.eq.s32.totalorder %s17, 1
      %p40 = por %p38, %p39
      %p42 = scmp.ne.s32.totalorder %s25, %s41
      %p43 = scmp.eq.s32.totalorder %s17, 0
      %p44 = por %p42, %p43
      %s46 = sadd.s32 %s45, 1
      %p49 = scmp.eq.s32.totalorder %s11, 1
      %p50 = scmp.ne.s32.totalorder %s45, %s47
      %p51 = scmp.eq.s32.totalorder %s11, 0
      %p52 = por %p50, %p51
      %p53 = scmp.ne.s32.totalorder %s45, %s47
      %p54 = scmp.eq.s32.totalorder %s16, 1
      %p55 = por %p53, %p54
      %p56 = scmp.ne.s32.totalorder %s47, %s48
      %p57 = scmp.eq.s32.totalorder %s16, 0
      %p58 = por %p56, %p57
      %p59 = scmp.ne.s32.totalorder %s47, %s48
      %p60 = scmp.eq.s32.totalorder %s17, 1
      %p61 = por %p59, %p60
      %p63 = scmp.ne.s32.totalorder %s48, %s62
      %p64 = scmp.eq.s32.totalorder %s17, 0
      %p65 = por %p63, %p64
      %s67 = sadd.s32 %s66, 1
      %p70 = scmp.eq.s32.totalorder %s11, 1
      %p71 = scmp.ne.s32.totalorder %s66, %s68
      %p72 = scmp.eq.s32.totalorder %s11, 0
      %p73 = por %p71, %p72
      %p74 = scmp.ne.s32.totalorder %s66, %s68
      %p75 = scmp.eq.s32.totalorder %s16, 1
      %p76 = por %p74, %p75
      %p77 = scmp.ne.s32.totalorder %s68, %s69
      %p78 = scmp.eq.s32.totalorder %s16, 0
      %p79 = por %p77, %p78
      %p80 = scmp.ne.s32.totalorder %s68, %s69
      %p81 = scmp.eq.s32.totalorder %s17, 1
      %p82 = por %p80, %p81
      %p84 = scmp.ne.s32.totalorder %s69, %s83
      %p85 = scmp.eq.s32.totalorder %s17, 0
      %p86 = por %p84, %p85
      %s88 = sadd.s32 %s87, 1
      %p91 = scmp.eq.s32.totalorder %s11, 1
      %p92 = scmp.ne.s32.totalorder %s87, %s89
      %p93 = scmp.eq.s32.totalorder %s11, 0
      %p94 = por %p92, %p93
      %p95 = scmp.ne.s32.totalorder %s87, %s89
      %p96 = scmp.eq.s32.totalorder %s16, 1
      %p97 = por %p95, %p96
      %p98 = scmp.ne.s32.totalorder %s89, %s90
      %p99 = scmp.eq.s32.totalorder %s16, 0
      %p100 = por %p98, %p99
      %p101 = scmp.ne.s32.totalorder %s89, %s90
      %p102 = scmp.eq.s32.totalorder %s17, 1
      %p103 = por %p101, %p102
      %p105 = scmp.ne.s32.totalorder %s90, %s104
      %p106 = scmp.eq.s32.totalorder %s17, 0
      %p107 = por %p105, %p106
      %s109 = sadd.s32 %s108, 1
      %p112 = scmp.eq.s32.totalorder %s11, 1
      %p113 = scmp.ne.s32.totalorder %s108, %s110
      %p114 = scmp.eq.s32.totalorder %s11, 0
      %p115 = por %p113, %p114
      %p116 = scmp.ne.s32.totalorder %s108, %s110
      %p117 = scmp.eq.s32.totalorder %s16, 1
      %p118 = por %p116, %p117
      %p119 = scmp.ne.s32.totalorder %s110, %s111
      %p120 = scmp.eq.s32.totalorder %s16, 0
      %p121 = por %p119, %p120
      %p122 = scmp.ne.s32.totalorder %s110, %s111
      %p123 = scmp.eq.s32.totalorder %s17, 1
      %p124 = por %p122, %p123
      %p126 = scmp.ne.s32.totalorder %s111, %s125
      %p127 = scmp.eq.s32.totalorder %s17, 0
      %p128 = por %p126, %p127
      %s129 = ssub.s32 %s11, %s18
      %p130 = scmp.eq.s32.totalorder %s129, 0
      %s132 = sadd.s32 %s131, 1
      %s133 = scalar_select %p130, %s131, %s132
      %p136 = pneg %p130
      %p137 = scmp.eq.s32.totalorder %s11, 1
      %p138 = por %p136, %p137
      %p139 = scmp.ne.s32.totalorder %s131, %s134
      %p140 = scmp.eq.s32.totalorder %s11, 0
      %p141 = por %p139, %p140
      %p142 = scmp.ne.s32.totalorder %s131, %s134
      %p143 = scmp.eq.s32.totalorder %s16, 1
      %p144 = por %p142, %p143
      %p145 = scmp.ne.s32.totalorder %s134, %s135
      %p146 = scmp.eq.s32.totalorder %s16, 0
      %p147 = por %p145, %p146
      %p148 = scmp.ne.s32.totalorder %s134, %s135
      %p149 = scmp.eq.s32.totalorder %s17, 1
      %p150 = por %p148, %p149
      %p152 = scmp.ne.s32.totalorder %s135, %s151
      %p153 = scmp.eq.s32.totalorder %s17, 0
      %p154 = por %p152, %p153
      %p155 = scmp.le.s32.totalorder 1, %s11
      %p156 = scmp.lt.s32.totalorder %s11, 3
      %p157 = pnand %p155, %p156
      %p158 = pneg %p157
      // Predicated region
      $region9: #{dense_block.4} parent=5 // pred_check
        _
      $region10: #{dense_block.4} parent=5 // pred_check_branch
        %160 = sbr.rel (%p157) target = $region12
      $region11: #{dense_block.4} parent=5 // pred_region
        %s161 = ssub.s32 %s11, 1
        // Predicated region
        $region13: #{dense_block.4} parent=11 // pred_check
          %p162 = pneg %p58
        $region14: #{dense_block.4} parent=11 // pred_check_branch
          %164 = sbr.rel (%p162) target = $region16
        $region15: #{dense_block.4} parent=11 // pred_region
          _
        $region16: #{dense_block.4} parent=11 // pred_fallthru
          _
        // Predicated region
        $region17: #{dense_block.4} parent=11 // pred_check
          %p165 = pneg %p79
        $region18: #{dense_block.4} parent=11 // pred_check_branch
          %167 = sbr.rel (%p165) target = $region20
        $region19: #{dense_block.4} parent=11 // pred_region
          _
        $region20: #{dense_block.4} parent=11 // pred_fallthru
          _
        // Predicated region
        $region21: #{dense_block.4} parent=11 // pred_check
          %p168 = pneg %p100
        $region22: #{dense_block.4} parent=11 // pred_check_branch
          %170 = sbr.rel (%p168) target = $region24
        $region23: #{dense_block.4} parent=11 // pred_region
          _
        $region24: #{dense_block.4} parent=11 // pred_fallthru
          _
        // Predicated region
        $region25: #{dense_block.4} parent=11 // pred_check
          %p171 = pneg %p121
        $region26: #{dense_block.4} parent=11 // pred_check_branch
          %173 = sbr.rel (%p171) target = $region28
        $region27: #{dense_block.4} parent=11 // pred_region
          _
        $region28: #{dense_block.4} parent=11 // pred_fallthru
          _
      $region12: #{dense_block.4} parent=5 // pred_fallthru
        _
      %p174 = scmp.lt.s32.totalorder %s11, 2
      // Predicated region
      $region29: #{dense_block.4} parent=5 // pred_check
        %p175 = pneg %p174
      $region30: #{dense_block.4} parent=5 // pred_check_branch
        %177 = sbr.rel (%p175) target = $region32
      $region31: #{dense_block.4} parent=5 // pred_region
        // Predicated region
        $region33: #{dense_block.4} parent=31 // pred_check
          %p178 = pneg %p31
        $region34: #{dense_block.4} parent=31 // pred_check_branch
          %180 = sbr.rel (%p178) target = $region36
        $region35: #{dense_block.4} parent=31 // pred_region
          %s181 = smul.u32 2, %s11
          %p182 = scmp.lt.s32.totalorder %s181, 3
          %s183 = scalar_select %p182, %s181, 3
          %s184 = smul.addr %s183, 8
          %s185 = scalar_lea.vmem %s0, %s184
          %s186 = smul.u32 2, %s11
        $region36: #{dense_block.4} parent=31 // pred_fallthru
          _
      $region32: #{dense_block.4} parent=5 // pred_fallthru
        _
      %p187 = scmp.le.s32.totalorder 1, %s11
      %p188 = scmp.lt.s32.totalorder %s11, 3
      %p189 = pnand %p187, %p188
      %p190 = pneg %p189
      // Predicated region
      $region37: #{dense_block.4} parent=5 // pred_check
        _
      $region38: #{dense_block.4} parent=5 // pred_check_branch
        %192 = sbr.rel (%p189) target = $region40
      $region39: #{dense_block.4} parent=5 // pred_region
        %s193 = ssub.s32 %s11, 1
        %s194 = smul.u32 2, %s16
        %p195 = scmp.lt.s32.totalorder %s194, 3
        %s196 = scalar_select %p195, %s194, 3
        %s197 = smul.addr %s196, 8
        %s198 = scalar_lea.vmem %s0, %s197
        %p199 = pneg %p37
        %p200 = pneg %p34
        %p201 = pneg %p58
        %p202 = pneg %p55
        %p203 = pneg %p79
        %p204 = pneg %p76
        %p205 = pneg %p100
        %p206 = pneg %p97
        %p207 = pneg %p121
        %p208 = pneg %p118
        %p209 = pneg %p147
        %p210 = pneg %p144
        %s211 = sand.u32 %s134, 1
        %s212 = sand.u32 %s134, 1
        %s213 = smul.addr %s212, 32
        %s214 = scalar_lea.vmem [#allocation3], %s213
        %s215 = smul.u32 2, %s16
        %p216 = scmp.lt.s32.totalorder %s215, 3
        %s217 = scalar_select %p216, %s215, 3
        %s218 = smul.addr %s217, 8
        %s219 = scalar_lea.vmem %s0, %s218
        %s220 = smul.u32 2, %s16
        %s221 = smul.u32 2, %s16
        %v222 = vld [vmem:[%s219] sm:$0xff]
        %v223 = vld [vmem:[%s219 + $0x8] sm:$0xff]
        %224 = vst [vmem:[%s214] sm:$0xff] %v222
        %225 = vst [vmem:[%s214 + $0x8] sm:$0xff] %v223
        %v226 = vld [vmem:[%s1] sm:$0xff]
        %228 = vset.pattern.permute.xlu0 0
        %229 = vperm.xlu0 %228, %v226
        %v230 = vpop.permute.xlu0 %229
        %v232 = vmul.f32 %v222, %v230
        %v233 = vmul.f32 %v223, %v230
        %v234 = vld [vmem:[%s2] sm:$0xff]
        %236 = vset.pattern.permute.xlu0 0
        %237 = vperm.xlu0 %236, %v234
        %v238 = vpop.permute.xlu0 %237
        %v240 = vadd.f32 %v232, %v238
        %v241 = vadd.f32 %v233, %v238
        %v242 = vmax.f32 %v240, 0.0
        %v243 = vmax.f32 %v241, 0.0
        %v244 = vlaneseq
        %v245 = vand.u32 %v244, 127
        %v246 = vadd.s32 %v245, 128
        %vm247 = vcmp.lt.s32.totalorder %v245, 0
        %v248 = vsub.s32 0, %v245
        %v249 = vsel %vm247, %v248, %v245
        %v250 = vshrl.u32 %v249, 4
        %v251 = vand.u32 %v249, 15
        %v252 = vsub.s32 0, %v251
        %v253 = vsel %vm247, %v252, %v251
        %vm254 = vcmp.lt.s32.totalorder %v246, 0
        %v255 = vsub.s32 0, %v246
        %v256 = vsel %vm254, %v255, %v246
        %v257 = vshrl.u32 %v256, 4
        %v258 = vand.u32 %v256, 15
        %v259 = vsub.s32 0, %v258
        %v260 = vsel %vm254, %v259, %v258
        %vm261 = vcmp.ne.s32.totalorder %v253, 0
        %vm262 = vcmp.ne.s32.totalorder %v260, 0
        %vm263 = vcmp.lt.s32.totalorder %v253, 0
        %vm264 = vcmp.lt.s32.totalorder %v260, 0
        %vm265 = vmand %vm263, %vm261
        %vm266 = vmand %vm264, %vm262
        %v267 = vadd.s32 %v253, 16
        %v268 = vadd.s32 %v260, 16
        %v269 = vsel %vm265, %v267, %v253
        %v270 = vsel %vm266, %v268, %v260
        %271 = vrot.lane.b32.xlu0 %v242, 4
        %v272 = vpop.permute.xlu0 %271
        %273 = vrot.lane.b32.xlu0 %v243, 4
        %v274 = vpop.permute.xlu0 %273
        %vm275 = vcmp.lt.s32.totalorder %v245, 4
        %v276 = vsel %vm275, %v272, %v274
        %v277 = vsel %vm275, %v274, %v272
        %v278 = vadd.s32 %v269, 4294967292
        %v279 = vadd.s32 %v270, 4294967292
        %vm280 = vcmp.ge.s32.totalorder %v278, 0
        %vm281 = vcmp.ge.s32.totalorder %v279, 0
        %vm282 = vcmp.lt.s32.totalorder %v278, 16
        %vm283 = vcmp.lt.s32.totalorder %v279, 16
        %vm284 = vmand %vm280, %vm282
        %vm285 = vmand %vm281, %vm283
        %v286 = vsel %vm284, 1, 0
        %v287 = vsel %vm285, 1, 0
        %vm288 = vcmp.eq.s32.totalorder %v286, 1
        %vm289 = vcmp.eq.s32.totalorder %v287, 1
        %v290 = vsel %vm288, %v277, 0.0
        %v291 = vsel %vm289, %v276, 0.0
        %292 = vst [vmem:[#allocation2] sm:$0xff] %v290
        %293 = vst [vmem:[#allocation2 + $0x8] sm:$0xff] %v291
        %294 = vrot.lane.b32.xlu0 %v242, 3
        %v295 = vpop.permute.xlu0 %294
        %296 = vrot.lane.b32.xlu0 %v243, 3
        %v297 = vpop.permute.xlu0 %296
        %vm298 = vcmp.lt.s32.totalorder %v245, 3
        %v299 = vsel %vm298, %v295, %v297
        %v300 = vsel %vm298, %v297, %v295
        %v301 = vadd.s32 %v269, 4294967293
        %v302 = vadd.s32 %v270, 4294967293
        %vm303 = vcmp.ge.s32.totalorder %v301, 0
        %vm304 = vcmp.ge.s32.totalorder %v302, 0
        %vm305 = vcmp.lt.s32.totalorder %v301, 16
        %vm306 = vcmp.lt.s32.totalorder %v302, 16
        %vm307 = vmand %vm303, %vm305
        %vm308 = vmand %vm304, %vm306
        %v309 = vsel %vm307, 1, 0
        %v310 = vsel %vm308, 1, 0
        %vm311 = vcmp.eq.s32.totalorder %v309, 1
        %vm312 = vcmp.eq.s32.totalorder %v310, 1
        %v313 = vsel %vm311, %v300, 0.0
        %v314 = vsel %vm312, %v299, 0.0
        %315 = vst [vmem:[#allocation2 + $0x10] sm:$0xff] %v313
        %316 = vst [vmem:[#allocation2 + $0x18] sm:$0xff] %v314
        %317 = vrot.lane.b32.xlu0 %v242, 2
        %v318 = vpop.permute.xlu0 %317
        %319 = vrot.lane.b32.xlu0 %v243, 2
        %v320 = vpop.permute.xlu0 %319
        %vm321 = vcmp.lt.s32.totalorder %v245, 2
        %v322 = vsel %vm321, %v318, %v320
        %v323 = vsel %vm321, %v320, %v318
        %v324 = vadd.s32 %v269, 4294967294
        %v325 = vadd.s32 %v270, 4294967294
        %vm326 = vcmp.ge.s32.totalorder %v324, 0
        %vm327 = vcmp.ge.s32.totalorder %v325, 0
        %vm328 = vcmp.lt.s32.totalorder %v324, 16
        %vm329 = vcmp.lt.s32.totalorder %v325, 16
        %vm330 = vmand %vm326, %vm328
        %vm331 = vmand %vm327, %vm329
        %v332 = vsel %vm330, 1, 0
        %v333 = vsel %vm331, 1, 0
        %vm334 = vcmp.eq.s32.totalorder %v332, 1
        %vm335 = vcmp.eq.s32.totalorder %v333, 1
        %v336 = vsel %vm334, %v323, 0.0
        %v337 = vsel %vm335, %v322, 0.0
        %338 = vst [vmem:[#allocation2 + $0x20] sm:$0xff] %v336
        %339 = vst [vmem:[#allocation2 + $0x28] sm:$0xff] %v337
        %340 = vrot.lane.b32.xlu0 %v242, 1
        %v341 = vpop.permute.xlu0 %340
        %342 = vrot.lane.b32.xlu0 %v243, 1
        %v343 = vpop.permute.xlu0 %342
        %vm344 = vcmp.lt.s32.totalorder %v245, 1
        %v345 = vsel %vm344, %v341, %v343
        %v346 = vsel %vm344, %v343, %v341
        %v347 = vadd.s32 %v269, 4294967295
        %v348 = vadd.s32 %v270, 4294967295
        %vm349 = vcmp.ge.s32.totalorder %v347, 0
        %vm350 = vcmp.ge.s32.totalorder %v348, 0
        %vm351 = vcmp.lt.s32.totalorder %v347, 16
        %vm352 = vcmp.lt.s32.totalorder %v348, 16
        %vm353 = vmand %vm349, %vm351
        %vm354 = vmand %vm350, %vm352
        %v355 = vsel %vm353, 1, 0
        %v356 = vsel %vm354, 1, 0
        %vm357 = vcmp.eq.s32.totalorder %v355, 1
        %vm358 = vcmp.eq.s32.totalorder %v356, 1
        %v359 = vsel %vm357, %v346, 0.0
        %v360 = vsel %vm358, %v345, 0.0
        %361 = vst [vmem:[#allocation2 + $0x30] sm:$0xff] %v359
        %362 = vst [vmem:[#allocation2 + $0x38] sm:$0xff] %v360
        %vm363 = vcmp.ge.s32.totalorder %v269, 0
        %vm364 = vcmp.ge.s32.totalorder %v270, 0
        %vm365 = vcmp.lt.s32.totalorder %v269, 16
        %vm366 = vcmp.lt.s32.totalorder %v270, 16
        %vm367 = vmand %vm363, %vm365
        %vm368 = vmand %vm364, %vm366
        %v369 = vsel %vm367, 1, 0
        %v370 = vsel %vm368, 1, 0
        %vm371 = vcmp.eq.s32.totalorder %v369, 1
        %vm372 = vcmp.eq.s32.totalorder %v370, 1
        %v373 = vsel %vm371, %v242, 0.0
        %v374 = vsel %vm372, %v243, 0.0
        %375 = vst [vmem:[#allocation2 + $0x40] sm:$0xff] %v373
        %376 = vst [vmem:[#allocation2 + $0x48] sm:$0xff] %v374
        %377 = vrot.lane.b32.xlu0 %v242, 127
        %v378 = vpop.permute.xlu0 %377
        %379 = vrot.lane.b32.xlu0 %v243, 127
        %v380 = vpop.permute.xlu0 %379
        %vm381 = vcmp.lt.s32.totalorder %v245, 127
        %v382 = vsel %vm381, %v378, %v380
        %v383 = vsel %vm381, %v380, %v378
        %v384 = vadd.s32 %v269, 1
        %v385 = vadd.s32 %v270, 1
        %vm386 = vcmp.ge.s32.totalorder %v384, 0
        %vm387 = vcmp.ge.s32.totalorder %v385, 0
        %vm388 = vcmp.lt.s32.totalorder %v384, 16
        %vm389 = vcmp.lt.s32.totalorder %v385, 16
        %vm390 = vmand %vm386, %vm388
        %vm391 = vmand %vm387, %vm389
        %v392 = vsel %vm390, 1, 0
        %v393 = vsel %vm391, 1, 0
        %vm394 = vcmp.eq.s32.totalorder %v392, 1
        %vm395 = vcmp.eq.s32.totalorder %v393, 1
        %v396 = vsel %vm394, %v382, 0.0
        %v397 = vsel %vm395, %v383, 0.0
        %398 = vst [vmem:[#allocation2 + $0x50] sm:$0xff] %v396
        %399 = vst [vmem:[#allocation2 + $0x58] sm:$0xff] %v397
        %400 = vrot.lane.b32.xlu0 %v242, 126
        %v401 = vpop.permute.xlu0 %400
        %402 = vrot.lane.b32.xlu0 %v243, 126
        %v403 = vpop.permute.xlu0 %402
        %vm404 = vcmp.lt.s32.totalorder %v245, 126
        %v405 = vsel %vm404, %v401, %v403
        %v406 = vsel %vm404, %v403, %v401
        %v407 = vadd.s32 %v269, 2
        %v408 = vadd.s32 %v270, 2
        %vm409 = vcmp.ge.s32.totalorder %v407, 0
        %vm410 = vcmp.ge.s32.totalorder %v408, 0
        %vm411 = vcmp.lt.s32.totalorder %v407, 16
        %vm412 = vcmp.lt.s32.totalorder %v408, 16
        %vm413 = vmand %vm409, %vm411
        %vm414 = vmand %vm410, %vm412
        %v415 = vsel %vm413, 1, 0
        %v416 = vsel %vm414, 1, 0
        %vm417 = vcmp.eq.s32.totalorder %v415, 1
        %vm418 = vcmp.eq.s32.totalorder %v416, 1
        %v419 = vsel %vm417, %v405, 0.0
        %v420 = vsel %vm418, %v406, 0.0
        %421 = vst [vmem:[#allocation2 + $0x60] sm:$0xff] %v419
        %422 = vst [vmem:[#allocation2 + $0x68] sm:$0xff] %v420
        %423 = vrot.lane.b32.xlu0 %v242, 125
        %v424 = vpop.permute.xlu0 %423
        %425 = vrot.lane.b32.xlu0 %v243, 125
        %v426 = vpop.permute.xlu0 %425
        %vm427 = vcmp.lt.s32.totalorder %v245, 125
        %v428 = vsel %vm427, %v424, %v426
        %v429 = vsel %vm427, %v426, %v424
        %v430 = vadd.s32 %v269, 3
        %v431 = vadd.s32 %v270, 3
        %vm432 = vcmp.ge.s32.totalorder %v430, 0
        %vm433 = vcmp.ge.s32.totalorder %v431, 0
        %vm434 = vcmp.lt.s32.totalorder %v430, 16
        %vm435 = vcmp.lt.s32.totalorder %v431, 16
        %vm436 = vmand %vm432, %vm434
        %vm437 = vmand %vm433, %vm435
        %v438 = vsel %vm436, 1, 0
        %v439 = vsel %vm437, 1, 0
        %vm440 = vcmp.eq.s32.totalorder %v438, 1
        %vm441 = vcmp.eq.s32.totalorder %v439, 1
        %v442 = vsel %vm440, %v428, 0.0
        %v443 = vsel %vm441, %v429, 0.0
        %444 = vst [vmem:[#allocation2 + $0x70] sm:$0xff] %v442
        %445 = vst [vmem:[#allocation2 + $0x78] sm:$0xff] %v443
        %446 = vrot.lane.b32.xlu0 %v242, 124
        %v447 = vpop.permute.xlu0 %446
        %448 = vrot.lane.b32.xlu0 %v243, 124
        %v449 = vpop.permute.xlu0 %448
        %vm450 = vcmp.lt.s32.totalorder %v245, 124
        %v451 = vsel %vm450, %v447, %v449
        %v452 = vsel %vm450, %v449, %v447
        %v453 = vadd.s32 %v269, 4
        %v454 = vadd.s32 %v270, 4
        %vm455 = vcmp.ge.s32.totalorder %v453, 0
        %vm456 = vcmp.ge.s32.totalorder %v454, 0
        %vm457 = vcmp.lt.s32.totalorder %v453, 16
        %vm458 = vcmp.lt.s32.totalorder %v454, 16
        %vm459 = vmand %vm455, %vm457
        %vm460 = vmand %vm456, %vm458
        %v461 = vsel %vm459, 1, 0
        %v462 = vsel %vm460, 1, 0
        %vm463 = vcmp.eq.s32.totalorder %v461, 1
        %vm464 = vcmp.eq.s32.totalorder %v462, 1
        %v465 = vsel %vm463, %v451, 0.0
        %v466 = vsel %vm464, %v452, 0.0
        %467 = vst [vmem:[#allocation2 + $0x80] sm:$0xff] %v465
        %468 = vst [vmem:[#allocation2 + $0x88] sm:$0xff] %v466
        %v469 = vld [vmem:[%s3] sm:$0xf]
        %v470 = vld [vmem:[#allocation2] sm:$0xff]
        %v471 = vld [vmem:[#allocation2 + $0x8] sm:$0xff]
        %v472 = vld [vmem:[#allocation2 + $0x10] sm:$0xff]
        %v473 = vld [vmem:[#allocation2 + $0x18] sm:$0xff]
        %v474 = vld [vmem:[#allocation2 + $0x20] sm:$0xff]
        %v475 = vld [vmem:[#allocation2 + $0x28] sm:$0xff]
        %v476 = vld [vmem:[#allocation2 + $0x30] sm:$0xff]
        %v477 = vld [vmem:[#allocation2 + $0x38] sm:$0xff]
        %v478 = vld [vmem:[#allocation2 + $0x40] sm:$0xff]
        %v479 = vld [vmem:[#allocation2 + $0x48] sm:$0xff]
        %v480 = vld [vmem:[#allocation2 + $0x50] sm:$0xff]
        %v481 = vld [vmem:[#allocation2 + $0x58] sm:$0xff]
        %v482 = vld [vmem:[#allocation2 + $0x60] sm:$0xff]
        %v483 = vld [vmem:[#allocation2 + $0x68] sm:$0xff]
        %v484 = vld [vmem:[#allocation2 + $0x70] sm:$0xff]
        %v485 = vld [vmem:[#allocation2 + $0x78] sm:$0xff]
        %v486 = vld [vmem:[#allocation2 + $0x80] sm:$0xff]
        %v487 = vld [vmem:[#allocation2 + $0x88] sm:$0xff]
        %v488 = vld [vmem:[%s4] sm:$0xf]
        %490 = vset.pattern.permute.xlu0 0
        %491 = vperm.xlu0 %490, %v488
        %v492 = vpop.permute.xlu0 %491
        %vm494 = vcmask 588800
        %v496 = vsel %vm494, %v469, 0
        %498 = vmatprep.subr.mxu0 0.0
        %499 = vmatpush1.msra.mxu0 0.0
        %500 = vmatprep.subr.mxu0 0.0
        %501 = vmatpush1.msra.mxu0 0.0
        %502 = vmatprep.subr.mxu0 0.0
        %503 = vmatpush1.msra.mxu0 0.0
        %504 = vmatprep.subr.mxu0 0.0
        %505 = vmatpush1.msra.mxu0 0.0
        %506 = vmatprep.subr.mxu0 0.0
        %507 = vmatpush1.msra.mxu0 0.0
        %508 = vmatprep.subr.mxu0 0.0
        %509 = vmatpush1.msra.mxu0 0.0
        %510 = vmatprep.subr.mxu0 0.0
        %511 = vmatpush1.msra.mxu0 0.0
        %512 = vmatprep.subr.mxu0 %v487
        %513 = vmatpush1.msra.mxu0 %v486
        %514 = vmatprep.subr.mxu0 %v485
        %515 = vmatpush1.msra.mxu0 %v484
        %516 = vmatprep.subr.mxu0 %v483
        %517 = vmatpush1.msra.mxu0 %v482
        %518 = vmatprep.subr.mxu0 %v481
        %519 = vmatpush1.msra.mxu0 %v480
        %520 = vmatprep.subr.mxu0 %v479
        %521 = vmatpush1.msra.mxu0 %v478
        %522 = vmatprep.subr.mxu0 %v477
        %523 = vmatpush1.msra.mxu0 %v476
        %524 = vmatprep.subr.mxu0 %v475
        %525 = vmatpush1.msra.mxu0 %v474
        %526 = vmatprep.subr.mxu0 %v473
        %527 = vmatpush1.msra.mxu0 %v472
        %528 = vmatprep.subr.mxu0 %v471
        %529 = vmatpush1.msra.mxu0 %v470
        %530 = vmatprep.subr.mxu0 0.0
        %531 = vmatpush2.msra.mxu0 0.0
        %532 = vmatprep.subr.mxu0 0.0
        %533 = vmatpush2.msra.mxu0 0.0
        %534 = vmatprep.subr.mxu0 0.0
        %535 = vmatpush2.msra.mxu0 0.0
        %536 = vmatprep.subr.mxu0 0.0
        %537 = vmatpush2.msra.mxu0 0.0
        %538 = vmatprep.subr.mxu0 0.0
        %539 = vmatpush2.msra.mxu0 0.0
        %540 = vmatprep.subr.mxu0 0.0
        %541 = vmatpush2.msra.mxu0 0.0
        %542 = vmatprep.subr.mxu0 0.0
        %543 = vmatpush2.msra.mxu0 0.0
        %544 = vmatprep.subr.mxu0 0.0
        %545 = vmatpush2.msra.mxu0 0.0
        %546 = vmatprep.subr.mxu0 0.0
        %547 = vmatpush2.msra.mxu0 0.0
        %548 = vmatprep.subr.mxu0 0.0
        %549 = vmatpush2.msra.mxu0 0.0
        %550 = vmatprep.subr.mxu0 0.0
        %551 = vmatpush2.msra.mxu0 0.0
        %552 = vmatprep.subr.mxu0 0.0
        %553 = vmatpush2.msra.mxu0 0.0
        %554 = vmatprep.subr.mxu0 0.0
        %555 = vmatpush2.msra.mxu0 0.0
        %556 = vmatprep.subr.mxu0 0.0
        %557 = vmatpush2.msra.mxu0 0.0
        %558 = vmatprep.subr.mxu0 0.0
        %559 = vmatpush2.msra.mxu0 0.0
        %560 = vmatprep.subr.mxu0 0.0
        %561 = vmatpush2.msra.mxu0 0.0
        %562 = vmatprep.mubr.f32.mxu0 0.0
        %563 = vmatmul.mubr.f32.gmra.mxu0 %v496
        %v564 = vpop.f32.mrf.mxu0
        %v565 = vadd.f32 %v492, %v564
        %v566 = vpop.f32.mrf.mxu0
        %v567 = vadd.f32 %v492, %v566
        %568 = vdwg.mxu0
        %569 = vst [vmem:[%s214 + $0x10] sm:$0xf] %v565
        %570 = vst [vmem:[%s214 + $0x18] sm:$0xf] %v567
        %s571 = sand.u32 %s134, 1
        %s572 = sand.u32 %s134, 1
        %s573 = smul.addr %s572, 32
        %s574 = scalar_lea.vmem [#allocation3], %s573
        // Predicated region
        $region41: #{dense_block.4} parent=39 // pred_check
          %p575 = pneg %p144
        $region42: #{dense_block.4} parent=39 // pred_check_branch
          %577 = sbr.rel (%p575) target = $region44
        $region43: #{dense_block.4} parent=39 // pred_region
          %s578 = smul.u32 2, %s16
          %s579 = smul.addr %s578, 8
          %s580 = scalar_lea.vmem %s5, %s579
          // Predicated region
          $region45: #{dense_block.4} parent=43 // pred_check
            _
          $region46: #{dense_block.4} parent=43 // pred_check_branch
            %582 = sbr.rel (0) target = $region48
          $region47: #{dense_block.4} parent=43 // pred_region
            // Predicated region
            $region49: #{dense_block.4} parent=47 // pred_check
              _
            $region50: #{dense_block.4} parent=47 // pred_check_branch
              %584 = sbr.rel (0) target = $region52
            $region51: #{dense_block.4} parent=47 // pred_region
              loop: start=0, step=1, limit=1
              $region53: #{dense_block.4} parent=51 // loop_pre_header
                _
              $region54: #{dense_block.4} parent=51 // loop_header
                %s586 = sphi 0, %s590
                %p587 = scmp.ge.s32.totalorder %s586, 1
                %s591 = sphi %s574, %s574
                %s592 = sphi %s580, %s580
              $region55: #{dense_block.4} parent=51 // loop_header_branch
                %589 = sbr.rel (%p587) target = $region59
              $region56: #{dense_block.4} parent=51 // loop_body
                %v593 = vld [vmem:[%s591] sm:$0xff]
                %594 = vst [vmem:[%s592] sm:$0xff] %v593
                %v595 = vld [vmem:[%s591 + $0x8] sm:$0xff]
                %596 = vst [vmem:[%s592 + $0x8] sm:$0xff] %v595
                %v597 = vld [vmem:[%s591 + $0x10] sm:$0xff]
                %598 = vst [vmem:[%s592 + $0x20] sm:$0xff] %v597
                %v599 = vld [vmem:[%s591 + $0x18] sm:$0xff]
                %600 = vst [vmem:[%s592 + $0x28] sm:$0xff] %v599
              $region57: #{dense_block.4} parent=51 // loop_footer
                %s590 = sadd.s32 1, %s586
              $region58: #{dense_block.4} parent=51 // loop_footer_branch
                %585 = sbr.rel target = $region54
              $region59: #{dense_block.4} parent=51 // loop_exit
                _
            $region52: #{dense_block.4} parent=47 // pred_fallthru
              _
            // Predicated region
            $region60: #{dense_block.4} parent=47 // pred_check
              _
            $region61: #{dense_block.4} parent=47 // pred_check_branch
              %602 = sbr.rel target = $region63
            $region62: #{dense_block.4} parent=47 // pred_region
              _
            $region63: #{dense_block.4} parent=47 // pred_fallthru
              _
          $region48: #{dense_block.4} parent=43 // pred_fallthru
            _
          %603 = vnop
        $region44: #{dense_block.4} parent=39 // pred_fallthru
          _
      $region40: #{dense_block.4} parent=5 // pred_fallthru
        _
      %p604 = scmp.le.s32.totalorder 2, %s11
      // Predicated region
      $region64: #{dense_block.4} parent=5 // pred_check
        %p605 = pneg %p604
      $region65: #{dense_block.4} parent=5 // pred_check_branch
        %607 = sbr.rel (%p605) target = $region67
      $region66: #{dense_block.4} parent=5 // pred_region
        %s608 = ssub.s32 %s11, 2
        // Predicated region
        $region68: #{dense_block.4} parent=66 // pred_check
          %p609 = pneg %p150
        $region69: #{dense_block.4} parent=66 // pred_check_branch
          %611 = sbr.rel (%p609) target = $region71
        $region70: #{dense_block.4} parent=66 // pred_region
          %s612 = sand.u32 %s135, 1
          %s613 = sand.u32 %s135, 1
          %s614 = smul.addr %s613, 32
          %s615 = scalar_lea.vmem [#allocation3], %s614
        $region71: #{dense_block.4} parent=66 // pred_fallthru
          _
      $region67: #{dense_block.4} parent=5 // pred_fallthru
        _
    $region6: #{dense_block.4} parent=1 // loop_footer
      %s15 = sadd.s32 1, %s11
    $region7: #{dense_block.4} parent=1 // loop_footer_branch
      %10 = sbr.rel target = $region3
    $region8: #{dense_block.4} parent=1 // loop_exit
      _

// kernel: dense_block.3
$region0: #{dense_block.3}
  #allocation0 [shape = 'u32[]', space=smem, size = 0x4, offset = 0x4, fixed_abs, tag = 'smem constant byte address 0x4 - core index']
  #allocation1 [shape = 'u32[144,128]{1,0:T(1,128)}', space=vmem, size = 0x12000, scoped, tag = 'internal scratch']
  #allocation2 [shape = 'f32[36,256]{1,0:T(8,128)}', space=vmem, size = 0xa000, scoped, tag = 'scratch operand']
  %s0 = inlined_call_operand.vmem [shape: f32[4,512], index: 0, kind: input, shape index: {}]
  %s1 = inlined_call_operand.vmem [shape: f32[4,1], index: 1, kind: input, shape index: {}]
  %s2 = inlined_call_operand.vmem [shape: f32[4,1], index: 2, kind: input, shape index: {}]
  %s3 = inlined_call_operand.vmem [shape: f32[4,36], index: 3, kind: input, shape index: {}]
  %s4 = inlined_call_operand.vmem [shape: f32[4,1], index: 4, kind: input, shape index: {}]
  %s5 = inlined_call_operand.vmem [shape: f32[8,512], index: 5, kind: output, shape index: {}]
  %s6 = sld [smem:[#allocation0]]
  $region53: #{dense_block.3} parent=0
    _
  %s8 = ssub.s32 1, %s6
  %s9 = scalar_select 0, %s8, %s6
  loop: start=0, step=1, limit=4
  $region2: #{dense_block.3} parent=0 // loop_pre_header
    _
  $region3: #{dense_block.3} parent=0 // loop_header
    %s11 = sphi 0, %s15
    %p12 = scmp.ge.s32.totalorder %s11, 4
    %s21 = sphi 0, %s23
    %s24 = sphi 0, %s21
    %s25 = sphi 0, %s24
    %s41 = sphi 0, %s25
    %s45 = sphi 0, %s45
    %s47 = sphi 0, %s45
    %s48 = sphi 0, %s47
    %s62 = sphi 0, %s48
    %s66 = sphi 0, %s66
    %s68 = sphi 0, %s66
    %s69 = sphi 0, %s68
    %s83 = sphi 0, %s69
    %s87 = sphi 0, %s87
    %s89 = sphi 0, %s87
    %s90 = sphi 0, %s89
    %s104 = sphi 0, %s90
    %s108 = sphi 0, %s108
    %s110 = sphi 0, %s108
    %s111 = sphi 0, %s110
    %s125 = sphi 0, %s111
    %s131 = sphi 0, %s133
    %s134 = sphi 0, %s131
    %s135 = sphi 0, %s134
    %s151 = sphi 0, %s135
  $region4: #{dense_block.3} parent=0 // loop_header_branch
    %14 = sbr.rel (%p12) target = $region8
  $region5: #{dense_block.3} parent=0 // loop_body
    %s16 = ssub.s32 %s11, 1
    %s17 = ssub.s32 %s11, 2
    %s18 = sadd.s32 %s11, 1
    %s19 = ssub.s32 %s11, %s18
    %p20 = scmp.eq.s32.totalorder %s19, 0
    %s22 = sadd.s32 %s21, 1
    %s23 = scalar_select %p20, %s21, %s22
    %p26 = pneg %p20
    %p27 = scmp.eq.s32.totalorder %s11, 1
    %p28 = por %p26, %p27
    %p29 = scmp.ne.s32.totalorder %s21, %s24
    %p30 = scmp.eq.s32.totalorder %s11, 0
    %p31 = por %p29, %p30
    %p32 = scmp.ne.s32.totalorder %s21, %s24
    %p33 = scmp.eq.s32.totalorder %s16, 1
    %p34 = por %p32, %p33
    %p35 = scmp.ne.s32.totalorder %s24, %s25
    %p36 = scmp.eq.s32.totalorder %s16, 0
    %p37 = por %p35, %p36
    %p38 = scmp.ne.s32.totalorder %s24, %s25
    %p39 = scmp.eq.s32.totalorder %s17, 1
    %p40 = por %p38, %p39
    %p42 = scmp.ne.s32.totalorder %s25, %s41
    %p43 = scmp.eq.s32.totalorder %s17, 0
    %p44 = por %p42, %p43
    %s46 = sadd.s32 %s45, 1
    %p49 = scmp.eq.s32.totalorder %s11, 1
    %p50 = scmp.ne.s32.totalorder %s45, %s47
    %p51 = scmp.eq.s32.totalorder %s11, 0
    %p52 = por %p50, %p51
    %p53 = scmp.ne.s32.totalorder %s45, %s47
    %p54 = scmp.eq.s32.totalorder %s16, 1
    %p55 = por %p53, %p54
    %p56 = scmp.ne.s32.totalorder %s47, %s48
    %p57 = scmp.eq.s32.totalorder %s16, 0
    %p58 = por %p56, %p57
    %p59 = scmp.ne.s32.totalorder %s47, %s48
    %p60 = scmp.eq.s32.totalorder %s17, 1
    %p61 = por %p59, %p60
    %p63 = scmp.ne.s32.totalorder %s48, %s62
    %p64 = scmp.eq.s32.totalorder %s17, 0
    %p65 = por %p63, %p64
    %s67 = sadd.s32 %s66, 1
    %p70 = scmp.eq.s32.totalorder %s11, 1
    %p71 = scmp.ne.s32.totalorder %s66, %s68
    %p72 = scmp.eq.s32.totalorder %s11, 0
    %p73 = por %p71, %p72
    %p74 = scmp.ne.s32.totalorder %s66, %s68
    %p75 = scmp.eq.s32.totalorder %s16, 1
    %p76 = por %p74, %p75
    %p77 = scmp.ne.s32.totalorder %s68, %s69
    %p78 = scmp.eq.s32.totalorder %s16, 0
    %p79 = por %p77, %p78
    %p80 = scmp.ne.s32.totalorder %s68, %s69
    %p81 = scmp.eq.s32.totalorder %s17, 1
    %p82 = por %p80, %p81
    %p84 = scmp.ne.s32.totalorder %s69, %s83
    %p85 = scmp.eq.s32.totalorder %s17, 0
    %p86 = por %p84, %p85
    %s88 = sadd.s32 %s87, 1
    %p91 = scmp.eq.s32.totalorder %s11, 1
    %p92 = scmp.ne.s32.totalorder %s87, %s89
    %p93 = scmp.eq.s32.totalorder %s11, 0
    %p94 = por %p92, %p93
    %p95 = scmp.ne.s32.totalorder %s87, %s89
    %p96 = scmp.eq.s32.totalorder %s16, 1
    %p97 = por %p95, %p96
    %p98 = scmp.ne.s32.totalorder %s89, %s90
    %p99 = scmp.eq.s32.totalorder %s16, 0
    %p100 = por %p98, %p99
    %p101 = scmp.ne.s32.totalorder %s89, %s90
    %p102 = scmp.eq.s32.totalorder %s17, 1
    %p103 = por %p101, %p102
    %p105 = scmp.ne.s32.totalorder %s90, %s104
    %p106 = scmp.eq.s32.totalorder %s17, 0
    %p107 = por %p105, %p106
    %s109 = sadd.s32 %s108, 1
    %p112 = scmp.eq.s32.totalorder %s11, 1
    %p113 = scmp.ne.s32.totalorder %s108, %s110
    %p114 = scmp.eq.s32.totalorder %s11, 0
    %p115 = por %p113, %p114
    %p116 = scmp.ne.s32.totalorder %s108, %s110
    %p117 = scmp.eq.s32.totalorder %s16, 1
    %p118 = por %p116, %p117
    %p119 = scmp.ne.s32.totalorder %s110, %s111
    %p120 = scmp.eq.s32.totalorder %s16, 0
    %p121 = por %p119, %p120
    %p122 = scmp.ne.s32.totalorder %s110, %s111
    %p123 = scmp.eq.s32.totalorder %s17, 1
    %p124 = por %p122, %p123
    %p126 = scmp.ne.s32.totalorder %s111, %s125
    %p127 = scmp.eq.s32.totalorder %s17, 0
    %p128 = por %p126, %p127
    %s129 = ssub.s32 %s11, %s18
    %p130 = scmp.eq.s32.totalorder %s129, 0
    %s132 = sadd.s32 %s131, 1
    %s133 = scalar_select %p130, %s131, %s132
    %p136 = pneg %p130
    %p137 = scmp.eq.s32.totalorder %s11, 1
    %p138 = por %p136, %p137
    %p139 = scmp.ne.s32.totalorder %s131, %s134
    %p140 = scmp.eq.s32.totalorder %s11, 0
    %p141 = por %p139, %p140
    %p142 = scmp.ne.s32.totalorder %s131, %s134
    %p143 = scmp.eq.s32.totalorder %s16, 1
    %p144 = por %p142, %p143
    %p145 = scmp.ne.s32.totalorder %s134, %s135
    %p146 = scmp.eq.s32.totalorder %s16, 0
    %p147 = por %p145, %p146
    %p148 = scmp.ne.s32.totalorder %s134, %s135
    %p149 = scmp.eq.s32.totalorder %s17, 1
    %p150 = por %p148, %p149
    %p152 = scmp.ne.s32.totalorder %s135, %s151
    %p153 = scmp.eq.s32.totalorder %s17, 0
    %p154 = por %p152, %p153
    %p155 = scmp.le.s32.totalorder 1, %s11
    %p156 = scmp.lt.s32.totalorder %s11, 3
    %p157 = pnand %p155, %p156
    %p158 = pneg %p157
    // Predicated region
    $region9: #{dense_block.3} parent=5 // pred_check
      _
    $region10: #{dense_block.3} parent=5 // pred_check_branch
      %160 = sbr.rel (%p157) target = $region12
    $region11: #{dense_block.3} parent=5 // pred_region
      %s161 = ssub.s32 %s11, 1
      // Predicated region
      $region13: #{dense_block.3} parent=11 // pred_check
        %p162 = pneg %p58
      $region14: #{dense_block.3} parent=11 // pred_check_branch
        %164 = sbr.rel (%p162) target = $region16
      $region15: #{dense_block.3} parent=11 // pred_region
        _
      $region16: #{dense_block.3} parent=11 // pred_fallthru
        _
      // Predicated region
      $region17: #{dense_block.3} parent=11 // pred_check
        %p165 = pneg %p79
      $region18: #{dense_block.3} parent=11 // pred_check_branch
        %167 = sbr.rel (%p165) target = $region20
      $region19: #{dense_block.3} parent=11 // pred_region
        _
      $region20: #{dense_block.3} parent=11 // pred_fallthru
        _
      // Predicated region
      $region21: #{dense_block.3} parent=11 // pred_check
        %p168 = pneg %p100
      $region22: #{dense_block.3} parent=11 // pred_check_branch
        %170 = sbr.rel (%p168) target = $region24
      $region23: #{dense_block.3} parent=11 // pred_region
        _
      $region24: #{dense_block.3} parent=11 // pred_fallthru
        _
      // Predicated region
      $region25: #{dense_block.3} parent=11 // pred_check
        %p171 = pneg %p121
      $region26: #{dense_block.3} parent=11 // pred_check_branch
        %173 = sbr.rel (%p171) target = $region28
      $region27: #{dense_block.3} parent=11 // pred_region
        _
      $region28: #{dense_block.3} parent=11 // pred_fallthru
        _
    $region12: #{dense_block.3} parent=5 // pred_fallthru
      _
    %p174 = scmp.lt.s32.totalorder %s11, 2
    // Predicated region
    $region29: #{dense_block.3} parent=5 // pred_check
      %p175 = pneg %p174
    $region30: #{dense_block.3} parent=5 // pred_check_branch
      %177 = sbr.rel (%p175) target = $region32
    $region31: #{dense_block.3} parent=5 // pred_region
      // Predicated region
      $region33: #{dense_block.3} parent=31 // pred_check
        %p178 = pneg %p31
      $region34: #{dense_block.3} parent=31 // pred_check_branch
        %180 = sbr.rel (%p178) target = $region36
      $region35: #{dense_block.3} parent=31 // pred_region
        %s181 = smul.u32 2, %s11
        %p182 = scmp.lt.s32.totalorder %s181, 3
        %s183 = scalar_select %p182, %s181, 3
        %s184 = smul.addr %s183, 4
        %s185 = scalar_lea.vmem %s0, %s184
        %s186 = smul.u32 2, %s11
      $region36: #{dense_block.3} parent=31 // pred_fallthru
        _
    $region32: #{dense_block.3} parent=5 // pred_fallthru
      _
    %p187 = scmp.le.s32.totalorder 1, %s11
    %p188 = scmp.lt.s32.totalorder %s11, 3
    %p189 = pnand %p187, %p188
    %p190 = pneg %p189
    // Predicated region
    $region37: #{dense_block.3} parent=5 // pred_check
      _
    $region38: #{dense_block.3} parent=5 // pred_check_branch
      %192 = sbr.rel (%p189) target = $region40
    $region39: #{dense_block.3} parent=5 // pred_region
      %s193 = ssub.s32 %s11, 1
      %s194 = smul.u32 2, %s16
      %p195 = scmp.lt.s32.totalorder %s194, 3
      %s196 = scalar_select %p195, %s194, 3
      %s197 = smul.addr %s196, 4
      %s198 = scalar_lea.vmem %s0, %s197
      %p199 = pneg %p37
      %p200 = pneg %p34
      %p201 = pneg %p58
      %p202 = pneg %p55
      %p203 = pneg %p79
      %p204 = pneg %p76
      %p205 = pneg %p100
      %p206 = pneg %p97
      %p207 = pneg %p121
      %p208 = pneg %p118
      %p209 = pneg %p147
      %p210 = pneg %p144
      %s211 = smul.u32 2, %s16
      %p212 = scmp.lt.s32.totalorder %s211, 3
      %s213 = scalar_select %p212, %s211, 3
      %s214 = smul.addr %s213, 8
      %s215 = scalar_lea.vmem %s5, %s214
      %s216 = smul.u32 2, %s16
      %p217 = scmp.lt.s32.totalorder %s216, 3
      %s218 = scalar_select %p217, %s216, 3
      %s219 = smul.addr %s218, 4
      %s220 = scalar_lea.vmem %s0, %s219
      %s221 = smul.u32 2, %s16
      %s222 = smul.u32 2, %s16
      %p223 = scmp.lt.s32.totalorder %s222, 3
      %s224 = scalar_select %p223, %s222, 3
      %s225 = smul.addr %s224, 8
      %s226 = scalar_lea.vmem %s5, %s225
      %s227 = smul.u32 2, %s16
      %v228 = vld [vmem:[%s220] sm:$0xff]
      %v230 = vcombine.high %v228, %v228
      %232 = vst [vmem:[%s226] sm:$0xf] %v228
      %233 = vst [vmem:[%s226 + $0x8] sm:$0xf] %v230
      %v234 = vld [vmem:[%s1] sm:$0xf]
      %236 = vset.pattern.permute.xlu0 0
      %237 = vperm.xlu0 %236, %v234
      %v238 = vpop.permute.xlu0 %237
      %v240 = vunpack.c.l.s4 839922192
      %v241 = vunpack.c.0.s8 %v240
      %v242 = vlaneseq
      %v243 = vshrl.u32 %v242, 7
      %v244 = vsub.s32 %v241, %v243
      %v245 = vrot.slane %v238, %v244
      %v247 = vmul.f32 %v228, %v245
      %v248 = vld [vmem:[%s2] sm:$0xf]
      %250 = vset.pattern.permute.xlu0 0
      %251 = vperm.xlu0 %250, %v248
      %v252 = vpop.permute.xlu0 %251
      %v254 = vunpack.c.l.s4 839922192
      %v255 = vunpack.c.0.s8 %v254
      %v256 = vlaneseq
      %v257 = vshrl.u32 %v256, 7
      %v258 = vsub.s32 %v255, %v257
      %v259 = vrot.slane %v252, %v258
      %v261 = vadd.f32 %v247, %v259
      %v262 = vmax.f32 %v261, 0.0
      %v263 = vlaneseq
      %v264 = vand.u32 %v263, 127
      %v265 = vadd.s32 %v264, 128
      %vm266 = vcmp.lt.s32.totalorder %v264, 0
      %v267 = vsub.s32 0, %v264
      %v268 = vsel %vm266, %v267, %v264
      %v269 = vshrl.u32 %v268, 4
      %v270 = vand.u32 %v268, 15
      %v271 = vsub.s32 0, %v270
      %v272 = vsel %vm266, %v271, %v270
      %vm273 = vcmp.lt.s32.totalorder %v265, 0
      %v274 = vsub.s32 0, %v265
      %v275 = vsel %vm273, %v274, %v265
      %v276 = vshrl.u32 %v275, 4
      %v277 = vand.u32 %v275, 15
      %v278 = vsub.s32 0, %v277
      %v279 = vsel %vm273, %v278, %v277
      %vm280 = vcmp.ne.s32.totalorder %v272, 0
      %vm281 = vcmp.ne.s32.totalorder %v279, 0
      %vm282 = vcmp.lt.s32.totalorder %v272, 0
      %vm283 = vcmp.lt.s32.totalorder %v279, 0
      %vm284 = vmand %vm282, %vm280
      %vm285 = vmand %vm283, %vm281
      %v286 = vadd.s32 %v272, 16
      %v287 = vadd.s32 %v279, 16
      %v288 = vsel %vm284, %v286, %v272
      %v289 = vsel %vm285, %v287, %v279
      %v291 = vcombine.high %v262, %v262
      %293 = vrot.lane.b32.xlu0 %v262, 4
      %v294 = vpop.permute.xlu0 %293
      %295 = vrot.lane.b32.xlu0 %v291, 4
      %v296 = vpop.permute.xlu0 %295
      %vm297 = vcmp.lt.s32.totalorder %v264, 4
      %v298 = vsel %vm297, %v294, %v296
      %v299 = vsel %vm297, %v296, %v294
      %v300 = vadd.s32 %v288, 4294967292
      %v301 = vadd.s32 %v289, 4294967292
      %vm302 = vcmp.ge.s32.totalorder %v300, 0
      %vm303 = vcmp.ge.s32.totalorder %v301, 0
      %vm304 = vcmp.lt.s32.totalorder %v300, 16
      %vm305 = vcmp.lt.s32.totalorder %v301, 16
      %vm306 = vmand %vm302, %vm304
      %vm307 = vmand %vm303, %vm305
      %v308 = vsel %vm306, 1, 0
      %v309 = vsel %vm307, 1, 0
      %vm310 = vcmp.eq.s32.totalorder %v308, 1
      %vm311 = vcmp.eq.s32.totalorder %v309, 1
      %v312 = vsel %vm310, %v299, 0.0
      %v313 = vsel %vm311, %v298, 0.0
      %314 = vst [vmem:[#allocation2] sm:$0xf] %v312
      %315 = vst [vmem:[#allocation2 + $0x8] sm:$0xf] %v313
      %316 = vrot.lane.b32.xlu0 %v262, 3
      %v317 = vpop.permute.xlu0 %316
      %318 = vrot.lane.b32.xlu0 %v291, 3
      %v319 = vpop.permute.xlu0 %318
      %vm320 = vcmp.lt.s32.totalorder %v264, 3
      %v321 = vsel %vm320, %v317, %v319
      %v322 = vsel %vm320, %v319, %v317
      %v323 = vadd.s32 %v288, 4294967293
      %v324 = vadd.s32 %v289, 4294967293
      %vm325 = vcmp.ge.s32.totalorder %v323, 0
      %vm326 = vcmp.ge.s32.totalorder %v324, 0
      %vm327 = vcmp.lt.s32.totalorder %v323, 16
      %vm328 = vcmp.lt.s32.totalorder %v324, 16
      %vm329 = vmand %vm325, %vm327
      %vm330 = vmand %vm326, %vm328
      %v331 = vsel %vm329, 1, 0
      %v332 = vsel %vm330, 1, 0
      %vm333 = vcmp.eq.s32.totalorder %v331, 1
      %vm334 = vcmp.eq.s32.totalorder %v332, 1
      %v335 = vsel %vm333, %v322, 0.0
      %v336 = vsel %vm334, %v321, 0.0
      %v339 = vrot.slane %v335, 4
      %v340 = vrot.slane %v336, 4
      %343 = vst [vmem:[#allocation2] sm:$0xf0] %v339
      %344 = vst [vmem:[#allocation2 + $0x8] sm:$0xf0] %v340
      %345 = vrot.lane.b32.xlu0 %v262, 2
      %v346 = vpop.permute.xlu0 %345
      %347 = vrot.lane.b32.xlu0 %v291, 2
      %v348 = vpop.permute.xlu0 %347
      %vm349 = vcmp.lt.s32.totalorder %v264, 2
      %v350 = vsel %vm349, %v346, %v348
      %v351 = vsel %vm349, %v348, %v346
      %v352 = vadd.s32 %v288, 4294967294
      %v353 = vadd.s32 %v289, 4294967294
      %vm354 = vcmp.ge.s32.totalorder %v352, 0
      %vm355 = vcmp.ge.s32.totalorder %v353, 0
      %vm356 = vcmp.lt.s32.totalorder %v352, 16
      %vm357 = vcmp.lt.s32.totalorder %v353, 16
      %vm358 = vmand %vm354, %vm356
      %vm359 = vmand %vm355, %vm357
      %v360 = vsel %vm358, 1, 0
      %v361 = vsel %vm359, 1, 0
      %vm362 = vcmp.eq.s32.totalorder %v360, 1
      %vm363 = vcmp.eq.s32.totalorder %v361, 1
      %v364 = vsel %vm362, %v351, 0.0
      %v365 = vsel %vm363, %v350, 0.0
      %366 = vst [vmem:[#allocation2 + $0x10] sm:$0xf] %v364
      %367 = vst [vmem:[#allocation2 + $0x18] sm:$0xf] %v365
      %368 = vrot.lane.b32.xlu0 %v262, 1
      %v369 = vpop.permute.xlu0 %368
      %370 = vrot.lane.b32.xlu0 %v291, 1
      %v371 = vpop.permute.xlu0 %370
      %vm372 = vcmp.lt.s32.totalorder %v264, 1
      %v373 = vsel %vm372, %v369, %v371
      %v374 = vsel %vm372, %v371, %v369
      %v375 = vadd.s32 %v288, 4294967295
      %v376 = vadd.s32 %v289, 4294967295
      %vm377 = vcmp.ge.s32.totalorder %v375, 0
      %vm378 = vcmp.ge.s32.totalorder %v376, 0
      %vm379 = vcmp.lt.s32.totalorder %v375, 16
      %vm380 = vcmp.lt.s32.totalorder %v376, 16
      %vm381 = vmand %vm377, %vm379
      %vm382 = vmand %vm378, %vm380
      %v383 = vsel %vm381, 1, 0
      %v384 = vsel %vm382, 1, 0
      %vm385 = vcmp.eq.s32.totalorder %v383, 1
      %vm386 = vcmp.eq.s32.totalorder %v384, 1
      %v387 = vsel %vm385, %v374, 0.0
      %v388 = vsel %vm386, %v373, 0.0
      %v391 = vrot.slane %v387, 4
      %v392 = vrot.slane %v388, 4
      %395 = vst [vmem:[#allocation2 + $0x10] sm:$0xf0] %v391
      %396 = vst [vmem:[#allocation2 + $0x18] sm:$0xf0] %v392
      %vm397 = vcmp.ge.s32.totalorder %v288, 0
      %vm398 = vcmp.ge.s32.totalorder %v289, 0
      %vm399 = vcmp.lt.s32.totalorder %v288, 16
      %vm400 = vcmp.lt.s32.totalorder %v289, 16
      %vm401 = vmand %vm397, %vm399
      %vm402 = vmand %vm398, %vm400
      %v403 = vsel %vm401, 1, 0
      %v404 = vsel %vm402, 1, 0
      %vm405 = vcmp.eq.s32.totalorder %v403, 1
      %vm406 = vcmp.eq.s32.totalorder %v404, 1
      %v407 = vsel %vm405, %v262, 0.0
      %v408 = vsel %vm406, %v291, 0.0
      %409 = vst [vmem:[#allocation2 + $0x20] sm:$0xf] %v407
      %410 = vst [vmem:[#allocation2 + $0x28] sm:$0xf] %v408
      %411 = vrot.lane.b32.xlu0 %v262, 127
      %v412 = vpop.permute.xlu0 %411
      %413 = vrot.lane.b32.xlu0 %v291, 127
      %v414 = vpop.permute.xlu0 %413
      %vm415 = vcmp.lt.s32.totalorder %v264, 127
      %v416 = vsel %vm415, %v412, %v414
      %v417 = vsel %vm415, %v414, %v412
      %v418 = vadd.s32 %v288, 1
      %v419 = vadd.s32 %v289, 1
      %vm420 = vcmp.ge.s32.totalorder %v418, 0
      %vm421 = vcmp.ge.s32.totalorder %v419, 0
      %vm422 = vcmp.lt.s32.totalorder %v418, 16
      %vm423 = vcmp.lt.s32.totalorder %v419, 16
      %vm424 = vmand %vm420, %vm422
      %vm425 = vmand %vm421, %vm423
      %v426 = vsel %vm424, 1, 0
      %v427 = vsel %vm425, 1, 0
      %vm428 = vcmp.eq.s32.totalorder %v426, 1
      %vm429 = vcmp.eq.s32.totalorder %v427, 1
      %v430 = vsel %vm428, %v416, 0.0
      %v431 = vsel %vm429, %v417, 0.0
      %v434 = vrot.slane %v430, 4
      %v435 = vrot.slane %v431, 4
      %438 = vst [vmem:[#allocation2 + $0x20] sm:$0xf0] %v434
      %439 = vst [vmem:[#allocation2 + $0x28] sm:$0xf0] %v435
      %440 = vrot.lane.b32.xlu0 %v262, 126
      %v441 = vpop.permute.xlu0 %440
      %442 = vrot.lane.b32.xlu0 %v291, 126
      %v443 = vpop.permute.xlu0 %442
      %vm444 = vcmp.lt.s32.totalorder %v264, 126
      %v445 = vsel %vm444, %v441, %v443
      %v446 = vsel %vm444, %v443, %v441
      %v447 = vadd.s32 %v288, 2
      %v448 = vadd.s32 %v289, 2
      %vm449 = vcmp.ge.s32.totalorder %v447, 0
      %vm450 = vcmp.ge.s32.totalorder %v448, 0
      %vm451 = vcmp.lt.s32.totalorder %v447, 16
      %vm452 = vcmp.lt.s32.totalorder %v448, 16
      %vm453 = vmand %vm449, %vm451
      %vm454 = vmand %vm450, %vm452
      %v455 = vsel %vm453, 1, 0
      %v456 = vsel %vm454, 1, 0
      %vm457 = vcmp.eq.s32.totalorder %v455, 1
      %vm458 = vcmp.eq.s32.totalorder %v456, 1
      %v459 = vsel %vm457, %v445, 0.0
      %v460 = vsel %vm458, %v446, 0.0
      %461 = vst [vmem:[#allocation2 + $0x30] sm:$0xf] %v459
      %462 = vst [vmem:[#allocation2 + $0x38] sm:$0xf] %v460
      %463 = vrot.lane.b32.xlu0 %v262, 125
      %v464 = vpop.permute.xlu0 %463
      %465 = vrot.lane.b32.xlu0 %v291, 125
      %v466 = vpop.permute.xlu0 %465
      %vm467 = vcmp.lt.s32.totalorder %v264, 125
      %v468 = vsel %vm467, %v464, %v466
      %v469 = vsel %vm467, %v466, %v464
      %v470 = vadd.s32 %v288, 3
      %v471 = vadd.s32 %v289, 3
      %vm472 = vcmp.ge.s32.totalorder %v470, 0
      %vm473 = vcmp.ge.s32.totalorder %v471, 0
      %vm474 = vcmp.lt.s32.totalorder %v470, 16
      %vm475 = vcmp.lt.s32.totalorder %v471, 16
      %vm476 = vmand %vm472, %vm474
      %vm477 = vmand %vm473, %vm475
      %v478 = vsel %vm476, 1, 0
      %v479 = vsel %vm477, 1, 0
      %vm480 = vcmp.eq.s32.totalorder %v478, 1
      %vm481 = vcmp.eq.s32.totalorder %v479, 1
      %v482 = vsel %vm480, %v468, 0.0
      %v483 = vsel %vm481, %v469, 0.0
      %v486 = vrot.slane %v482, 4
      %v487 = vrot.slane %v483, 4
      %490 = vst [vmem:[#allocation2 + $0x30] sm:$0xf0] %v486
      %491 = vst [vmem:[#allocation2 + $0x38] sm:$0xf0] %v487
      %492 = vrot.lane.b32.xlu0 %v262, 124
      %v493 = vpop.permute.xlu0 %492
      %494 = vrot.lane.b32.xlu0 %v291, 124
      %v495 = vpop.permute.xlu0 %494
      %vm496 = vcmp.lt.s32.totalorder %v264, 124
      %v497 = vsel %vm496, %v493, %v495
      %v498 = vsel %vm496, %v495, %v493
      %v499 = vadd.s32 %v288, 4
      %v500 = vadd.s32 %v289, 4
      %vm501 = vcmp.ge.s32.totalorder %v499, 0
      %vm502 = vcmp.ge.s32.totalorder %v500, 0
      %vm503 = vcmp.lt.s32.totalorder %v499, 16
      %vm504 = vcmp.lt.s32.totalorder %v500, 16
      %vm505 = vmand %vm501, %vm503
      %vm506 = vmand %vm502, %vm504
      %v507 = vsel %vm505, 1, 0
      %v508 = vsel %vm506, 1, 0
      %vm509 = vcmp.eq.s32.totalorder %v507, 1
      %vm510 = vcmp.eq.s32.totalorder %v508, 1
      %v511 = vsel %vm509, %v497, 0.0
      %v512 = vsel %vm510, %v498, 0.0
      %513 = vst [vmem:[#allocation2 + $0x40] sm:$0xf] %v511
      %514 = vst [vmem:[#allocation2 + $0x48] sm:$0xf] %v512
      %v515 = vld [vmem:[%s3] sm:$0xf]
      %v516 = vld [vmem:[#allocation2] sm:$0xff]
      %v517 = vld [vmem:[#allocation2 + $0x8] sm:$0xff]
      %v518 = vld [vmem:[#allocation2 + $0x10] sm:$0xff]
      %v519 = vld [vmem:[#allocation2 + $0x18] sm:$0xff]
      %v520 = vld [vmem:[#allocation2 + $0x20] sm:$0xff]
      %v521 = vld [vmem:[#allocation2 + $0x28] sm:$0xff]
      %v522 = vld [vmem:[#allocation2 + $0x30] sm:$0xff]
      %v523 = vld [vmem:[#allocation2 + $0x38] sm:$0xff]
      %v524 = vld [vmem:[#allocation2 + $0x40] sm:$0xf]
      %v525 = vld [vmem:[#allocation2 + $0x48] sm:$0xf]
      %v526 = vld [vmem:[%s4] sm:$0xf]
      %528 = vset.pattern.permute.xlu0 0
      %529 = vperm.xlu0 %528, %v526
      %v530 = vpop.permute.xlu0 %529
      %vm532 = vcmask 293888
      %v534 = vsel %vm532, %v515, 0
      %vm536 = vcmask 1043456
      %v538 = vsel %vm536, %v524, 0
      %v541 = vsel %vm536, %v525, 0
      %543 = vmatprep.subr.mxu0 0.0
      %544 = vmatpush1.msra.mxu0 0.0
      %545 = vmatprep.subr.mxu0 0.0
      %546 = vmatpush1.msra.mxu0 0.0
      %547 = vmatprep.subr.mxu0 0.0
      %548 = vmatpush1.msra.mxu0 0.0
      %549 = vmatprep.subr.mxu0 0.0
      %550 = vmatpush1.msra.mxu0 0.0
      %551 = vmatprep.subr.mxu0 0.0
      %552 = vmatpush1.msra.mxu0 0.0
      %553 = vmatprep.subr.mxu0 0.0
      %554 = vmatpush1.msra.mxu0 0.0
      %555 = vmatprep.subr.mxu0 0.0
      %556 = vmatpush1.msra.mxu0 0.0
      %557 = vmatprep.subr.mxu0 0.0
      %558 = vmatpush1.msra.mxu0 0.0
      %559 = vmatprep.subr.mxu0 0.0
      %560 = vmatpush1.msra.mxu0 0.0
      %561 = vmatprep.subr.mxu0 0.0
      %562 = vmatpush1.msra.mxu0 0.0
      %563 = vmatprep.subr.mxu0 0.0
      %564 = vmatpush1.msra.mxu0 0.0
      %565 = vmatprep.subr.mxu0 %v541
      %566 = vmatpush1.msra.mxu0 %v538
      %567 = vmatprep.subr.mxu0 %v523
      %568 = vmatpush1.msra.mxu0 %v522
      %569 = vmatprep.subr.mxu0 %v521
      %570 = vmatpush1.msra.mxu0 %v520
      %571 = vmatprep.subr.mxu0 %v519
      %572 = vmatpush1.msra.mxu0 %v518
      %573 = vmatprep.subr.mxu0 %v517
      %574 = vmatpush1.msra.mxu0 %v516
      %575 = vmatprep.subr.mxu0 0.0
      %576 = vmatpush2.msra.mxu0 0.0
      %577 = vmatprep.subr.mxu0 0.0
      %578 = vmatpush2.msra.mxu0 0.0
      %579 = vmatprep.subr.mxu0 0.0
      %580 = vmatpush2.msra.mxu0 0.0
      %581 = vmatprep.subr.mxu0 0.0
      %582 = vmatpush2.msra.mxu0 0.0
      %583 = vmatprep.subr.mxu0 0.0
      %584 = vmatpush2.msra.mxu0 0.0
      %585 = vmatprep.subr.mxu0 0.0
      %586 = vmatpush2.msra.mxu0 0.0
      %587 = vmatprep.subr.mxu0 0.0
      %588 = vmatpush2.msra.mxu0 0.0
      %589 = vmatprep.subr.mxu0 0.0
      %590 = vmatpush2.msra.mxu0 0.0
      %591 = vmatprep.subr.mxu0 0.0
      %592 = vmatpush2.msra.mxu0 0.0
      %593 = vmatprep.subr.mxu0 0.0
      %594 = vmatpush2.msra.mxu0 0.0
      %595 = vmatprep.subr.mxu0 0.0
      %596 = vmatpush2.msra.mxu0 0.0
      %597 = vmatprep.subr.mxu0 0.0
      %598 = vmatpush2.msra.mxu0 0.0
      %599 = vmatprep.subr.mxu0 0.0
      %600 = vmatpush2.msra.mxu0 0.0
      %601 = vmatprep.subr.mxu0 0.0
      %602 = vmatpush2.msra.mxu0 0.0
      %603 = vmatprep.subr.mxu0 0.0
      %604 = vmatpush2.msra.mxu0 0.0
      %605 = vmatprep.subr.mxu0 0.0
      %606 = vmatpush2.msra.mxu0 0.0
      %607 = vmatprep.mubr.f32.mxu0 0.0
      %608 = vmatmul.mubr.f32.gmra.mxu0 %v534
      %v609 = vpop.f32.mrf.mxu0
      %v610 = vadd.f32 %v530, %v609
      %v611 = vpop.f32.mrf.mxu0
      %v612 = vadd.f32 %v530, %v611
      %613 = vdwg.mxu0
      %v616 = vrot.slane %v610, 4
      %v617 = vrot.slane %v612, 4
      %620 = vst [vmem:[%s226] sm:$0xf0] %v616
      %621 = vst [vmem:[%s226 + $0x8] sm:$0xf0] %v617
      %s622 = smul.u32 2, %s16
      %p623 = scmp.lt.s32.totalorder %s622, 3
      %s624 = scalar_select %p623, %s622, 3
      %s625 = smul.addr %s624, 8
      %s626 = scalar_lea.vmem %s5, %s625
      // Predicated region
      $region41: #{dense_block.3} parent=39 // pred_check
        %p627 = pneg %p144
      $region42: #{dense_block.3} parent=39 // pred_check_branch
        %629 = sbr.rel (%p627) target = $region44
      $region43: #{dense_block.3} parent=39 // pred_region
        %s630 = smul.u32 2, %s16
      $region44: #{dense_block.3} parent=39 // pred_fallthru
        _
    $region40: #{dense_block.3} parent=5 // pred_fallthru
      _
    %p631 = scmp.le.s32.totalorder 2, %s11
    // Predicated region
    $region45: #{dense_block.3} parent=5 // pred_check
      %p632 = pneg %p631
    $region46: #{dense_block.3} parent=5 // pred_check_branch
      %634 = sbr.rel (%p632) target = $region48
    $region47: #{dense_block.3} parent=5 // pred_region
      %s635 = ssub.s32 %s11, 2
      // Predicated region
      $region49: #{dense_block.3} parent=47 // pred_check
        %p636 = pneg %p150
      $region50: #{dense_block.3} parent=47 // pred_check_branch
        %638 = sbr.rel (%p636) target = $region52
      $region51: #{dense_block.3} parent=47 // pred_region
        %s639 = smul.u32 2, %s17
        %p640 = scmp.lt.s32.totalorder %s639, 3
        %s641 = scalar_select %p640, %s639, 3
        %s642 = smul.addr %s641, 8
        %s643 = scalar_lea.vmem %s5, %s642
      $region52: #{dense_block.3} parent=47 // pred_fallthru
        _
    $region48: #{dense_block.3} parent=5 // pred_fallthru
      _
  $region6: #{dense_block.3} parent=0 // loop_footer
    %s15 = sadd.s32 1, %s11
  $region7: #{dense_block.3} parent=0 // loop_footer_branch
    %10 = sbr.rel target = $region3
  $region8: #{dense_block.3} parent=0 // loop_exit
    _

// kernel: dense_block.5
$region0: #{dense_block.5}
  #allocation0 [shape = 'u32[]', space=smem, size = 0x4, offset = 0x4, fixed_abs, tag = 'smem constant byte address 0x4 - core index']
  #allocation1 [shape = 'u32[144,128]{1,0:T(1,128)}', space=vmem, size = 0x12000, scoped, tag = 'internal scratch']
  #allocation2 [shape = 'f32[108,256]{1,0:T(8,128)}', space=vmem, size = 0x1c000, scoped, tag = 'scratch operand']
  %s0 = inlined_call_operand.vmem [shape: f32[12,512], index: 0, kind: input, shape index: {}]
  %s1 = inlined_call_operand.vmem [shape: f32[12,1], index: 1, kind: input, shape index: {}]
  %s2 = inlined_call_operand.vmem [shape: f32[12,1], index: 2, kind: input, shape index: {}]
  %s3 = inlined_call_operand.vmem [shape: f32[4,108], index: 3, kind: input, shape index: {}]
  %s4 = inlined_call_operand.vmem [shape: f32[4,1], index: 4, kind: input, shape index: {}]
  %s5 = inlined_call_operand.vmem [shape: f32[16,512], index: 5, kind: output, shape index: {}]
  %s6 = sld [smem:[#allocation0]]
  $region95: #{dense_block.5} parent=0
    _
  %s8 = ssub.s32 1, %s6
  %s9 = scalar_select 0, %s8, %s6
  $region1: #{dense_block.5} parent=0
    #allocation3 [shape = 'u8[32768]{0}', space=vmem, size = 0x8000, scoped, tag = 'input window, operand 0']
    #allocation4 [shape = 'u8[32768]{0}', space=vmem, size = 0x8000, scoped, tag = 'output window, operand 0']
    loop: start=0, step=1, limit=4
    $region2: #{dense_block.5} parent=1 // loop_pre_header
      _
    $region3: #{dense_block.5} parent=1 // loop_header
      %s11 = sphi 0, %s15
      %p12 = scmp.ge.s32.totalorder %s11, 4
      %s21 = sphi 0, %s23
      %s24 = sphi 0, %s21
      %s25 = sphi 0, %s24
      %s41 = sphi 0, %s25
      %s45 = sphi 0, %s45
      %s47 = sphi 0, %s45
      %s48 = sphi 0, %s47
      %s62 = sphi 0, %s48
      %s66 = sphi 0, %s66
      %s68 = sphi 0, %s66
      %s69 = sphi 0, %s68
      %s83 = sphi 0, %s69
      %s87 = sphi 0, %s87
      %s89 = sphi 0, %s87
      %s90 = sphi 0, %s89
      %s104 = sphi 0, %s90
      %s108 = sphi 0, %s108
      %s110 = sphi 0, %s108
      %s111 = sphi 0, %s110
      %s125 = sphi 0, %s111
      %s131 = sphi 0, %s133
      %s134 = sphi 0, %s131
      %s135 = sphi 0, %s134
      %s151 = sphi 0, %s135
    $region4: #{dense_block.5} parent=1 // loop_header_branch
      %14 = sbr.rel (%p12) target = $region8
    $region5: #{dense_block.5} parent=1 // loop_body
      %s16 = ssub.s32 %s11, 1
      %s17 = ssub.s32 %s11, 2
      %s18 = sadd.s32 %s11, 1
      %s19 = ssub.s32 %s11, %s18
      %p20 = scmp.eq.s32.totalorder %s19, 0
      %s22 = sadd.s32 %s21, 1
      %s23 = scalar_select %p20, %s21, %s22
      %p26 = pneg %p20
      %p27 = scmp.eq.s32.totalorder %s11, 1
      %p28 = por %p26, %p27
      %p29 = scmp.ne.s32.totalorder %s21, %s24
      %p30 = scmp.eq.s32.totalorder %s11, 0
      %p31 = por %p29, %p30
      %p32 = scmp.ne.s32.totalorder %s21, %s24
      %p33 = scmp.eq.s32.totalorder %s16, 1
      %p34 = por %p32, %p33
      %p35 = scmp.ne.s32.totalorder %s24, %s25
      %p36 = scmp.eq.s32.totalorder %s16, 0
      %p37 = por %p35, %p36
      %p38 = scmp.ne.s32.totalorder %s24, %s25
      %p39 = scmp.eq.s32.totalorder %s17, 1
      %p40 = por %p38, %p39
      %p42 = scmp.ne.s32.totalorder %s25, %s41
      %p43 = scmp.eq.s32.totalorder %s17, 0
      %p44 = por %p42, %p43
      %s46 = sadd.s32 %s45, 1
      %p49 = scmp.eq.s32.totalorder %s11, 1
      %p50 = scmp.ne.s32.totalorder %s45, %s47
      %p51 = scmp.eq.s32.totalorder %s11, 0
      %p52 = por %p50, %p51
      %p53 = scmp.ne.s32.totalorder %s45, %s47
      %p54 = scmp.eq.s32.totalorder %s16, 1
      %p55 = por %p53, %p54
      %p56 = scmp.ne.s32.totalorder %s47, %s48
      %p57 = scmp.eq.s32.totalorder %s16, 0
      %p58 = por %p56, %p57
      %p59 = scmp.ne.s32.totalorder %s47, %s48
      %p60 = scmp.eq.s32.totalorder %s17, 1
      %p61 = por %p59, %p60
      %p63 = scmp.ne.s32.totalorder %s48, %s62
      %p64 = scmp.eq.s32.totalorder %s17, 0
      %p65 = por %p63, %p64
      %s67 = sadd.s32 %s66, 1
      %p70 = scmp.eq.s32.totalorder %s11, 1
      %p71 = scmp.ne.s32.totalorder %s66, %s68
      %p72 = scmp.eq.s32.totalorder %s11, 0
      %p73 = por %p71, %p72
      %p74 = scmp.ne.s32.totalorder %s66, %s68
      %p75 = scmp.eq.s32.totalorder %s16, 1
      %p76 = por %p74, %p75
      %p77 = scmp.ne.s32.totalorder %s68, %s69
      %p78 = scmp.eq.s32.totalorder %s16, 0
      %p79 = por %p77, %p78
      %p80 = scmp.ne.s32.totalorder %s68, %s69
      %p81 = scmp.eq.s32.totalorder %s17, 1
      %p82 = por %p80, %p81
      %p84 = scmp.ne.s32.totalorder %s69, %s83
      %p85 = scmp.eq.s32.totalorder %s17, 0
      %p86 = por %p84, %p85
      %s88 = sadd.s32 %s87, 1
      %p91 = scmp.eq.s32.totalorder %s11, 1
      %p92 = scmp.ne.s32.totalorder %s87, %s89
      %p93 = scmp.eq.s32.totalorder %s11, 0
      %p94 = por %p92, %p93
      %p95 = scmp.ne.s32.totalorder %s87, %s89
      %p96 = scmp.eq.s32.totalorder %s16, 1
      %p97 = por %p95, %p96
      %p98 = scmp.ne.s32.totalorder %s89, %s90
      %p99 = scmp.eq.s32.totalorder %s16, 0
      %p100 = por %p98, %p99
      %p101 = scmp.ne.s32.totalorder %s89, %s90
      %p102 = scmp.eq.s32.totalorder %s17, 1
      %p103 = por %p101, %p102
      %p105 = scmp.ne.s32.totalorder %s90, %s104
      %p106 = scmp.eq.s32.totalorder %s17, 0
      %p107 = por %p105, %p106
      %s109 = sadd.s32 %s108, 1
      %p112 = scmp.eq.s32.totalorder %s11, 1
      %p113 = scmp.ne.s32.totalorder %s108, %s110
      %p114 = scmp.eq.s32.totalorder %s11, 0
      %p115 = por %p113, %p114
      %p116 = scmp.ne.s32.totalorder %s108, %s110
      %p117 = scmp.eq.s32.totalorder %s16, 1
      %p118 = por %p116, %p117
      %p119 = scmp.ne.s32.totalorder %s110, %s111
      %p120 = scmp.eq.s32.totalorder %s16, 0
      %p121 = por %p119, %p120
      %p122 = scmp.ne.s32.totalorder %s110, %s111
      %p123 = scmp.eq.s32.totalorder %s17, 1
      %p124 = por %p122, %p123
      %p126 = scmp.ne.s32.totalorder %s111, %s125
      %p127 = scmp.eq.s32.totalorder %s17, 0
      %p128 = por %p126, %p127
      %s129 = ssub.s32 %s11, %s18
      %p130 = scmp.eq.s32.totalorder %s129, 0
      %s132 = sadd.s32 %s131, 1
      %s133 = scalar_select %p130, %s131, %s132
      %p136 = pneg %p130
      %p137 = scmp.eq.s32.totalorder %s11, 1
      %p138 = por %p136, %p137
      %p139 = scmp.ne.s32.totalorder %s131, %s134
      %p140 = scmp.eq.s32.totalorder %s11, 0
      %p141 = por %p139, %p140
      %p142 = scmp.ne.s32.totalorder %s131, %s134
      %p143 = scmp.eq.s32.totalorder %s16, 1
      %p144 = por %p142, %p143
      %p145 = scmp.ne.s32.totalorder %s134, %s135
      %p146 = scmp.eq.s32.totalorder %s16, 0
      %p147 = por %p145, %p146
      %p148 = scmp.ne.s32.totalorder %s134, %s135
      %p149 = scmp.eq.s32.totalorder %s17, 1
      %p150 = por %p148, %p149
      %p152 = scmp.ne.s32.totalorder %s135, %s151
      %p153 = scmp.eq.s32.totalorder %s17, 0
      %p154 = por %p152, %p153
      %p155 = scmp.le.s32.totalorder 1, %s11
      %p156 = scmp.lt.s32.totalorder %s11, 3
      %p157 = pnand %p155, %p156
      %p158 = pneg %p157
      // Predicated region
      $region9: #{dense_block.5} parent=5 // pred_check
        _
      $region10: #{dense_block.5} parent=5 // pred_check_branch
        %160 = sbr.rel (%p157) target = $region12
      $region11: #{dense_block.5} parent=5 // pred_region
        %s161 = ssub.s32 %s11, 1
        // Predicated region
        $region13: #{dense_block.5} parent=11 // pred_check
          %p162 = pneg %p58
        $region14: #{dense_block.5} parent=11 // pred_check_branch
          %164 = sbr.rel (%p162) target = $region16
        $region15: #{dense_block.5} parent=11 // pred_region
          _
        $region16: #{dense_block.5} parent=11 // pred_fallthru
          _
        // Predicated region
        $region17: #{dense_block.5} parent=11 // pred_check
          %p165 = pneg %p79
        $region18: #{dense_block.5} parent=11 // pred_check_branch
          %167 = sbr.rel (%p165) target = $region20
        $region19: #{dense_block.5} parent=11 // pred_region
          _
        $region20: #{dense_block.5} parent=11 // pred_fallthru
          _
        // Predicated region
        $region21: #{dense_block.5} parent=11 // pred_check
          %p168 = pneg %p100
        $region22: #{dense_block.5} parent=11 // pred_check_branch
          %170 = sbr.rel (%p168) target = $region24
        $region23: #{dense_block.5} parent=11 // pred_region
          _
        $region24: #{dense_block.5} parent=11 // pred_fallthru
          _
        // Predicated region
        $region25: #{dense_block.5} parent=11 // pred_check
          %p171 = pneg %p121
        $region26: #{dense_block.5} parent=11 // pred_check_branch
          %173 = sbr.rel (%p171) target = $region28
        $region27: #{dense_block.5} parent=11 // pred_region
          _
        $region28: #{dense_block.5} parent=11 // pred_fallthru
          _
      $region12: #{dense_block.5} parent=5 // pred_fallthru
        _
      %p174 = scmp.lt.s32.totalorder %s11, 2
      // Predicated region
      $region29: #{dense_block.5} parent=5 // pred_check
        %p175 = pneg %p174
      $region30: #{dense_block.5} parent=5 // pred_check_branch
        %177 = sbr.rel (%p175) target = $region32
      $region31: #{dense_block.5} parent=5 // pred_region
        // Predicated region
        $region33: #{dense_block.5} parent=31 // pred_check
          %p178 = pneg %p31
        $region34: #{dense_block.5} parent=31 // pred_check_branch
          %180 = sbr.rel (%p178) target = $region36
        $region35: #{dense_block.5} parent=31 // pred_region
          %s181 = sand.u32 %s21, 1
          %s182 = sand.u32 %s21, 1
          %s183 = smul.addr %s182, 32
          %s184 = scalar_lea.vmem [#allocation3], %s183
          %s185 = smul.u32 2, %s11
          %s186 = smul.addr %s185, 8
          %s187 = scalar_lea.vmem %s0, %s186
          // Predicated region
          $region37: #{dense_block.5} parent=35 // pred_check
            _
          $region38: #{dense_block.5} parent=35 // pred_check_branch
            %189 = sbr.rel (0) target = $region40
          $region39: #{dense_block.5} parent=35 // pred_region
            // Predicated region
            $region41: #{dense_block.5} parent=39 // pred_check
              _
            $region42: #{dense_block.5} parent=39 // pred_check_branch
              %191 = sbr.rel (0) target = $region44
            $region43: #{dense_block.5} parent=39 // pred_region
              loop: start=0, step=1, limit=1
              $region45: #{dense_block.5} parent=43 // loop_pre_header
                _
              $region46: #{dense_block.5} parent=43 // loop_header
                %s193 = sphi 0, %s197
                %p194 = scmp.ge.s32.totalorder %s193, 1
                %s198 = sphi %s187, %s187
                %s199 = sphi %s184, %s184
              $region47: #{dense_block.5} parent=43 // loop_header_branch
                %196 = sbr.rel (%p194) target = $region51
              $region48: #{dense_block.5} parent=43 // loop_body
                %v200 = vld [vmem:[%s198] sm:$0xff]
                %201 = vst [vmem:[%s199] sm:$0xff] %v200
                %v202 = vld [vmem:[%s198 + $0x8] sm:$0xff]
                %203 = vst [vmem:[%s199 + $0x8] sm:$0xff] %v202
                %v204 = vld [vmem:[%s198 + $0x20] sm:$0xff]
                %205 = vst [vmem:[%s199 + $0x10] sm:$0xff] %v204
                %v206 = vld [vmem:[%s198 + $0x28] sm:$0xff]
                %207 = vst [vmem:[%s199 + $0x18] sm:$0xff] %v206
              $region49: #{dense_block.5} parent=43 // loop_footer
                %s197 = sadd.s32 1, %s193
              $region50: #{dense_block.5} parent=43 // loop_footer_branch
                %192 = sbr.rel target = $region46
              $region51: #{dense_block.5} parent=43 // loop_exit
                _
            $region44: #{dense_block.5} parent=39 // pred_fallthru
              _
            // Predicated region
            $region52: #{dense_block.5} parent=39 // pred_check
              _
            $region53: #{dense_block.5} parent=39 // pred_check_branch
              %209 = sbr.rel target = $region55
            $region54: #{dense_block.5} parent=39 // pred_region
              _
            $region55: #{dense_block.5} parent=39 // pred_fallthru
              _
          $region40: #{dense_block.5} parent=35 // pred_fallthru
            _
          %210 = vnop
        $region36: #{dense_block.5} parent=31 // pred_fallthru
          _
      $region32: #{dense_block.5} parent=5 // pred_fallthru
        _
      %p211 = scmp.le.s32.totalorder 1, %s11
      %p212 = scmp.lt.s32.totalorder %s11, 3
      %p213 = pnand %p211, %p212
      %p214 = pneg %p213
      // Predicated region
      $region56: #{dense_block.5} parent=5 // pred_check
        _
      $region57: #{dense_block.5} parent=5 // pred_check_branch
        %216 = sbr.rel (%p213) target = $region59
      $region58: #{dense_block.5} parent=5 // pred_region
        %s217 = ssub.s32 %s11, 1
        %s218 = sand.u32 %s24, 1
        %s219 = sand.u32 %s24, 1
        %s220 = smul.addr %s219, 32
        %s221 = scalar_lea.vmem [#allocation3], %s220
        // Predicated region
        $region60: #{dense_block.5} parent=58 // pred_check
          %p222 = pneg %p37
        $region61: #{dense_block.5} parent=58 // pred_check_branch
          %224 = sbr.rel (%p222) target = $region63
        $region62: #{dense_block.5} parent=58 // pred_region
          _
        $region63: #{dense_block.5} parent=58 // pred_fallthru
          _
        %s225 = sand.u32 %s24, 1
        %s226 = sand.u32 %s24, 1
        %s227 = smul.addr %s226, 32
        %s228 = scalar_lea.vmem [#allocation3], %s227
        %p229 = pneg %p37
        %p230 = pneg %p34
        %p231 = pneg %p58
        %p232 = pneg %p55
        %p233 = pneg %p79
        %p234 = pneg %p76
        %p235 = pneg %p100
        %p236 = pneg %p97
        %p237 = pneg %p121
        %p238 = pneg %p118
        %p239 = pneg %p147
        %p240 = pneg %p144
        %s241 = sand.u32 %s134, 1
        %s242 = sand.u32 %s134, 1
        %s243 = smul.addr %s242, 32
        %s244 = scalar_lea.vmem [#allocation4], %s243
        %s245 = smul.u32 2, %s16
        %s246 = smul.u32 2, %s16
        %v247 = vld [vmem:[%s221] sm:$0xff]
        %v248 = vld [vmem:[%s221 + $0x8] sm:$0xff]
        %v249 = vld [vmem:[%s221 + $0x10] sm:$0xf]
        %v250 = vld [vmem:[%s221 + $0x18] sm:$0xf]
        %251 = vst [vmem:[%s244] sm:$0xff] %v247
        %252 = vst [vmem:[%s244 + $0x8] sm:$0xff] %v248
        %253 = vst [vmem:[%s244 + $0x10] sm:$0xf] %v249
        %254 = vst [vmem:[%s244 + $0x18] sm:$0xf] %v250
        %v255 = vld [vmem:[%s1] sm:$0xff]
        %v256 = vld [vmem:[%s1 + $0x8] sm:$0xf]
        %258 = vset.pattern.permute.xlu0 0
        %259 = vperm.xlu0 %258, %v255
        %v260 = vpop.permute.xlu0 %259
        %263 = vset.pattern.permute.xlu0 0
        %264 = vperm.xlu0 %263, %v256
        %v265 = vpop.permute.xlu0 %264
        %v267 = vmul.f32 %v247, %v260
        %v268 = vmul.f32 %v248, %v260
        %v269 = vmul.f32 %v249, %v265
        %v270 = vmul.f32 %v250, %v265
        %v271 = vld [vmem:[%s2] sm:$0xff]
        %v272 = vld [vmem:[%s2 + $0x8] sm:$0xf]
        %274 = vset.pattern.permute.xlu0 0
        %275 = vperm.xlu0 %274, %v271
        %v276 = vpop.permute.xlu0 %275
        %279 = vset.pattern.permute.xlu0 0
        %280 = vperm.xlu0 %279, %v272
        %v281 = vpop.permute.xlu0 %280
        %v283 = vadd.f32 %v267, %v276
        %v284 = vadd.f32 %v268, %v276
        %v285 = vadd.f32 %v269, %v281
        %v286 = vadd.f32 %v270, %v281
        %v287 = vmax.f32 %v283, 0.0
        %v288 = vmax.f32 %v284, 0.0
        %v289 = vmax.f32 %v285, 0.0
        %v290 = vmax.f32 %v286, 0.0
        %v291 = vlaneseq
        %v292 = vand.u32 %v291, 127
        %v293 = vadd.s32 %v292, 128
        %vm294 = vcmp.lt.s32.totalorder %v292, 0
        %v295 = vsub.s32 0, %v292
        %v296 = vsel %vm294, %v295, %v292
        %v297 = vshrl.u32 %v296, 4
        %v298 = vand.u32 %v296, 15
        %v299 = vsub.s32 0, %v298
        %v300 = vsel %vm294, %v299, %v298
        %vm301 = vcmp.lt.s32.totalorder %v293, 0
        %v302 = vsub.s32 0, %v293
        %v303 = vsel %vm301, %v302, %v293
        %v304 = vshrl.u32 %v303, 4
        %v305 = vand.u32 %v303, 15
        %v306 = vsub.s32 0, %v305
        %v307 = vsel %vm301, %v306, %v305
        %vm308 = vcmp.ne.s32.totalorder %v300, 0
        %vm309 = vcmp.ne.s32.totalorder %v307, 0
        %vm310 = vcmp.lt.s32.totalorder %v300, 0
        %vm311 = vcmp.lt.s32.totalorder %v307, 0
        %vm312 = vmand %vm310, %vm308
        %vm313 = vmand %vm311, %vm309
        %v314 = vadd.s32 %v300, 16
        %v315 = vadd.s32 %v307, 16
        %v316 = vsel %vm312, %v314, %v300
        %v317 = vsel %vm313, %v315, %v307
        %318 = vrot.lane.b32.xlu0 %v287, 4
        %v319 = vpop.permute.xlu0 %318
        %320 = vrot.lane.b32.xlu0 %v289, 4
        %v321 = vpop.permute.xlu0 %320
        %322 = vrot.lane.b32.xlu0 %v288, 4
        %v323 = vpop.permute.xlu0 %322
        %324 = vrot.lane.b32.xlu0 %v290, 4
        %v325 = vpop.permute.xlu0 %324
        %vm326 = vcmp.lt.s32.totalorder %v292, 4
        %v327 = vsel %vm326, %v319, %v323
        %v328 = vsel %vm326, %v321, %v325
        %v329 = vsel %vm326, %v323, %v319
        %v330 = vsel %vm326, %v325, %v321
        %v331 = vadd.s32 %v316, 4294967292
        %v332 = vadd.s32 %v317, 4294967292
        %vm333 = vcmp.ge.s32.totalorder %v331, 0
        %vm334 = vcmp.ge.s32.totalorder %v332, 0
        %vm335 = vcmp.lt.s32.totalorder %v331, 16
        %vm336 = vcmp.lt.s32.totalorder %v332, 16
        %vm337 = vmand %vm333, %vm335
        %vm338 = vmand %vm334, %vm336
        %v339 = vsel %vm337, 1, 0
        %v340 = vsel %vm338, 1, 0
        %vm341 = vcmp.eq.s32.totalorder %v339, 1
        %vm342 = vcmp.eq.s32.totalorder %v340, 1
        %v343 = vsel %vm341, %v329, 0.0
        %v344 = vsel %vm342, %v327, 0.0
        %v345 = vsel %vm341, %v330, 0.0
        %v346 = vsel %vm342, %v328, 0.0
        %347 = vst [vmem:[#allocation2] sm:$0xff] %v343
        %348 = vst [vmem:[#allocation2 + $0x8] sm:$0xff] %v344
        %349 = vst [vmem:[#allocation2 + $0x10] sm:$0xf] %v345
        %350 = vst [vmem:[#allocation2 + $0x18] sm:$0xf] %v346
        %351 = vrot.lane.b32.xlu0 %v287, 3
        %v352 = vpop.permute.xlu0 %351
        %353 = vrot.lane.b32.xlu0 %v289, 3
        %v354 = vpop.permute.xlu0 %353
        %355 = vrot.lane.b32.xlu0 %v288, 3
        %v356 = vpop.permute.xlu0 %355
        %357 = vrot.lane.b32.xlu0 %v290, 3
        %v358 = vpop.permute.xlu0 %357
        %vm359 = vcmp.lt.s32.totalorder %v292, 3
        %v360 = vsel %vm359, %v352, %v356
        %v361 = vsel %vm359, %v354, %v358
        %v362 = vsel %vm359, %v356, %v352
        %v363 = vsel %vm359, %v358, %v354
        %v364 = vadd.s32 %v316, 4294967293
        %v365 = vadd.s32 %v317, 4294967293
        %vm366 = vcmp.ge.s32.totalorder %v364, 0
        %vm367 = vcmp.ge.s32.totalorder %v365, 0
        %vm368 = vcmp.lt.s32.totalorder %v364, 16
        %vm369 = vcmp.lt.s32.totalorder %v365, 16
        %vm370 = vmand %vm366, %vm368
        %vm371 = vmand %vm367, %vm369
        %v372 = vsel %vm370, 1, 0
        %v373 = vsel %vm371, 1, 0
        %vm374 = vcmp.eq.s32.totalorder %v372, 1
        %vm375 = vcmp.eq.s32.totalorder %v373, 1
        %v376 = vsel %vm374, %v362, 0.0
        %v377 = vsel %vm375, %v360, 0.0
        %v378 = vsel %vm374, %v363, 0.0
        %v379 = vsel %vm375, %v361, 0.0
        %vm384 = vcmask 1043456
        %v385 = vrot.slane %v376, 4
        %v386 = vrot.slane %v377, 4
        %v387 = vrot.slane %v378, 4
        %v388 = vsel %vm384, %v385, %v387
        %v389 = vrot.slane %v379, 4
        %v390 = vsel %vm384, %v386, %v389
        %395 = vst [vmem:[#allocation2 + $0x10] sm:$0xf0] %v385
        %396 = vst [vmem:[#allocation2 + $0x18] sm:$0xf0] %v386
        %397 = vst [vmem:[#allocation2 + $0x20] sm:$0xff] %v388
        %398 = vst [vmem:[#allocation2 + $0x28] sm:$0xff] %v390
        %399 = vrot.lane.b32.xlu0 %v287, 2
        %v400 = vpop.permute.xlu0 %399
        %401 = vrot.lane.b32.xlu0 %v289, 2
        %v402 = vpop.permute.xlu0 %401
        %403 = vrot.lane.b32.xlu0 %v288, 2
        %v404 = vpop.permute.xlu0 %403
        %405 = vrot.lane.b32.xlu0 %v290, 2
        %v406 = vpop.permute.xlu0 %405
        %vm407 = vcmp.lt.s32.totalorder %v292, 2
        %v408 = vsel %vm407, %v400, %v404
        %v409 = vsel %vm407, %v402, %v406
        %v410 = vsel %vm407, %v404, %v400
        %v411 = vsel %vm407, %v406, %v402
        %v412 = vadd.s32 %v316, 4294967294
        %v413 = vadd.s32 %v317, 4294967294
        %vm414 = vcmp.ge.s32.totalorder %v412, 0
        %vm415 = vcmp.ge.s32.totalorder %v413, 0
        %vm416 = vcmp.lt.s32.totalorder %v412, 16
        %vm417 = vcmp.lt.s32.totalorder %v413, 16
        %vm418 = vmand %vm414, %vm416
        %vm419 = vmand %vm415, %vm417
        %v420 = vsel %vm418, 1, 0
        %v421 = vsel %vm419, 1, 0
        %vm422 = vcmp.eq.s32.totalorder %v420, 1
        %vm423 = vcmp.eq.s32.totalorder %v421, 1
        %v424 = vsel %vm422, %v410, 0.0
        %v425 = vsel %vm423, %v408, 0.0
        %v426 = vsel %vm422, %v411, 0.0
        %v427 = vsel %vm423, %v409, 0.0
        %428 = vst [vmem:[#allocation2 + $0x30] sm:$0xff] %v424
        %429 = vst [vmem:[#allocation2 + $0x38] sm:$0xff] %v425
        %430 = vst [vmem:[#allocation2 + $0x40] sm:$0xf] %v426
        %431 = vst [vmem:[#allocation2 + $0x48] sm:$0xf] %v427
        %432 = vrot.lane.b32.xlu0 %v287, 1
        %v433 = vpop.permute.xlu0 %432
        %434 = vrot.lane.b32.xlu0 %v289, 1
        %v435 = vpop.permute.xlu0 %434
        %436 = vrot.lane.b32.xlu0 %v288, 1
        %v437 = vpop.permute.xlu0 %436
        %438 = vrot.lane.b32.xlu0 %v290, 1
        %v439 = vpop.permute.xlu0 %438
        %vm440 = vcmp.lt.s32.totalorder %v292, 1
        %v441 = vsel %vm440, %v433, %v437
        %v442 = vsel %vm440, %v435, %v439
        %v443 = vsel %vm440, %v437, %v433
        %v444 = vsel %vm440, %v439, %v435
        %v445 = vadd.s32 %v316, 4294967295
        %v446 = vadd.s32 %v317, 4294967295
        %vm447 = vcmp.ge.s32.totalorder %v445, 0
        %vm448 = vcmp.ge.s32.totalorder %v446, 0
        %vm449 = vcmp.lt.s32.totalorder %v445, 16
        %vm450 = vcmp.lt.s32.totalorder %v446, 16
        %vm451 = vmand %vm447, %vm449
        %vm452 = vmand %vm448, %vm450
        %v453 = vsel %vm451, 1, 0
        %v454 = vsel %vm452, 1, 0
        %vm455 = vcmp.eq.s32.totalorder %v453, 1
        %vm456 = vcmp.eq.s32.totalorder %v454, 1
        %v457 = vsel %vm455, %v443, 0.0
        %v458 = vsel %vm456, %v441, 0.0
        %v459 = vsel %vm455, %v444, 0.0
        %v460 = vsel %vm456, %v442, 0.0
        %v465 = vrot.slane %v457, 4
        %v466 = vrot.slane %v458, 4
        %v467 = vrot.slane %v459, 4
        %v468 = vsel %vm384, %v465, %v467
        %v469 = vrot.slane %v460, 4
        %v470 = vsel %vm384, %v466, %v469
        %475 = vst [vmem:[#allocation2 + $0x40] sm:$0xf0] %v465
        %476 = vst [vmem:[#allocation2 + $0x48] sm:$0xf0] %v466
        %477 = vst [vmem:[#allocation2 + $0x50] sm:$0xff] %v468
        %478 = vst [vmem:[#allocation2 + $0x58] sm:$0xff] %v470
        %vm479 = vcmp.ge.s32.totalorder %v316, 0
        %vm480 = vcmp.ge.s32.totalorder %v317, 0
        %vm481 = vcmp.lt.s32.totalorder %v316, 16
        %vm482 = vcmp.lt.s32.totalorder %v317, 16
        %vm483 = vmand %vm479, %vm481
        %vm484 = vmand %vm480, %vm482
        %v485 = vsel %vm483, 1, 0
        %v486 = vsel %vm484, 1, 0
        %vm487 = vcmp.eq.s32.totalorder %v485, 1
        %vm488 = vcmp.eq.s32.totalorder %v486, 1
        %v489 = vsel %vm487, %v287, 0.0
        %v490 = vsel %vm488, %v288, 0.0
        %v491 = vsel %vm487, %v289, 0.0
        %v492 = vsel %vm488, %v290, 0.0
        %493 = vst [vmem:[#allocation2 + $0x60] sm:$0xff] %v489
        %494 = vst [vmem:[#allocation2 + $0x68] sm:$0xff] %v490
        %495 = vst [vmem:[#allocation2 + $0x70] sm:$0xf] %v491
        %496 = vst [vmem:[#allocation2 + $0x78] sm:$0xf] %v492
        %497 = vrot.lane.b32.xlu0 %v287, 127
        %v498 = vpop.permute.xlu0 %497
        %499 = vrot.lane.b32.xlu0 %v289, 127
        %v500 = vpop.permute.xlu0 %499
        %501 = vrot.lane.b32.xlu0 %v288, 127
        %v502 = vpop.permute.xlu0 %501
        %503 = vrot.lane.b32.xlu0 %v290, 127
        %v504 = vpop.permute.xlu0 %503
        %vm505 = vcmp.lt.s32.totalorder %v292, 127
        %v506 = vsel %vm505, %v498, %v502
        %v507 = vsel %vm505, %v500, %v504
        %v508 = vsel %vm505, %v502, %v498
        %v509 = vsel %vm505, %v504, %v500
        %v510 = vadd.s32 %v316, 1
        %v511 = vadd.s32 %v317, 1
        %vm512 = vcmp.ge.s32.totalorder %v510, 0
        %vm513 = vcmp.ge.s32.totalorder %v511, 0
        %vm514 = vcmp.lt.s32.totalorder %v510, 16
        %vm515 = vcmp.lt.s32.totalorder %v511, 16
        %vm516 = vmand %vm512, %vm514
        %vm517 = vmand %vm513, %vm515
        %v518 = vsel %vm516, 1, 0
        %v519 = vsel %vm517, 1, 0
        %vm520 = vcmp.eq.s32.totalorder %v518, 1
        %vm521 = vcmp.eq.s32.totalorder %v519, 1
        %v522 = vsel %vm520, %v506, 0.0
        %v523 = vsel %vm521, %v508, 0.0
        %v524 = vsel %vm520, %v507, 0.0
        %v525 = vsel %vm521, %v509, 0.0
        %v530 = vrot.slane %v522, 4
        %v531 = vrot.slane %v523, 4
        %v532 = vrot.slane %v524, 4
        %v533 = vsel %vm384, %v530, %v532
        %v534 = vrot.slane %v525, 4
        %v535 = vsel %vm384, %v531, %v534
        %540 = vst [vmem:[#allocation2 + $0x70] sm:$0xf0] %v530
        %541 = vst [vmem:[#allocation2 + $0x78] sm:$0xf0] %v531
        %542 = vst [vmem:[#allocation2 + $0x80] sm:$0xff] %v533
        %543 = vst [vmem:[#allocation2 + $0x88] sm:$0xff] %v535
        %544 = vrot.lane.b32.xlu0 %v287, 126
        %v545 = vpop.permute.xlu0 %544
        %546 = vrot.lane.b32.xlu0 %v289, 126
        %v547 = vpop.permute.xlu0 %546
        %548 = vrot.lane.b32.xlu0 %v288, 126
        %v549 = vpop.permute.xlu0 %548
        %550 = vrot.lane.b32.xlu0 %v290, 126
        %v551 = vpop.permute.xlu0 %550
        %vm552 = vcmp.lt.s32.totalorder %v292, 126
        %v553 = vsel %vm552, %v545, %v549
        %v554 = vsel %vm552, %v547, %v551
        %v555 = vsel %vm552, %v549, %v545
        %v556 = vsel %vm552, %v551, %v547
        %v557 = vadd.s32 %v316, 2
        %v558 = vadd.s32 %v317, 2
        %vm559 = vcmp.ge.s32.totalorder %v557, 0
        %vm560 = vcmp.ge.s32.totalorder %v558, 0
        %vm561 = vcmp.lt.s32.totalorder %v557, 16
        %vm562 = vcmp.lt.s32.totalorder %v558, 16
        %vm563 = vmand %vm559, %vm561
        %vm564 = vmand %vm560, %vm562
        %v565 = vsel %vm563, 1, 0
        %v566 = vsel %vm564, 1, 0
        %vm567 = vcmp.eq.s32.totalorder %v565, 1
        %vm568 = vcmp.eq.s32.totalorder %v566, 1
        %v569 = vsel %vm567, %v553, 0.0
        %v570 = vsel %vm568, %v555, 0.0
        %v571 = vsel %vm567, %v554, 0.0
        %v572 = vsel %vm568, %v556, 0.0
        %573 = vst [vmem:[#allocation2 + $0x90] sm:$0xff] %v569
        %574 = vst [vmem:[#allocation2 + $0x98] sm:$0xff] %v570
        %575 = vst [vmem:[#allocation2 + $0xa0] sm:$0xf] %v571
        %576 = vst [vmem:[#allocation2 + $0xa8] sm:$0xf] %v572
        %577 = vrot.lane.b32.xlu0 %v287, 125
        %v578 = vpop.permute.xlu0 %577
        %579 = vrot.lane.b32.xlu0 %v289, 125
        %v580 = vpop.permute.xlu0 %579
        %581 = vrot.lane.b32.xlu0 %v288, 125
        %v582 = vpop.permute.xlu0 %581
        %583 = vrot.lane.b32.xlu0 %v290, 125
        %v584 = vpop.permute.xlu0 %583
        %vm585 = vcmp.lt.s32.totalorder %v292, 125
        %v586 = vsel %vm585, %v578, %v582
        %v587 = vsel %vm585, %v580, %v584
        %v588 = vsel %vm585, %v582, %v578
        %v589 = vsel %vm585, %v584, %v580
        %v590 = vadd.s32 %v316, 3
        %v591 = vadd.s32 %v317, 3
        %vm592 = vcmp.ge.s32.totalorder %v590, 0
        %vm593 = vcmp.ge.s32.totalorder %v591, 0
        %vm594 = vcmp.lt.s32.totalorder %v590, 16
        %vm595 = vcmp.lt.s32.totalorder %v591, 16
        %vm596 = vmand %vm592, %vm594
        %vm597 = vmand %vm593, %vm595
        %v598 = vsel %vm596, 1, 0
        %v599 = vsel %vm597, 1, 0
        %vm600 = vcmp.eq.s32.totalorder %v598, 1
        %vm601 = vcmp.eq.s32.totalorder %v599, 1
        %v602 = vsel %vm600, %v586, 0.0
        %v603 = vsel %vm601, %v588, 0.0
        %v604 = vsel %vm600, %v587, 0.0
        %v605 = vsel %vm601, %v589, 0.0
        %v610 = vrot.slane %v602, 4
        %v611 = vrot.slane %v603, 4
        %v612 = vrot.slane %v604, 4
        %v613 = vsel %vm384, %v610, %v612
        %v614 = vrot.slane %v605, 4
        %v615 = vsel %vm384, %v611, %v614
        %620 = vst [vmem:[#allocation2 + $0xa0] sm:$0xf0] %v610
        %621 = vst [vmem:[#allocation2 + $0xa8] sm:$0xf0] %v611
        %622 = vst [vmem:[#allocation2 + $0xb0] sm:$0xff] %v613
        %623 = vst [vmem:[#allocation2 + $0xb8] sm:$0xff] %v615
        %624 = vrot.lane.b32.xlu0 %v287, 124
        %v625 = vpop.permute.xlu0 %624
        %626 = vrot.lane.b32.xlu0 %v289, 124
        %v627 = vpop.permute.xlu0 %626
        %628 = vrot.lane.b32.xlu0 %v288, 124
        %v629 = vpop.permute.xlu0 %628
        %630 = vrot.lane.b32.xlu0 %v290, 124
        %v631 = vpop.permute.xlu0 %630
        %vm632 = vcmp.lt.s32.totalorder %v292, 124
        %v633 = vsel %vm632, %v625, %v629
        %v634 = vsel %vm632, %v627, %v631
        %v635 = vsel %vm632, %v629, %v625
        %v636 = vsel %vm632, %v631, %v627
        %v637 = vadd.s32 %v316, 4
        %v638 = vadd.s32 %v317, 4
        %vm639 = vcmp.ge.s32.totalorder %v637, 0
        %vm640 = vcmp.ge.s32.totalorder %v638, 0
        %vm641 = vcmp.lt.s32.totalorder %v637, 16
        %vm642 = vcmp.lt.s32.totalorder %v638, 16
        %vm643 = vmand %vm639, %vm641
        %vm644 = vmand %vm640, %vm642
        %v645 = vsel %vm643, 1, 0
        %v646 = vsel %vm644, 1, 0
        %vm647 = vcmp.eq.s32.totalorder %v645, 1
        %vm648 = vcmp.eq.s32.totalorder %v646, 1
        %v649 = vsel %vm647, %v633, 0.0
        %v650 = vsel %vm648, %v635, 0.0
        %v651 = vsel %vm647, %v634, 0.0
        %v652 = vsel %vm648, %v636, 0.0
        %653 = vst [vmem:[#allocation2 + $0xc0] sm:$0xff] %v649
        %654 = vst [vmem:[#allocation2 + $0xc8] sm:$0xff] %v650
        %655 = vst [vmem:[#allocation2 + $0xd0] sm:$0xf] %v651
        %656 = vst [vmem:[#allocation2 + $0xd8] sm:$0xf] %v652
        %v657 = vld [vmem:[%s3] sm:$0xf]
        %v658 = vld [vmem:[#allocation2] sm:$0xff]
        %v659 = vld [vmem:[#allocation2 + $0x8] sm:$0xff]
        %v660 = vld [vmem:[#allocation2 + $0x10] sm:$0xff]
        %v661 = vld [vmem:[#allocation2 + $0x18] sm:$0xff]
        %v662 = vld [vmem:[#allocation2 + $0x20] sm:$0xff]
        %v663 = vld [vmem:[#allocation2 + $0x28] sm:$0xff]
        %v664 = vld [vmem:[#allocation2 + $0x30] sm:$0xff]
        %v665 = vld [vmem:[#allocation2 + $0x38] sm:$0xff]
        %v666 = vld [vmem:[#allocation2 + $0x40] sm:$0xff]
        %v667 = vld [vmem:[#allocation2 + $0x48] sm:$0xff]
        %v668 = vld [vmem:[#allocation2 + $0x50] sm:$0xff]
        %v669 = vld [vmem:[#allocation2 + $0x58] sm:$0xff]
        %v670 = vld [vmem:[#allocation2 + $0x60] sm:$0xff]
        %v671 = vld [vmem:[#allocation2 + $0x68] sm:$0xff]
        %v672 = vld [vmem:[#allocation2 + $0x70] sm:$0xff]
        %v673 = vld [vmem:[#allocation2 + $0x78] sm:$0xff]
        %v674 = vld [vmem:[#allocation2 + $0x80] sm:$0xff]
        %v675 = vld [vmem:[#allocation2 + $0x88] sm:$0xff]
        %v676 = vld [vmem:[#allocation2 + $0x90] sm:$0xff]
        %v677 = vld [vmem:[#allocation2 + $0x98] sm:$0xff]
        %v678 = vld [vmem:[#allocation2 + $0xa0] sm:$0xff]
        %v679 = vld [vmem:[#allocation2 + $0xa8] sm:$0xff]
        %v680 = vld [vmem:[#allocation2 + $0xb0] sm:$0xff]
        %v681 = vld [vmem:[#allocation2 + $0xb8] sm:$0xff]
        %v682 = vld [vmem:[#allocation2 + $0xc0] sm:$0xff]
        %v683 = vld [vmem:[#allocation2 + $0xc8] sm:$0xff]
        %v684 = vld [vmem:[#allocation2 + $0xd0] sm:$0xf]
        %v685 = vld [vmem:[#allocation2 + $0xd8] sm:$0xf]
        %v686 = vld [vmem:[%s4] sm:$0xf]
        %688 = vset.pattern.permute.xlu0 0
        %689 = vperm.xlu0 %688, %v686
        %v690 = vpop.permute.xlu0 %689
        %vm692 = vcmask 883712
        %v694 = vsel %vm692, %v657, 0
        %v697 = vsel %vm384, %v684, 0
        %v700 = vsel %vm384, %v685, 0
        %702 = vmatprep.subr.mxu0 0.0
        %703 = vmatpush1.msra.mxu0 0.0
        %704 = vmatprep.subr.mxu0 0.0
        %705 = vmatpush1.msra.mxu0 0.0
        %706 = vmatprep.subr.mxu0 %v700
        %707 = vmatpush1.msra.mxu0 %v697
        %708 = vmatprep.subr.mxu0 %v683
        %709 = vmatpush1.msra.mxu0 %v682
        %710 = vmatprep.subr.mxu0 %v681
        %711 = vmatpush1.msra.mxu0 %v680
        %712 = vmatprep.subr.mxu0 %v679
        %713 = vmatpush1.msra.mxu0 %v678
        %714 = vmatprep.subr.mxu0 %v677
        %715 = vmatpush1.msra.mxu0 %v676
        %716 = vmatprep.subr.mxu0 %v675
        %717 = vmatpush1.msra.mxu0 %v674
        %718 = vmatprep.subr.mxu0 %v673
        %719 = vmatpush1.msra.mxu0 %v672
        %720 = vmatprep.subr.mxu0 %v671
        %721 = vmatpush1.msra.mxu0 %v670
        %722 = vmatprep.subr.mxu0 %v669
        %723 = vmatpush1.msra.mxu0 %v668
        %724 = vmatprep.subr.mxu0 %v667
        %725 = vmatpush1.msra.mxu0 %v666
        %726 = vmatprep.subr.mxu0 %v665
        %727 = vmatpush1.msra.mxu0 %v664
        %728 = vmatprep.subr.mxu0 %v663
        %729 = vmatpush1.msra.mxu0 %v662
        %730 = vmatprep.subr.mxu0 %v661
        %731 = vmatpush1.msra.mxu0 %v660
        %732 = vmatprep.subr.mxu0 %v659
        %733 = vmatpush1.msra.mxu0 %v658
        %734 = vmatprep.subr.mxu0 0.0
        %735 = vmatpush2.msra.mxu0 0.0
        %736 = vmatprep.subr.mxu0 0.0
        %737 = vmatpush2.msra.mxu0 0.0
        %738 = vmatprep.subr.mxu0 0.0
        %739 = vmatpush2.msra.mxu0 0.0
        %740 = vmatprep.subr.mxu0 0.0
        %741 = vmatpush2.msra.mxu0 0.0
        %742 = vmatprep.subr.mxu0 0.0
        %743 = vmatpush2.msra.mxu0 0.0
        %744 = vmatprep.subr.mxu0 0.0
        %745 = vmatpush2.msra.mxu0 0.0
        %746 = vmatprep.subr.mxu0 0.0
        %747 = vmatpush2.msra.mxu0 0.0
        %748 = vmatprep.subr.mxu0 0.0
        %749 = vmatpush2.msra.mxu0 0.0
        %750 = vmatprep.subr.mxu0 0.0
        %751 = vmatpush2.msra.mxu0 0.0
        %752 = vmatprep.subr.mxu0 0.0
        %753 = vmatpush2.msra.mxu0 0.0
        %754 = vmatprep.subr.mxu0 0.0
        %755 = vmatpush2.msra.mxu0 0.0
        %756 = vmatprep.subr.mxu0 0.0
        %757 = vmatpush2.msra.mxu0 0.0
        %758 = vmatprep.subr.mxu0 0.0
        %759 = vmatpush2.msra.mxu0 0.0
        %760 = vmatprep.subr.mxu0 0.0
        %761 = vmatpush2.msra.mxu0 0.0
        %762 = vmatprep.subr.mxu0 0.0
        %763 = vmatpush2.msra.mxu0 0.0
        %764 = vmatprep.subr.mxu0 0.0
        %765 = vmatpush2.msra.mxu0 0.0
        %766 = vmatprep.mubr.f32.mxu0 0.0
        %767 = vmatmul.mubr.f32.gmra.mxu0 %v694
        %v768 = vpop.f32.mrf.mxu0
        %v769 = vadd.f32 %v690, %v768
        %v770 = vpop.f32.mrf.mxu0
        %v771 = vadd.f32 %v690, %v770
        %772 = vdwg.mxu0
        %v775 = vrot.slane %v769, 4
        %v776 = vrot.slane %v771, 4
        %779 = vst [vmem:[%s244 + $0x10] sm:$0xf0] %v775
        %780 = vst [vmem:[%s244 + $0x18] sm:$0xf0] %v776
        %s781 = sand.u32 %s134, 1
        %s782 = sand.u32 %s134, 1
        %s783 = smul.addr %s782, 32
        %s784 = scalar_lea.vmem [#allocation4], %s783
        // Predicated region
        $region64: #{dense_block.5} parent=58 // pred_check
          %p785 = pneg %p144
        $region65: #{dense_block.5} parent=58 // pred_check_branch
          %787 = sbr.rel (%p785) target = $region67
        $region66: #{dense_block.5} parent=58 // pred_region
          %s788 = smul.u32 2, %s16
          %s789 = smul.addr %s788, 8
          %s790 = scalar_lea.vmem %s5, %s789
          // Predicated region
          $region68: #{dense_block.5} parent=66 // pred_check
            _
          $region69: #{dense_block.5} parent=66 // pred_check_branch
            %792 = sbr.rel (0) target = $region71
          $region70: #{dense_block.5} parent=66 // pred_region
            // Predicated region
            $region72: #{dense_block.5} parent=70 // pred_check
              _
            $region73: #{dense_block.5} parent=70 // pred_check_branch
              %794 = sbr.rel (0) target = $region75
            $region74: #{dense_block.5} parent=70 // pred_region
              loop: start=0, step=1, limit=1
              $region76: #{dense_block.5} parent=74 // loop_pre_header
                _
              $region77: #{dense_block.5} parent=74 // loop_header
                %s796 = sphi 0, %s800
                %p797 = scmp.ge.s32.totalorder %s796, 1
                %s801 = sphi %s784, %s784
                %s802 = sphi %s790, %s790
              $region78: #{dense_block.5} parent=74 // loop_header_branch
                %799 = sbr.rel (%p797) target = $region82
              $region79: #{dense_block.5} parent=74 // loop_body
                %v803 = vld [vmem:[%s801] sm:$0xff]
                %804 = vst [vmem:[%s802] sm:$0xff] %v803
                %v805 = vld [vmem:[%s801 + $0x8] sm:$0xff]
                %806 = vst [vmem:[%s802 + $0x8] sm:$0xff] %v805
                %v807 = vld [vmem:[%s801 + $0x10] sm:$0xff]
                %808 = vst [vmem:[%s802 + $0x20] sm:$0xff] %v807
                %v809 = vld [vmem:[%s801 + $0x18] sm:$0xff]
                %810 = vst [vmem:[%s802 + $0x28] sm:$0xff] %v809
              $region80: #{dense_block.5} parent=74 // loop_footer
                %s800 = sadd.s32 1, %s796
              $region81: #{dense_block.5} parent=74 // loop_footer_branch
                %795 = sbr.rel target = $region77
              $region82: #{dense_block.5} parent=74 // loop_exit
                _
            $region75: #{dense_block.5} parent=70 // pred_fallthru
              _
            // Predicated region
            $region83: #{dense_block.5} parent=70 // pred_check
              _
            $region84: #{dense_block.5} parent=70 // pred_check_branch
              %812 = sbr.rel target = $region86
            $region85: #{dense_block.5} parent=70 // pred_region
              _
            $region86: #{dense_block.5} parent=70 // pred_fallthru
              _
          $region71: #{dense_block.5} parent=66 // pred_fallthru
            _
          %813 = vnop
        $region67: #{dense_block.5} parent=58 // pred_fallthru
          _
      $region59: #{dense_block.5} parent=5 // pred_fallthru
        _
      %p814 = scmp.le.s32.totalorder 2, %s11
      // Predicated region
      $region87: #{dense_block.5} parent=5 // pred_check
        %p815 = pneg %p814
      $region88: #{dense_block.5} parent=5 // pred_check_branch
        %817 = sbr.rel (%p815) target = $region90
      $region89: #{dense_block.5} parent=5 // pred_region
        %s818 = ssub.s32 %s11, 2
        // Predicated region
        $region91: #{dense_block.5} parent=89 // pred_check
          %p819 = pneg %p150
        $region92: #{dense_block.5} parent=89 // pred_check_branch
          %821 = sbr.rel (%p819) target = $region94
        $region93: #{dense_block.5} parent=89 // pred_region
          %s822 = sand.u32 %s135, 1
          %s823 = sand.u32 %s135, 1
          %s824 = smul.addr %s823, 32
          %s825 = scalar_lea.vmem [#allocation4], %s824
        $region94: #{dense_block.5} parent=89 // pred_fallthru
          _
      $region90: #{dense_block.5} parent=5 // pred_fallthru
        _
    $region6: #{dense_block.5} parent=1 // loop_footer
      %s15 = sadd.s32 1, %s11
    $region7: #{dense_block.5} parent=1 // loop_footer_branch
      %10 = sbr.rel target = $region3
    $region8: #{dense_block.5} parent=1 // loop_exit
      _

</llo_original>
